<compile_context>
chip_gen: v7x
topology: tpu7x:2x2x1
jax: 0.10.0
libtpu: 0.0.40
codegen_flags: <defaults>
</compile_context>

<pallas_src>
import math

import jax
import jax.numpy as jnp
from jax import lax
from jax.experimental import pallas as pl
from jax.experimental.pallas import tpu as pltpu

EPS = 1e-5  # nn.BatchNorm1d default


# ----------------------- in-kernel building blocks (traced) -----------------------

def _conv_rows(xn, w):
    """Valid 1-D conv for one batch element, channels-last.

    xn: (L, C_in)  float32 value
    w : (K, C_in, C_out) bfloat16 value
    returns (L - K + 1, C_out) float32
    """
    K, c_in, c_out = w.shape
    l_out = xn.shape[0] - K + 1
    acc = jnp.zeros((l_out, c_out), jnp.float32)
    for k in range(K):  # K is 3..15 -> fully unrolled, static slices
        xs = xn[k:k + l_out, :]
        if c_in == 1:
            # degenerate contraction dim: cheaper as a VPU broadcast-multiply
            acc = acc + xs * w[k, 0, :].astype(jnp.float32)[None, :]
        else:
            acc = acc + jnp.dot(xs.astype(jnp.bfloat16), w[k],
                                preferred_element_type=jnp.float32)
    return acc


def _conv_bn_relu(xs, w, gamma, beta):
    """Conv1d (no bias) + training-mode BatchNorm1d + ReLU, fused.

    xs: list (len N) of (L, C_in) float32 values
    w : (K, C_in, C_out) bfloat16;  gamma/beta: (1, C_out) float32
    returns list of (L_out, C_out) float32 values
    """
    ys = [_conv_rows(x, w) for x in xs]
    cnt = float(len(ys) * ys[0].shape[0])
    # single reduction pass: per-channel sum and sum-of-squares over batch*length
    s = sum(jnp.sum(y, axis=0, keepdims=True) for y in ys)        # (1, C_out)
    ss = sum(jnp.sum(y * y, axis=0, keepdims=True) for y in ys)   # (1, C_out)
    mean = s * (1.0 / cnt)
    var = jnp.maximum(ss * (1.0 / cnt) - mean * mean, 0.0)        # biased variance
    scale = gamma * lax.rsqrt(var + EPS)                          # fold gamma
    shift = beta - mean * scale                                   # fold mean
    return [jnp.maximum(y * scale + shift, 0.0) for y in ys]


# --------------------------------- Pallas kernels ---------------------------------

def _block_a_kernel(x_ref, w1_ref, g1_ref, b1_ref, w2_ref, g2_ref, b2_ref, o_ref):
    """layer1 + layer2 conv/bn/relu.  x_ref: (N, L, C_in); o_ref: (N, L2, 32)."""
    n_batch = x_ref.shape[0]
    xs = [x_ref[n] for n in range(n_batch)]
    ys = _conv_bn_relu(xs, w1_ref[...], g1_ref[...], b1_ref[...])
    ys = _conv_bn_relu(ys, w2_ref[...], g2_ref[...], b2_ref[...])
    for n in range(n_batch):
        o_ref[n] = ys[n]


def _block_b_kernel(x_ref, w3_ref, g3_ref, b3_ref, w4_ref, g4_ref, b4_ref,
                    wfc_ref, bfc_ref, o_ref):
    """layer3 + layer4 (conv/bn/relu + AdaptiveMaxPool1d(P)) + layer5 (Linear+ReLU)."""
    n_batch = x_ref.shape[0]
    xs = [x_ref[n] for n in range(n_batch)]
    ys = _conv_bn_relu(xs, w3_ref[...], g3_ref[...], b3_ref[...])
    ys = _conv_bn_relu(ys, w4_ref[...], g4_ref[...], b4_ref[...])  # each: (L4, 128)

    n_pool, _, f_out = wfc_ref.shape
    wfc = wfc_ref[...]
    l4 = ys[0].shape[0]
    acc = jnp.zeros((n_batch, f_out), jnp.float32)
    for p in range(n_pool):
        start = (p * l4) // n_pool
        end = -(-((p + 1) * l4) // n_pool)   # ceil -> PyTorch adaptive-pool bins
        seg = jnp.concatenate(
            [jnp.max(y[start:end, :], axis=0, keepdims=True) for y in ys], axis=0)
        acc = acc + jnp.dot(seg.astype(jnp.bfloat16), wfc[p],
                            preferred_element_type=jnp.float32)
    o_ref[...] = jnp.maximum(acc + bfc_ref[...], 0.0)


# --------------------------------- host wrappers -----------------------------------

def _full_spec(shape):
    return pl.BlockSpec(shape, lambda: (0,) * len(shape))


_COMPILER_PARAMS = pltpu.CompilerParams(vmem_limit_bytes=32 * 1024 * 1024)


def block_a(x, w1, g1, b1, w2, g2, b2):
    n, length, _ = x.shape
    k1 = w1.shape[0]
    k2, _, c2 = w2.shape
    l_out = length - (k1 - 1) - (k2 - 1)
    args = (x, w1, g1, b1, w2, g2, b2)
    return pl.pallas_call(
        _block_a_kernel,
        out_shape=jax.ShapeDtypeStruct((n, l_out, c2), jnp.float32),
        in_specs=[_full_spec(a.shape) for a in args],
        out_specs=_full_spec((n, l_out, c2)),
        compiler_params=_COMPILER_PARAMS,
    )(*args)


def block_b(x, w3, g3, b3, w4, g4, b4, wfc, bfc):
    n = x.shape[0]
    f_out = wfc.shape[2]
    args = (x, w3, g3, b3, w4, g4, b4, wfc, bfc)
    return pl.pallas_call(
        _block_b_kernel,
        out_shape=jax.ShapeDtypeStruct((n, f_out), jnp.float32),
        in_specs=[_full_spec(a.shape) for a in args],
        out_specs=_full_spec((n, f_out)),
        compiler_params=_COMPILER_PARAMS,
    )(*args)


def max_pool1d_nlc(x, k=2, s=2):
    """MaxPool1d(kernel=k, stride=s) with k == s, channels-last, floor length."""
    n, length, c = x.shape
    l_out = (length - k) // s + 1
    x = x[:, : l_out * s, :].reshape(n, l_out, s, c)
    return jnp.max(x, axis=2)


# ------------------------------------ parameters -----------------------------------

def init_params(key, in_channel=1):
    """PyTorch-layout parameters with nn.Conv1d / nn.Linear default init."""
    params = {}
    conv_specs = {
        "conv1": (16, in_channel, 15),
        "conv2": (32, 16, 3),
        "conv3": (64, 32, 3),
        "conv4": (128, 64, 3),
    }
    for name, (co, ci, k) in conv_specs.items():
        key, k1, k2 = jax.random.split(key, 3)
        bound = 1.0 / math.sqrt(ci * k)
        params[name + "_w"] = jax.random.uniform(k1, (co, ci, k), jnp.float32, -bound, bound)
        # Conv bias exists in the module but is algebraically cancelled by the
        # training-mode BatchNorm mean subtraction, so the kernels do not use it.
        params[name + "_b"] = jax.random.uniform(k2, (co,), jnp.float32, -bound, bound)
        params[name + "_gamma"] = jnp.ones((co,), jnp.float32)
        params[name + "_beta"] = jnp.zeros((co,), jnp.float32)
    key, k1, k2 = jax.random.split(key, 3)
    bound = 1.0 / math.sqrt(128 * 4)
    params["fc_w"] = jax.random.uniform(k1, (128, 128 * 4), jnp.float32, -bound, bound)
    params["fc_b"] = jax.random.uniform(k2, (128,), jnp.float32, -bound, bound)
    return params


def prepare_params(params, n_pool=4):
    """Convert PyTorch-layout params to kernel layout (channels-last, bf16 weights)."""
    kp = {}
    for name in ("conv1", "conv2", "conv3", "conv4"):
        w = params[name + "_w"]                                          # (C_out, C_in, K)
        kp[name + "_w"] = jnp.transpose(w, (2, 1, 0)).astype(jnp.bfloat16)  # (K, C_in, C_out)
        kp[name + "_g"] = params[name + "_gamma"].reshape(1, -1)
        kp[name + "_beta"] = params[name + "_beta"].reshape(1, -1)
    # PyTorch flattens (N, C, P) channel-major: feature index = c * P + p.
    fc_w = params["fc_w"]                                                # (F_out, C*P)
    f_out = fc_w.shape[0]
    c = fc_w.shape[1] // n_pool
    kp["fc_w"] = jnp.transpose(fc_w.reshape(f_out, c, n_pool), (2, 1, 0)).astype(jnp.bfloat16)
    kp["fc_b"] = params["fc_b"].reshape(1, -1)
    return kp


# ------------------------------------- forward -------------------------------------

def cnn_forward(kp, x_ncl):
    # single NCL -> NLC transpose; channels-last everywhere after this point.
    x = jnp.transpose(x_ncl, (0, 2, 1))
    y = block_a(x, kp["conv1_w"], kp["conv1_g"], kp["conv1_beta"],
                kp["conv2_w"], kp["conv2_g"], kp["conv2_beta"])          # layer1 + layer2 conv/bn/relu
    y = max_pool1d_nlc(y, 2, 2)                                          # layer2 pool (tiny, plain XLA)
    out = block_b(y, kp["conv3_w"], kp["conv3_g"], kp["conv3_beta"],
                  kp["conv4_w"], kp["conv4_g"], kp["conv4_beta"],
                  kp["fc_w"], kp["fc_b"])                                # layer3+4+adaptive-pool+fc
    return out


if __name__ == "__main__":
    key = jax.random.PRNGKey(0)
    kp_key, kx = jax.random.split(key)
    torch_params = init_params(kp_key, in_channel=1)
    kparams = prepare_params(torch_params)

    N, C_in, L = 2, 1, 64
    x = jax.random.normal(kx, (N, C_in, L), jnp.float32)

    out = jax.jit(cnn_forward)(kparams, x)
    out = jax.block_until_ready(out)
    assert out.shape == (N, 128), out.shape
    assert bool(jnp.all(jnp.isfinite(out)))
    print("KERNEL_OK")
</pallas_src>

<mosaic_0001>
module attributes {stable_mosaic.version = 11 : i64} {
  func.func @_block_a_kernel(%arg0: memref<2x64x1xf32, #tpu.memory_space<vmem>>, %arg1: memref<15x1x16xbf16, #tpu.memory_space<vmem>>, %arg2: memref<1x16xf32, #tpu.memory_space<vmem>>, %arg3: memref<1x16xf32, #tpu.memory_space<vmem>>, %arg4: memref<3x16x32xbf16, #tpu.memory_space<vmem>>, %arg5: memref<1x32xf32, #tpu.memory_space<vmem>>, %arg6: memref<1x32xf32, #tpu.memory_space<vmem>>, %arg7: memref<2x48x32xf32, #tpu.memory_space<vmem>>) attributes {dimension_semantics = [], scalar_prefetch = 0 : i64, scratch_operands = 0 : i64, tpu.core_type = #tpu.core_type<tc>} {
    %c0 = arith.constant 0 : index
    %c0_0 = arith.constant 0 : index
    %c0_1 = arith.constant 0 : index
    %0 = vector.load %arg0[%c0, %c0_0, %c0_1] : memref<2x64x1xf32, #tpu.memory_space<vmem>>, vector<1x64x1xf32>
    %1 = vector.shape_cast %0 : vector<1x64x1xf32> to vector<64x1xf32>
    %c1 = arith.constant 1 : index
    %c0_2 = arith.constant 0 : index
    %c0_3 = arith.constant 0 : index
    %2 = vector.load %arg0[%c1, %c0_2, %c0_3] : memref<2x64x1xf32, #tpu.memory_space<vmem>>, vector<1x64x1xf32>
    %3 = vector.shape_cast %2 : vector<1x64x1xf32> to vector<64x1xf32>
    %c0_4 = arith.constant 0 : index
    %c0_5 = arith.constant 0 : index
    %c0_6 = arith.constant 0 : index
    %4 = vector.load %arg1[%c0_4, %c0_5, %c0_6] : memref<15x1x16xbf16, #tpu.memory_space<vmem>>, vector<15x1x16xbf16>
    %c0_7 = arith.constant 0 : index
    %c0_8 = arith.constant 0 : index
    %5 = vector.load %arg2[%c0_7, %c0_8] : memref<1x16xf32, #tpu.memory_space<vmem>>, vector<1x16xf32>
    %c0_9 = arith.constant 0 : index
    %c0_10 = arith.constant 0 : index
    %6 = vector.load %arg3[%c0_9, %c0_10] : memref<1x16xf32, #tpu.memory_space<vmem>>, vector<1x16xf32>
    %cst = arith.constant 0.000000e+00 : f32
    %7 = vector.broadcast %cst : f32 to vector<50x16xf32>
    %8 = vector.extract_strided_slice %1 {offsets = [0, 0], sizes = [50, 1], strides = [1, 1]} : vector<64x1xf32> to vector<50x1xf32>
    %9 = vector.extract_strided_slice %4 {offsets = [0, 0, 0], sizes = [1, 1, 16], strides = [1, 1, 1]} : vector<15x1x16xbf16> to vector<1x1x16xbf16>
    %10 = vector.shape_cast %9 : vector<1x1x16xbf16> to vector<16xbf16>
    %11 = arith.extf %10 : vector<16xbf16> to vector<16xf32>
    %12 = vector.shape_cast %11 : vector<16xf32> to vector<1x16xf32>
    %13 = vector.broadcast %8 : vector<50x1xf32> to vector<50x16xf32>
    %14 = vector.broadcast %12 : vector<1x16xf32> to vector<50x16xf32>
    %15 = arith.mulf %13, %14 : vector<50x16xf32>
    %16 = arith.addf %7, %15 : vector<50x16xf32>
    %17 = vector.extract_strided_slice %1 {offsets = [1, 0], sizes = [50, 1], strides = [1, 1]} : vector<64x1xf32> to vector<50x1xf32>
    %18 = vector.extract_strided_slice %4 {offsets = [1, 0, 0], sizes = [1, 1, 16], strides = [1, 1, 1]} : vector<15x1x16xbf16> to vector<1x1x16xbf16>
    %19 = vector.shape_cast %18 : vector<1x1x16xbf16> to vector<16xbf16>
    %20 = arith.extf %19 : vector<16xbf16> to vector<16xf32>
    %21 = vector.shape_cast %20 : vector<16xf32> to vector<1x16xf32>
    %22 = vector.broadcast %17 : vector<50x1xf32> to vector<50x16xf32>
    %23 = vector.broadcast %21 : vector<1x16xf32> to vector<50x16xf32>
    %24 = arith.mulf %22, %23 : vector<50x16xf32>
    %25 = arith.addf %16, %24 : vector<50x16xf32>
    %26 = vector.extract_strided_slice %1 {offsets = [2, 0], sizes = [50, 1], strides = [1, 1]} : vector<64x1xf32> to vector<50x1xf32>
    %27 = vector.extract_strided_slice %4 {offsets = [2, 0, 0], sizes = [1, 1, 16], strides = [1, 1, 1]} : vector<15x1x16xbf16> to vector<1x1x16xbf16>
    %28 = vector.shape_cast %27 : vector<1x1x16xbf16> to vector<16xbf16>
    %29 = arith.extf %28 : vector<16xbf16> to vector<16xf32>
    %30 = vector.shape_cast %29 : vector<16xf32> to vector<1x16xf32>
    %31 = vector.broadcast %26 : vector<50x1xf32> to vector<50x16xf32>
    %32 = vector.broadcast %30 : vector<1x16xf32> to vector<50x16xf32>
    %33 = arith.mulf %31, %32 : vector<50x16xf32>
    %34 = arith.addf %25, %33 : vector<50x16xf32>
    %35 = vector.extract_strided_slice %1 {offsets = [3, 0], sizes = [50, 1], strides = [1, 1]} : vector<64x1xf32> to vector<50x1xf32>
    %36 = vector.extract_strided_slice %4 {offsets = [3, 0, 0], sizes = [1, 1, 16], strides = [1, 1, 1]} : vector<15x1x16xbf16> to vector<1x1x16xbf16>
    %37 = vector.shape_cast %36 : vector<1x1x16xbf16> to vector<16xbf16>
    %38 = arith.extf %37 : vector<16xbf16> to vector<16xf32>
    %39 = vector.shape_cast %38 : vector<16xf32> to vector<1x16xf32>
    %40 = vector.broadcast %35 : vector<50x1xf32> to vector<50x16xf32>
    %41 = vector.broadcast %39 : vector<1x16xf32> to vector<50x16xf32>
    %42 = arith.mulf %40, %41 : vector<50x16xf32>
    %43 = arith.addf %34, %42 : vector<50x16xf32>
    %44 = vector.extract_strided_slice %1 {offsets = [4, 0], sizes = [50, 1], strides = [1, 1]} : vector<64x1xf32> to vector<50x1xf32>
    %45 = vector.extract_strided_slice %4 {offsets = [4, 0, 0], sizes = [1, 1, 16], strides = [1, 1, 1]} : vector<15x1x16xbf16> to vector<1x1x16xbf16>
    %46 = vector.shape_cast %45 : vector<1x1x16xbf16> to vector<16xbf16>
    %47 = arith.extf %46 : vector<16xbf16> to vector<16xf32>
    %48 = vector.shape_cast %47 : vector<16xf32> to vector<1x16xf32>
    %49 = vector.broadcast %44 : vector<50x1xf32> to vector<50x16xf32>
    %50 = vector.broadcast %48 : vector<1x16xf32> to vector<50x16xf32>
    %51 = arith.mulf %49, %50 : vector<50x16xf32>
    %52 = arith.addf %43, %51 : vector<50x16xf32>
    %53 = vector.extract_strided_slice %1 {offsets = [5, 0], sizes = [50, 1], strides = [1, 1]} : vector<64x1xf32> to vector<50x1xf32>
    %54 = vector.extract_strided_slice %4 {offsets = [5, 0, 0], sizes = [1, 1, 16], strides = [1, 1, 1]} : vector<15x1x16xbf16> to vector<1x1x16xbf16>
    %55 = vector.shape_cast %54 : vector<1x1x16xbf16> to vector<16xbf16>
    %56 = arith.extf %55 : vector<16xbf16> to vector<16xf32>
    %57 = vector.shape_cast %56 : vector<16xf32> to vector<1x16xf32>
    %58 = vector.broadcast %53 : vector<50x1xf32> to vector<50x16xf32>
    %59 = vector.broadcast %57 : vector<1x16xf32> to vector<50x16xf32>
    %60 = arith.mulf %58, %59 : vector<50x16xf32>
    %61 = arith.addf %52, %60 : vector<50x16xf32>
    %62 = vector.extract_strided_slice %1 {offsets = [6, 0], sizes = [50, 1], strides = [1, 1]} : vector<64x1xf32> to vector<50x1xf32>
    %63 = vector.extract_strided_slice %4 {offsets = [6, 0, 0], sizes = [1, 1, 16], strides = [1, 1, 1]} : vector<15x1x16xbf16> to vector<1x1x16xbf16>
    %64 = vector.shape_cast %63 : vector<1x1x16xbf16> to vector<16xbf16>
    %65 = arith.extf %64 : vector<16xbf16> to vector<16xf32>
    %66 = vector.shape_cast %65 : vector<16xf32> to vector<1x16xf32>
    %67 = vector.broadcast %62 : vector<50x1xf32> to vector<50x16xf32>
    %68 = vector.broadcast %66 : vector<1x16xf32> to vector<50x16xf32>
    %69 = arith.mulf %67, %68 : vector<50x16xf32>
    %70 = arith.addf %61, %69 : vector<50x16xf32>
    %71 = vector.extract_strided_slice %1 {offsets = [7, 0], sizes = [50, 1], strides = [1, 1]} : vector<64x1xf32> to vector<50x1xf32>
    %72 = vector.extract_strided_slice %4 {offsets = [7, 0, 0], sizes = [1, 1, 16], strides = [1, 1, 1]} : vector<15x1x16xbf16> to vector<1x1x16xbf16>
    %73 = vector.shape_cast %72 : vector<1x1x16xbf16> to vector<16xbf16>
    %74 = arith.extf %73 : vector<16xbf16> to vector<16xf32>
    %75 = vector.shape_cast %74 : vector<16xf32> to vector<1x16xf32>
    %76 = vector.broadcast %71 : vector<50x1xf32> to vector<50x16xf32>
    %77 = vector.broadcast %75 : vector<1x16xf32> to vector<50x16xf32>
    %78 = arith.mulf %76, %77 : vector<50x16xf32>
    %79 = arith.addf %70, %78 : vector<50x16xf32>
    %80 = vector.extract_strided_slice %1 {offsets = [8, 0], sizes = [50, 1], strides = [1, 1]} : vector<64x1xf32> to vector<50x1xf32>
    %81 = vector.extract_strided_slice %4 {offsets = [8, 0, 0], sizes = [1, 1, 16], strides = [1, 1, 1]} : vector<15x1x16xbf16> to vector<1x1x16xbf16>
    %82 = vector.shape_cast %81 : vector<1x1x16xbf16> to vector<16xbf16>
    %83 = arith.extf %82 : vector<16xbf16> to vector<16xf32>
    %84 = vector.shape_cast %83 : vector<16xf32> to vector<1x16xf32>
    %85 = vector.broadcast %80 : vector<50x1xf32> to vector<50x16xf32>
    %86 = vector.broadcast %84 : vector<1x16xf32> to vector<50x16xf32>
    %87 = arith.mulf %85, %86 : vector<50x16xf32>
    %88 = arith.addf %79, %87 : vector<50x16xf32>
    %89 = vector.extract_strided_slice %1 {offsets = [9, 0], sizes = [50, 1], strides = [1, 1]} : vector<64x1xf32> to vector<50x1xf32>
    %90 = vector.extract_strided_slice %4 {offsets = [9, 0, 0], sizes = [1, 1, 16], strides = [1, 1, 1]} : vector<15x1x16xbf16> to vector<1x1x16xbf16>
    %91 = vector.shape_cast %90 : vector<1x1x16xbf16> to vector<16xbf16>
    %92 = arith.extf %91 : vector<16xbf16> to vector<16xf32>
    %93 = vector.shape_cast %92 : vector<16xf32> to vector<1x16xf32>
    %94 = vector.broadcast %89 : vector<50x1xf32> to vector<50x16xf32>
    %95 = vector.broadcast %93 : vector<1x16xf32> to vector<50x16xf32>
    %96 = arith.mulf %94, %95 : vector<50x16xf32>
    %97 = arith.addf %88, %96 : vector<50x16xf32>
    %98 = vector.extract_strided_slice %1 {offsets = [10, 0], sizes = [50, 1], strides = [1, 1]} : vector<64x1xf32> to vector<50x1xf32>
    %99 = vector.extract_strided_slice %4 {offsets = [10, 0, 0], sizes = [1, 1, 16], strides = [1, 1, 1]} : vector<15x1x16xbf16> to vector<1x1x16xbf16>
    %100 = vector.shape_cast %99 : vector<1x1x16xbf16> to vector<16xbf16>
    %101 = arith.extf %100 : vector<16xbf16> to vector<16xf32>
    %102 = vector.shape_cast %101 : vector<16xf32> to vector<1x16xf32>
    %103 = vector.broadcast %98 : vector<50x1xf32> to vector<50x16xf32>
    %104 = vector.broadcast %102 : vector<1x16xf32> to vector<50x16xf32>
    %105 = arith.mulf %103, %104 : vector<50x16xf32>
    %106 = arith.addf %97, %105 : vector<50x16xf32>
    %107 = vector.extract_strided_slice %1 {offsets = [11, 0], sizes = [50, 1], strides = [1, 1]} : vector<64x1xf32> to vector<50x1xf32>
    %108 = vector.extract_strided_slice %4 {offsets = [11, 0, 0], sizes = [1, 1, 16], strides = [1, 1, 1]} : vector<15x1x16xbf16> to vector<1x1x16xbf16>
    %109 = vector.shape_cast %108 : vector<1x1x16xbf16> to vector<16xbf16>
    %110 = arith.extf %109 : vector<16xbf16> to vector<16xf32>
    %111 = vector.shape_cast %110 : vector<16xf32> to vector<1x16xf32>
    %112 = vector.broadcast %107 : vector<50x1xf32> to vector<50x16xf32>
    %113 = vector.broadcast %111 : vector<1x16xf32> to vector<50x16xf32>
    %114 = arith.mulf %112, %113 : vector<50x16xf32>
    %115 = arith.addf %106, %114 : vector<50x16xf32>
    %116 = vector.extract_strided_slice %1 {offsets = [12, 0], sizes = [50, 1], strides = [1, 1]} : vector<64x1xf32> to vector<50x1xf32>
    %117 = vector.extract_strided_slice %4 {offsets = [12, 0, 0], sizes = [1, 1, 16], strides = [1, 1, 1]} : vector<15x1x16xbf16> to vector<1x1x16xbf16>
    %118 = vector.shape_cast %117 : vector<1x1x16xbf16> to vector<16xbf16>
    %119 = arith.extf %118 : vector<16xbf16> to vector<16xf32>
    %120 = vector.shape_cast %119 : vector<16xf32> to vector<1x16xf32>
    %121 = vector.broadcast %116 : vector<50x1xf32> to vector<50x16xf32>
    %122 = vector.broadcast %120 : vector<1x16xf32> to vector<50x16xf32>
    %123 = arith.mulf %121, %122 : vector<50x16xf32>
    %124 = arith.addf %115, %123 : vector<50x16xf32>
    %125 = vector.extract_strided_slice %1 {offsets = [13, 0], sizes = [50, 1], strides = [1, 1]} : vector<64x1xf32> to vector<50x1xf32>
    %126 = vector.extract_strided_slice %4 {offsets = [13, 0, 0], sizes = [1, 1, 16], strides = [1, 1, 1]} : vector<15x1x16xbf16> to vector<1x1x16xbf16>
    %127 = vector.shape_cast %126 : vector<1x1x16xbf16> to vector<16xbf16>
    %128 = arith.extf %127 : vector<16xbf16> to vector<16xf32>
    %129 = vector.shape_cast %128 : vector<16xf32> to vector<1x16xf32>
    %130 = vector.broadcast %125 : vector<50x1xf32> to vector<50x16xf32>
    %131 = vector.broadcast %129 : vector<1x16xf32> to vector<50x16xf32>
    %132 = arith.mulf %130, %131 : vector<50x16xf32>
    %133 = arith.addf %124, %132 : vector<50x16xf32>
    %134 = vector.extract_strided_slice %1 {offsets = [14, 0], sizes = [50, 1], strides = [1, 1]} : vector<64x1xf32> to vector<50x1xf32>
    %135 = vector.extract_strided_slice %4 {offsets = [14, 0, 0], sizes = [1, 1, 16], strides = [1, 1, 1]} : vector<15x1x16xbf16> to vector<1x1x16xbf16>
    %136 = vector.shape_cast %135 : vector<1x1x16xbf16> to vector<16xbf16>
    %137 = arith.extf %136 : vector<16xbf16> to vector<16xf32>
    %138 = vector.shape_cast %137 : vector<16xf32> to vector<1x16xf32>
    %139 = vector.broadcast %134 : vector<50x1xf32> to vector<50x16xf32>
    %140 = vector.broadcast %138 : vector<1x16xf32> to vector<50x16xf32>
    %141 = arith.mulf %139, %140 : vector<50x16xf32>
    %142 = arith.addf %133, %141 : vector<50x16xf32>
    %cst_11 = arith.constant 0.000000e+00 : f32
    %143 = vector.broadcast %cst_11 : f32 to vector<50x16xf32>
    %144 = vector.extract_strided_slice %3 {offsets = [0, 0], sizes = [50, 1], strides = [1, 1]} : vector<64x1xf32> to vector<50x1xf32>
    %145 = vector.extract_strided_slice %4 {offsets = [0, 0, 0], sizes = [1, 1, 16], strides = [1, 1, 1]} : vector<15x1x16xbf16> to vector<1x1x16xbf16>
    %146 = vector.shape_cast %145 : vector<1x1x16xbf16> to vector<16xbf16>
    %147 = arith.extf %146 : vector<16xbf16> to vector<16xf32>
    %148 = vector.shape_cast %147 : vector<16xf32> to vector<1x16xf32>
    %149 = vector.broadcast %144 : vector<50x1xf32> to vector<50x16xf32>
    %150 = vector.broadcast %148 : vector<1x16xf32> to vector<50x16xf32>
    %151 = arith.mulf %149, %150 : vector<50x16xf32>
    %152 = arith.addf %143, %151 : vector<50x16xf32>
    %153 = vector.extract_strided_slice %3 {offsets = [1, 0], sizes = [50, 1], strides = [1, 1]} : vector<64x1xf32> to vector<50x1xf32>
    %154 = vector.extract_strided_slice %4 {offsets = [1, 0, 0], sizes = [1, 1, 16], strides = [1, 1, 1]} : vector<15x1x16xbf16> to vector<1x1x16xbf16>
    %155 = vector.shape_cast %154 : vector<1x1x16xbf16> to vector<16xbf16>
    %156 = arith.extf %155 : vector<16xbf16> to vector<16xf32>
    %157 = vector.shape_cast %156 : vector<16xf32> to vector<1x16xf32>
    %158 = vector.broadcast %153 : vector<50x1xf32> to vector<50x16xf32>
    %159 = vector.broadcast %157 : vector<1x16xf32> to vector<50x16xf32>
    %160 = arith.mulf %158, %159 : vector<50x16xf32>
    %161 = arith.addf %152, %160 : vector<50x16xf32>
    %162 = vector.extract_strided_slice %3 {offsets = [2, 0], sizes = [50, 1], strides = [1, 1]} : vector<64x1xf32> to vector<50x1xf32>
    %163 = vector.extract_strided_slice %4 {offsets = [2, 0, 0], sizes = [1, 1, 16], strides = [1, 1, 1]} : vector<15x1x16xbf16> to vector<1x1x16xbf16>
    %164 = vector.shape_cast %163 : vector<1x1x16xbf16> to vector<16xbf16>
    %165 = arith.extf %164 : vector<16xbf16> to vector<16xf32>
    %166 = vector.shape_cast %165 : vector<16xf32> to vector<1x16xf32>
    %167 = vector.broadcast %162 : vector<50x1xf32> to vector<50x16xf32>
    %168 = vector.broadcast %166 : vector<1x16xf32> to vector<50x16xf32>
    %169 = arith.mulf %167, %168 : vector<50x16xf32>
    %170 = arith.addf %161, %169 : vector<50x16xf32>
    %171 = vector.extract_strided_slice %3 {offsets = [3, 0], sizes = [50, 1], strides = [1, 1]} : vector<64x1xf32> to vector<50x1xf32>
    %172 = vector.extract_strided_slice %4 {offsets = [3, 0, 0], sizes = [1, 1, 16], strides = [1, 1, 1]} : vector<15x1x16xbf16> to vector<1x1x16xbf16>
    %173 = vector.shape_cast %172 : vector<1x1x16xbf16> to vector<16xbf16>
    %174 = arith.extf %173 : vector<16xbf16> to vector<16xf32>
    %175 = vector.shape_cast %174 : vector<16xf32> to vector<1x16xf32>
    %176 = vector.broadcast %171 : vector<50x1xf32> to vector<50x16xf32>
    %177 = vector.broadcast %175 : vector<1x16xf32> to vector<50x16xf32>
    %178 = arith.mulf %176, %177 : vector<50x16xf32>
    %179 = arith.addf %170, %178 : vector<50x16xf32>
    %180 = vector.extract_strided_slice %3 {offsets = [4, 0], sizes = [50, 1], strides = [1, 1]} : vector<64x1xf32> to vector<50x1xf32>
    %181 = vector.extract_strided_slice %4 {offsets = [4, 0, 0], sizes = [1, 1, 16], strides = [1, 1, 1]} : vector<15x1x16xbf16> to vector<1x1x16xbf16>
    %182 = vector.shape_cast %181 : vector<1x1x16xbf16> to vector<16xbf16>
    %183 = arith.extf %182 : vector<16xbf16> to vector<16xf32>
    %184 = vector.shape_cast %183 : vector<16xf32> to vector<1x16xf32>
    %185 = vector.broadcast %180 : vector<50x1xf32> to vector<50x16xf32>
    %186 = vector.broadcast %184 : vector<1x16xf32> to vector<50x16xf32>
    %187 = arith.mulf %185, %186 : vector<50x16xf32>
    %188 = arith.addf %179, %187 : vector<50x16xf32>
    %189 = vector.extract_strided_slice %3 {offsets = [5, 0], sizes = [50, 1], strides = [1, 1]} : vector<64x1xf32> to vector<50x1xf32>
    %190 = vector.extract_strided_slice %4 {offsets = [5, 0, 0], sizes = [1, 1, 16], strides = [1, 1, 1]} : vector<15x1x16xbf16> to vector<1x1x16xbf16>
    %191 = vector.shape_cast %190 : vector<1x1x16xbf16> to vector<16xbf16>
    %192 = arith.extf %191 : vector<16xbf16> to vector<16xf32>
    %193 = vector.shape_cast %192 : vector<16xf32> to vector<1x16xf32>
    %194 = vector.broadcast %189 : vector<50x1xf32> to vector<50x16xf32>
    %195 = vector.broadcast %193 : vector<1x16xf32> to vector<50x16xf32>
    %196 = arith.mulf %194, %195 : vector<50x16xf32>
    %197 = arith.addf %188, %196 : vector<50x16xf32>
    %198 = vector.extract_strided_slice %3 {offsets = [6, 0], sizes = [50, 1], strides = [1, 1]} : vector<64x1xf32> to vector<50x1xf32>
    %199 = vector.extract_strided_slice %4 {offsets = [6, 0, 0], sizes = [1, 1, 16], strides = [1, 1, 1]} : vector<15x1x16xbf16> to vector<1x1x16xbf16>
    %200 = vector.shape_cast %199 : vector<1x1x16xbf16> to vector<16xbf16>
    %201 = arith.extf %200 : vector<16xbf16> to vector<16xf32>
    %202 = vector.shape_cast %201 : vector<16xf32> to vector<1x16xf32>
    %203 = vector.broadcast %198 : vector<50x1xf32> to vector<50x16xf32>
    %204 = vector.broadcast %202 : vector<1x16xf32> to vector<50x16xf32>
    %205 = arith.mulf %203, %204 : vector<50x16xf32>
    %206 = arith.addf %197, %205 : vector<50x16xf32>
    %207 = vector.extract_strided_slice %3 {offsets = [7, 0], sizes = [50, 1], strides = [1, 1]} : vector<64x1xf32> to vector<50x1xf32>
    %208 = vector.extract_strided_slice %4 {offsets = [7, 0, 0], sizes = [1, 1, 16], strides = [1, 1, 1]} : vector<15x1x16xbf16> to vector<1x1x16xbf16>
    %209 = vector.shape_cast %208 : vector<1x1x16xbf16> to vector<16xbf16>
    %210 = arith.extf %209 : vector<16xbf16> to vector<16xf32>
    %211 = vector.shape_cast %210 : vector<16xf32> to vector<1x16xf32>
    %212 = vector.broadcast %207 : vector<50x1xf32> to vector<50x16xf32>
    %213 = vector.broadcast %211 : vector<1x16xf32> to vector<50x16xf32>
    %214 = arith.mulf %212, %213 : vector<50x16xf32>
    %215 = arith.addf %206, %214 : vector<50x16xf32>
    %216 = vector.extract_strided_slice %3 {offsets = [8, 0], sizes = [50, 1], strides = [1, 1]} : vector<64x1xf32> to vector<50x1xf32>
    %217 = vector.extract_strided_slice %4 {offsets = [8, 0, 0], sizes = [1, 1, 16], strides = [1, 1, 1]} : vector<15x1x16xbf16> to vector<1x1x16xbf16>
    %218 = vector.shape_cast %217 : vector<1x1x16xbf16> to vector<16xbf16>
    %219 = arith.extf %218 : vector<16xbf16> to vector<16xf32>
    %220 = vector.shape_cast %219 : vector<16xf32> to vector<1x16xf32>
    %221 = vector.broadcast %216 : vector<50x1xf32> to vector<50x16xf32>
    %222 = vector.broadcast %220 : vector<1x16xf32> to vector<50x16xf32>
    %223 = arith.mulf %221, %222 : vector<50x16xf32>
    %224 = arith.addf %215, %223 : vector<50x16xf32>
    %225 = vector.extract_strided_slice %3 {offsets = [9, 0], sizes = [50, 1], strides = [1, 1]} : vector<64x1xf32> to vector<50x1xf32>
    %226 = vector.extract_strided_slice %4 {offsets = [9, 0, 0], sizes = [1, 1, 16], strides = [1, 1, 1]} : vector<15x1x16xbf16> to vector<1x1x16xbf16>
    %227 = vector.shape_cast %226 : vector<1x1x16xbf16> to vector<16xbf16>
    %228 = arith.extf %227 : vector<16xbf16> to vector<16xf32>
    %229 = vector.shape_cast %228 : vector<16xf32> to vector<1x16xf32>
    %230 = vector.broadcast %225 : vector<50x1xf32> to vector<50x16xf32>
    %231 = vector.broadcast %229 : vector<1x16xf32> to vector<50x16xf32>
    %232 = arith.mulf %230, %231 : vector<50x16xf32>
    %233 = arith.addf %224, %232 : vector<50x16xf32>
    %234 = vector.extract_strided_slice %3 {offsets = [10, 0], sizes = [50, 1], strides = [1, 1]} : vector<64x1xf32> to vector<50x1xf32>
    %235 = vector.extract_strided_slice %4 {offsets = [10, 0, 0], sizes = [1, 1, 16], strides = [1, 1, 1]} : vector<15x1x16xbf16> to vector<1x1x16xbf16>
    %236 = vector.shape_cast %235 : vector<1x1x16xbf16> to vector<16xbf16>
    %237 = arith.extf %236 : vector<16xbf16> to vector<16xf32>
    %238 = vector.shape_cast %237 : vector<16xf32> to vector<1x16xf32>
    %239 = vector.broadcast %234 : vector<50x1xf32> to vector<50x16xf32>
    %240 = vector.broadcast %238 : vector<1x16xf32> to vector<50x16xf32>
    %241 = arith.mulf %239, %240 : vector<50x16xf32>
    %242 = arith.addf %233, %241 : vector<50x16xf32>
    %243 = vector.extract_strided_slice %3 {offsets = [11, 0], sizes = [50, 1], strides = [1, 1]} : vector<64x1xf32> to vector<50x1xf32>
    %244 = vector.extract_strided_slice %4 {offsets = [11, 0, 0], sizes = [1, 1, 16], strides = [1, 1, 1]} : vector<15x1x16xbf16> to vector<1x1x16xbf16>
    %245 = vector.shape_cast %244 : vector<1x1x16xbf16> to vector<16xbf16>
    %246 = arith.extf %245 : vector<16xbf16> to vector<16xf32>
    %247 = vector.shape_cast %246 : vector<16xf32> to vector<1x16xf32>
    %248 = vector.broadcast %243 : vector<50x1xf32> to vector<50x16xf32>
    %249 = vector.broadcast %247 : vector<1x16xf32> to vector<50x16xf32>
    %250 = arith.mulf %248, %249 : vector<50x16xf32>
    %251 = arith.addf %242, %250 : vector<50x16xf32>
    %252 = vector.extract_strided_slice %3 {offsets = [12, 0], sizes = [50, 1], strides = [1, 1]} : vector<64x1xf32> to vector<50x1xf32>
    %253 = vector.extract_strided_slice %4 {offsets = [12, 0, 0], sizes = [1, 1, 16], strides = [1, 1, 1]} : vector<15x1x16xbf16> to vector<1x1x16xbf16>
    %254 = vector.shape_cast %253 : vector<1x1x16xbf16> to vector<16xbf16>
    %255 = arith.extf %254 : vector<16xbf16> to vector<16xf32>
    %256 = vector.shape_cast %255 : vector<16xf32> to vector<1x16xf32>
    %257 = vector.broadcast %252 : vector<50x1xf32> to vector<50x16xf32>
    %258 = vector.broadcast %256 : vector<1x16xf32> to vector<50x16xf32>
    %259 = arith.mulf %257, %258 : vector<50x16xf32>
    %260 = arith.addf %251, %259 : vector<50x16xf32>
    %261 = vector.extract_strided_slice %3 {offsets = [13, 0], sizes = [50, 1], strides = [1, 1]} : vector<64x1xf32> to vector<50x1xf32>
    %262 = vector.extract_strided_slice %4 {offsets = [13, 0, 0], sizes = [1, 1, 16], strides = [1, 1, 1]} : vector<15x1x16xbf16> to vector<1x1x16xbf16>
    %263 = vector.shape_cast %262 : vector<1x1x16xbf16> to vector<16xbf16>
    %264 = arith.extf %263 : vector<16xbf16> to vector<16xf32>
    %265 = vector.shape_cast %264 : vector<16xf32> to vector<1x16xf32>
    %266 = vector.broadcast %261 : vector<50x1xf32> to vector<50x16xf32>
    %267 = vector.broadcast %265 : vector<1x16xf32> to vector<50x16xf32>
    %268 = arith.mulf %266, %267 : vector<50x16xf32>
    %269 = arith.addf %260, %268 : vector<50x16xf32>
    %270 = vector.extract_strided_slice %3 {offsets = [14, 0], sizes = [50, 1], strides = [1, 1]} : vector<64x1xf32> to vector<50x1xf32>
    %271 = vector.extract_strided_slice %4 {offsets = [14, 0, 0], sizes = [1, 1, 16], strides = [1, 1, 1]} : vector<15x1x16xbf16> to vector<1x1x16xbf16>
    %272 = vector.shape_cast %271 : vector<1x1x16xbf16> to vector<16xbf16>
    %273 = arith.extf %272 : vector<16xbf16> to vector<16xf32>
    %274 = vector.shape_cast %273 : vector<16xf32> to vector<1x16xf32>
    %275 = vector.broadcast %270 : vector<50x1xf32> to vector<50x16xf32>
    %276 = vector.broadcast %274 : vector<1x16xf32> to vector<50x16xf32>
    %277 = arith.mulf %275, %276 : vector<50x16xf32>
    %278 = arith.addf %269, %277 : vector<50x16xf32>
    %cst_12 = arith.constant dense<0.000000e+00> : vector<16xf32>
    %279 = vector.multi_reduction <add>, %142, %cst_12 [0] : vector<50x16xf32> to vector<16xf32>
    %280 = vector.shape_cast %279 : vector<16xf32> to vector<1x16xf32>
    %cst_13 = arith.constant 0.000000e+00 : f32
    %281 = vector.broadcast %cst_13 : f32 to vector<1x16xf32>
    %282 = arith.addf %281, %280 : vector<1x16xf32>
    %cst_14 = arith.constant dense<0.000000e+00> : vector<16xf32>
    %283 = vector.multi_reduction <add>, %278, %cst_14 [0] : vector<50x16xf32> to vector<16xf32>
    %284 = vector.shape_cast %283 : vector<16xf32> to vector<1x16xf32>
    %285 = arith.addf %282, %284 : vector<1x16xf32>
    %286 = arith.mulf %142, %142 : vector<50x16xf32>
    %cst_15 = arith.constant dense<0.000000e+00> : vector<16xf32>
    %287 = vector.multi_reduction <add>, %286, %cst_15 [0] : vector<50x16xf32> to vector<16xf32>
    %288 = vector.shape_cast %287 : vector<16xf32> to vector<1x16xf32>
    %cst_16 = arith.constant 0.000000e+00 : f32
    %289 = vector.broadcast %cst_16 : f32 to vector<1x16xf32>
    %290 = arith.addf %289, %288 : vector<1x16xf32>
    %291 = arith.mulf %278, %278 : vector<50x16xf32>
    %cst_17 = arith.constant dense<0.000000e+00> : vector<16xf32>
    %292 = vector.multi_reduction <add>, %291, %cst_17 [0] : vector<50x16xf32> to vector<16xf32>
    %293 = vector.shape_cast %292 : vector<16xf32> to vector<1x16xf32>
    %294 = arith.addf %290, %293 : vector<1x16xf32>
    %cst_18 = arith.constant 0.00999999977 : f32
    %295 = vector.broadcast %cst_18 : f32 to vector<1x16xf32>
    %296 = arith.mulf %285, %295 : vector<1x16xf32>
    %cst_19 = arith.constant 0.00999999977 : f32
    %297 = vector.broadcast %cst_19 : f32 to vector<1x16xf32>
    %298 = arith.mulf %294, %297 : vector<1x16xf32>
    %299 = arith.mulf %296, %296 : vector<1x16xf32>
    %300 = arith.subf %298, %299 : vector<1x16xf32>
    %cst_20 = arith.constant 0.000000e+00 : f32
    %301 = vector.broadcast %cst_20 : f32 to vector<1x16xf32>
    %302 = arith.maximumf %300, %301 : vector<1x16xf32>
    %cst_21 = arith.constant 9.99999974E-6 : f32
    %303 = vector.broadcast %cst_21 : f32 to vector<1x16xf32>
    %304 = arith.addf %302, %303 : vector<1x16xf32>
    %305 = math.rsqrt %304 : vector<1x16xf32>
    %306 = arith.mulf %5, %305 : vector<1x16xf32>
    %307 = arith.mulf %296, %306 : vector<1x16xf32>
    %308 = arith.subf %6, %307 : vector<1x16xf32>
    %309 = vector.broadcast %306 : vector<1x16xf32> to vector<50x16xf32>
    %310 = arith.mulf %142, %309 : vector<50x16xf32>
    %311 = vector.broadcast %308 : vector<1x16xf32> to vector<50x16xf32>
    %312 = arith.addf %310, %311 : vector<50x16xf32>
    %cst_22 = arith.constant 0.000000e+00 : f32
    %313 = vector.broadcast %cst_22 : f32 to vector<50x16xf32>
    %314 = arith.maximumf %312, %313 : vector<50x16xf32>
    %315 = vector.broadcast %306 : vector<1x16xf32> to vector<50x16xf32>
    %316 = arith.mulf %278, %315 : vector<50x16xf32>
    %317 = vector.broadcast %308 : vector<1x16xf32> to vector<50x16xf32>
    %318 = arith.addf %316, %317 : vector<50x16xf32>
    %cst_23 = arith.constant 0.000000e+00 : f32
    %319 = vector.broadcast %cst_23 : f32 to vector<50x16xf32>
    %320 = arith.maximumf %318, %319 : vector<50x16xf32>
    %c0_24 = arith.constant 0 : index
    %c0_25 = arith.constant 0 : index
    %c0_26 = arith.constant 0 : index
    %321 = vector.load %arg4[%c0_24, %c0_25, %c0_26] : memref<3x16x32xbf16, #tpu.memory_space<vmem>>, vector<3x16x32xbf16>
    %c0_27 = arith.constant 0 : index
    %c0_28 = arith.constant 0 : index
    %322 = vector.load %arg5[%c0_27, %c0_28] : memref<1x32xf32, #tpu.memory_space<vmem>>, vector<1x32xf32>
    %c0_29 = arith.constant 0 : index
    %c0_30 = arith.constant 0 : index
    %323 = vector.load %arg6[%c0_29, %c0_30] : memref<1x32xf32, #tpu.memory_space<vmem>>, vector<1x32xf32>
    %cst_31 = arith.constant 0.000000e+00 : f32
    %324 = vector.broadcast %cst_31 : f32 to vector<48x32xf32>
    %325 = vector.extract_strided_slice %314 {offsets = [0, 0], sizes = [48, 16], strides = [1, 1]} : vector<50x16xf32> to vector<48x16xf32>
    %326 = arith.truncf %325 : vector<48x16xf32> to vector<48x16xbf16>
    %327 = vector.extract_strided_slice %321 {offsets = [0, 0, 0], sizes = [1, 16, 32], strides = [1, 1, 1]} : vector<3x16x32xbf16> to vector<1x16x32xbf16>
    %328 = vector.shape_cast %327 : vector<1x16x32xbf16> to vector<16x32xbf16>
    %cst_32 = arith.constant dense<0.000000e+00> : vector<48x32xf32>
    %329 = tpu.matmul %326, %328, %cst_32 {dimension_numbers = #tpu.dot_dimension_numbers<[1], [0], [0], [1], [0, 0, 1, 1], [], []>} : vector<48x16xbf16>, vector<16x32xbf16>, vector<48x32xf32> -> vector<48x32xf32>
    %330 = arith.addf %324, %329 : vector<48x32xf32>
    %331 = vector.extract_strided_slice %314 {offsets = [1, 0], sizes = [48, 16], strides = [1, 1]} : vector<50x16xf32> to vector<48x16xf32>
    %332 = arith.truncf %331 : vector<48x16xf32> to vector<48x16xbf16>
    %333 = vector.extract_strided_slice %321 {offsets = [1, 0, 0], sizes = [1, 16, 32], strides = [1, 1, 1]} : vector<3x16x32xbf16> to vector<1x16x32xbf16>
    %334 = vector.shape_cast %333 : vector<1x16x32xbf16> to vector<16x32xbf16>
    %cst_33 = arith.constant dense<0.000000e+00> : vector<48x32xf32>
    %335 = tpu.matmul %332, %334, %cst_33 {dimension_numbers = #tpu.dot_dimension_numbers<[1], [0], [0], [1], [0, 0, 1, 1], [], []>} : vector<48x16xbf16>, vector<16x32xbf16>, vector<48x32xf32> -> vector<48x32xf32>
    %336 = arith.addf %330, %335 : vector<48x32xf32>
    %337 = vector.extract_strided_slice %314 {offsets = [2, 0], sizes = [48, 16], strides = [1, 1]} : vector<50x16xf32> to vector<48x16xf32>
    %338 = arith.truncf %337 : vector<48x16xf32> to vector<48x16xbf16>
    %339 = vector.extract_strided_slice %321 {offsets = [2, 0, 0], sizes = [1, 16, 32], strides = [1, 1, 1]} : vector<3x16x32xbf16> to vector<1x16x32xbf16>
    %340 = vector.shape_cast %339 : vector<1x16x32xbf16> to vector<16x32xbf16>
    %cst_34 = arith.constant dense<0.000000e+00> : vector<48x32xf32>
    %341 = tpu.matmul %338, %340, %cst_34 {dimension_numbers = #tpu.dot_dimension_numbers<[1], [0], [0], [1], [0, 0, 1, 1], [], []>} : vector<48x16xbf16>, vector<16x32xbf16>, vector<48x32xf32> -> vector<48x32xf32>
    %342 = arith.addf %336, %341 : vector<48x32xf32>
    %cst_35 = arith.constant 0.000000e+00 : f32
    %343 = vector.broadcast %cst_35 : f32 to vector<48x32xf32>
    %344 = vector.extract_strided_slice %320 {offsets = [0, 0], sizes = [48, 16], strides = [1, 1]} : vector<50x16xf32> to vector<48x16xf32>
    %345 = arith.truncf %344 : vector<48x16xf32> to vector<48x16xbf16>
    %346 = vector.extract_strided_slice %321 {offsets = [0, 0, 0], sizes = [1, 16, 32], strides = [1, 1, 1]} : vector<3x16x32xbf16> to vector<1x16x32xbf16>
    %347 = vector.shape_cast %346 : vector<1x16x32xbf16> to vector<16x32xbf16>
    %cst_36 = arith.constant dense<0.000000e+00> : vector<48x32xf32>
    %348 = tpu.matmul %345, %347, %cst_36 {dimension_numbers = #tpu.dot_dimension_numbers<[1], [0], [0], [1], [0, 0, 1, 1], [], []>} : vector<48x16xbf16>, vector<16x32xbf16>, vector<48x32xf32> -> vector<48x32xf32>
    %349 = arith.addf %343, %348 : vector<48x32xf32>
    %350 = vector.extract_strided_slice %320 {offsets = [1, 0], sizes = [48, 16], strides = [1, 1]} : vector<50x16xf32> to vector<48x16xf32>
    %351 = arith.truncf %350 : vector<48x16xf32> to vector<48x16xbf16>
    %352 = vector.extract_strided_slice %321 {offsets = [1, 0, 0], sizes = [1, 16, 32], strides = [1, 1, 1]} : vector<3x16x32xbf16> to vector<1x16x32xbf16>
    %353 = vector.shape_cast %352 : vector<1x16x32xbf16> to vector<16x32xbf16>
    %cst_37 = arith.constant dense<0.000000e+00> : vector<48x32xf32>
    %354 = tpu.matmul %351, %353, %cst_37 {dimension_numbers = #tpu.dot_dimension_numbers<[1], [0], [0], [1], [0, 0, 1, 1], [], []>} : vector<48x16xbf16>, vector<16x32xbf16>, vector<48x32xf32> -> vector<48x32xf32>
    %355 = arith.addf %349, %354 : vector<48x32xf32>
    %356 = vector.extract_strided_slice %320 {offsets = [2, 0], sizes = [48, 16], strides = [1, 1]} : vector<50x16xf32> to vector<48x16xf32>
    %357 = arith.truncf %356 : vector<48x16xf32> to vector<48x16xbf16>
    %358 = vector.extract_strided_slice %321 {offsets = [2, 0, 0], sizes = [1, 16, 32], strides = [1, 1, 1]} : vector<3x16x32xbf16> to vector<1x16x32xbf16>
    %359 = vector.shape_cast %358 : vector<1x16x32xbf16> to vector<16x32xbf16>
    %cst_38 = arith.constant dense<0.000000e+00> : vector<48x32xf32>
    %360 = tpu.matmul %357, %359, %cst_38 {dimension_numbers = #tpu.dot_dimension_numbers<[1], [0], [0], [1], [0, 0, 1, 1], [], []>} : vector<48x16xbf16>, vector<16x32xbf16>, vector<48x32xf32> -> vector<48x32xf32>
    %361 = arith.addf %355, %360 : vector<48x32xf32>
    %cst_39 = arith.constant dense<0.000000e+00> : vector<32xf32>
    %362 = vector.multi_reduction <add>, %342, %cst_39 [0] : vector<48x32xf32> to vector<32xf32>
    %363 = vector.shape_cast %362 : vector<32xf32> to vector<1x32xf32>
    %cst_40 = arith.constant 0.000000e+00 : f32
    %364 = vector.broadcast %cst_40 : f32 to vector<1x32xf32>
    %365 = arith.addf %364, %363 : vector<1x32xf32>
    %cst_41 = arith.constant dense<0.000000e+00> : vector<32xf32>
    %366 = vector.multi_reduction <add>, %361, %cst_41 [0] : vector<48x32xf32> to vector<32xf32>
    %367 = vector.shape_cast %366 : vector<32xf32> to vector<1x32xf32>
    %368 = arith.addf %365, %367 : vector<1x32xf32>
    %369 = arith.mulf %342, %342 : vector<48x32xf32>
    %cst_42 = arith.constant dense<0.000000e+00> : vector<32xf32>
    %370 = vector.multi_reduction <add>, %369, %cst_42 [0] : vector<48x32xf32> to vector<32xf32>
    %371 = vector.shape_cast %370 : vector<32xf32> to vector<1x32xf32>
    %cst_43 = arith.constant 0.000000e+00 : f32
    %372 = vector.broadcast %cst_43 : f32 to vector<1x32xf32>
    %373 = arith.addf %372, %371 : vector<1x32xf32>
    %374 = arith.mulf %361, %361 : vector<48x32xf32>
    %cst_44 = arith.constant dense<0.000000e+00> : vector<32xf32>
    %375 = vector.multi_reduction <add>, %374, %cst_44 [0] : vector<48x32xf32> to vector<32xf32>
    %376 = vector.shape_cast %375 : vector<32xf32> to vector<1x32xf32>
    %377 = arith.addf %373, %376 : vector<1x32xf32>
    %cst_45 = arith.constant 0.010416667 : f32
    %378 = vector.broadcast %cst_45 : f32 to vector<1x32xf32>
    %379 = arith.mulf %368, %378 : vector<1x32xf32>
    %cst_46 = arith.constant 0.010416667 : f32
    %380 = vector.broadcast %cst_46 : f32 to vector<1x32xf32>
    %381 = arith.mulf %377, %380 : vector<1x32xf32>
    %382 = arith.mulf %379, %379 : vector<1x32xf32>
    %383 = arith.subf %381, %382 : vector<1x32xf32>
    %cst_47 = arith.constant 0.000000e+00 : f32
    %384 = vector.broadcast %cst_47 : f32 to vector<1x32xf32>
    %385 = arith.maximumf %383, %384 : vector<1x32xf32>
    %cst_48 = arith.constant 9.99999974E-6 : f32
    %386 = vector.broadcast %cst_48 : f32 to vector<1x32xf32>
    %387 = arith.addf %385, %386 : vector<1x32xf32>
    %388 = math.rsqrt %387 : vector<1x32xf32>
    %389 = arith.mulf %322, %388 : vector<1x32xf32>
    %390 = arith.mulf %379, %389 : vector<1x32xf32>
    %391 = arith.subf %323, %390 : vector<1x32xf32>
    %392 = vector.broadcast %389 : vector<1x32xf32> to vector<48x32xf32>
    %393 = arith.mulf %342, %392 : vector<48x32xf32>
    %394 = vector.broadcast %391 : vector<1x32xf32> to vector<48x32xf32>
    %395 = arith.addf %393, %394 : vector<48x32xf32>
    %cst_49 = arith.constant 0.000000e+00 : f32
    %396 = vector.broadcast %cst_49 : f32 to vector<48x32xf32>
    %397 = arith.maximumf %395, %396 : vector<48x32xf32>
    %398 = vector.broadcast %389 : vector<1x32xf32> to vector<48x32xf32>
    %399 = arith.mulf %361, %398 : vector<48x32xf32>
    %400 = vector.broadcast %391 : vector<1x32xf32> to vector<48x32xf32>
    %401 = arith.addf %399, %400 : vector<48x32xf32>
    %cst_50 = arith.constant 0.000000e+00 : f32
    %402 = vector.broadcast %cst_50 : f32 to vector<48x32xf32>
    %403 = arith.maximumf %401, %402 : vector<48x32xf32>
    %c0_51 = arith.constant 0 : index
    %c0_52 = arith.constant 0 : index
    %c0_53 = arith.constant 0 : index
    %404 = vector.load %arg7[%c0_51, %c0_52, %c0_53] : memref<2x48x32xf32, #tpu.memory_space<vmem>>, vector<1x48x32xf32>
    %405 = vector.shape_cast %404 : vector<1x48x32xf32> to vector<48x32xf32>
    %406 = vector.shape_cast %397 : vector<48x32xf32> to vector<1x48x32xf32>
    tpu.vector_store %arg7[%c0_51, %c0_52, %c0_53], %406 {strides = array<i32>} : memref<2x48x32xf32, #tpu.memory_space<vmem>>, vector<1x48x32xf32>,
    %c1_54 = arith.constant 1 : index
    %c0_55 = arith.constant 0 : index
    %c0_56 = arith.constant 0 : index
    %407 = vector.load %arg7[%c1_54, %c0_55, %c0_56] : memref<2x48x32xf32, #tpu.memory_space<vmem>>, vector<1x48x32xf32>
    %408 = vector.shape_cast %407 : vector<1x48x32xf32> to vector<48x32xf32>
    %409 = vector.shape_cast %403 : vector<48x32xf32> to vector<1x48x32xf32>
    tpu.vector_store %arg7[%c1_54, %c0_55, %c0_56], %409 {strides = array<i32>} : memref<2x48x32xf32, #tpu.memory_space<vmem>>, vector<1x48x32xf32>,
    return
  }
}

module attributes {stable_mosaic.version = 11 : i64} {
  func.func @_block_b_kernel(%arg0: memref<2x24x32xf32, #tpu.memory_space<vmem>>, %arg1: memref<3x32x64xbf16, #tpu.memory_space<vmem>>, %arg2: memref<1x64xf32, #tpu.memory_space<vmem>>, %arg3: memref<1x64xf32, #tpu.memory_space<vmem>>, %arg4: memref<3x64x128xbf16, #tpu.memory_space<vmem>>, %arg5: memref<1x128xf32, #tpu.memory_space<vmem>>, %arg6: memref<1x128xf32, #tpu.memory_space<vmem>>, %arg7: memref<4x128x128xbf16, #tpu.memory_space<vmem>>, %arg8: memref<1x128xf32, #tpu.memory_space<vmem>>, %arg9: memref<2x128xf32, #tpu.memory_space<vmem>>) attributes {dimension_semantics = [], scalar_prefetch = 0 : i64, scratch_operands = 0 : i64, tpu.core_type = #tpu.core_type<tc>} {
    %c0 = arith.constant 0 : index
    %c0_0 = arith.constant 0 : index
    %c0_1 = arith.constant 0 : index
    %0 = vector.load %arg0[%c0, %c0_0, %c0_1] : memref<2x24x32xf32, #tpu.memory_space<vmem>>, vector<1x24x32xf32>
    %1 = vector.shape_cast %0 : vector<1x24x32xf32> to vector<24x32xf32>
    %c1 = arith.constant 1 : index
    %c0_2 = arith.constant 0 : index
    %c0_3 = arith.constant 0 : index
    %2 = vector.load %arg0[%c1, %c0_2, %c0_3] : memref<2x24x32xf32, #tpu.memory_space<vmem>>, vector<1x24x32xf32>
    %3 = vector.shape_cast %2 : vector<1x24x32xf32> to vector<24x32xf32>
    %c0_4 = arith.constant 0 : index
    %c0_5 = arith.constant 0 : index
    %c0_6 = arith.constant 0 : index
    %4 = vector.load %arg1[%c0_4, %c0_5, %c0_6] : memref<3x32x64xbf16, #tpu.memory_space<vmem>>, vector<3x32x64xbf16>
    %c0_7 = arith.constant 0 : index
    %c0_8 = arith.constant 0 : index
    %5 = vector.load %arg2[%c0_7, %c0_8] : memref<1x64xf32, #tpu.memory_space<vmem>>, vector<1x64xf32>
    %c0_9 = arith.constant 0 : index
    %c0_10 = arith.constant 0 : index
    %6 = vector.load %arg3[%c0_9, %c0_10] : memref<1x64xf32, #tpu.memory_space<vmem>>, vector<1x64xf32>
    %cst = arith.constant 0.000000e+00 : f32
    %7 = vector.broadcast %cst : f32 to vector<22x64xf32>
    %8 = vector.extract_strided_slice %1 {offsets = [0, 0], sizes = [22, 32], strides = [1, 1]} : vector<24x32xf32> to vector<22x32xf32>
    %9 = arith.truncf %8 : vector<22x32xf32> to vector<22x32xbf16>
    %10 = vector.extract_strided_slice %4 {offsets = [0, 0, 0], sizes = [1, 32, 64], strides = [1, 1, 1]} : vector<3x32x64xbf16> to vector<1x32x64xbf16>
    %11 = vector.shape_cast %10 : vector<1x32x64xbf16> to vector<32x64xbf16>
    %cst_11 = arith.constant dense<0.000000e+00> : vector<22x64xf32>
    %12 = tpu.matmul %9, %11, %cst_11 {dimension_numbers = #tpu.dot_dimension_numbers<[1], [0], [0], [1], [0, 0, 1, 1], [], []>} : vector<22x32xbf16>, vector<32x64xbf16>, vector<22x64xf32> -> vector<22x64xf32>
    %13 = arith.addf %7, %12 : vector<22x64xf32>
    %14 = vector.extract_strided_slice %1 {offsets = [1, 0], sizes = [22, 32], strides = [1, 1]} : vector<24x32xf32> to vector<22x32xf32>
    %15 = arith.truncf %14 : vector<22x32xf32> to vector<22x32xbf16>
    %16 = vector.extract_strided_slice %4 {offsets = [1, 0, 0], sizes = [1, 32, 64], strides = [1, 1, 1]} : vector<3x32x64xbf16> to vector<1x32x64xbf16>
    %17 = vector.shape_cast %16 : vector<1x32x64xbf16> to vector<32x64xbf16>
    %cst_12 = arith.constant dense<0.000000e+00> : vector<22x64xf32>
    %18 = tpu.matmul %15, %17, %cst_12 {dimension_numbers = #tpu.dot_dimension_numbers<[1], [0], [0], [1], [0, 0, 1, 1], [], []>} : vector<22x32xbf16>, vector<32x64xbf16>, vector<22x64xf32> -> vector<22x64xf32>
    %19 = arith.addf %13, %18 : vector<22x64xf32>
    %20 = vector.extract_strided_slice %1 {offsets = [2, 0], sizes = [22, 32], strides = [1, 1]} : vector<24x32xf32> to vector<22x32xf32>
    %21 = arith.truncf %20 : vector<22x32xf32> to vector<22x32xbf16>
    %22 = vector.extract_strided_slice %4 {offsets = [2, 0, 0], sizes = [1, 32, 64], strides = [1, 1, 1]} : vector<3x32x64xbf16> to vector<1x32x64xbf16>
    %23 = vector.shape_cast %22 : vector<1x32x64xbf16> to vector<32x64xbf16>
    %cst_13 = arith.constant dense<0.000000e+00> : vector<22x64xf32>
    %24 = tpu.matmul %21, %23, %cst_13 {dimension_numbers = #tpu.dot_dimension_numbers<[1], [0], [0], [1], [0, 0, 1, 1], [], []>} : vector<22x32xbf16>, vector<32x64xbf16>, vector<22x64xf32> -> vector<22x64xf32>
    %25 = arith.addf %19, %24 : vector<22x64xf32>
    %cst_14 = arith.constant 0.000000e+00 : f32
    %26 = vector.broadcast %cst_14 : f32 to vector<22x64xf32>
    %27 = vector.extract_strided_slice %3 {offsets = [0, 0], sizes = [22, 32], strides = [1, 1]} : vector<24x32xf32> to vector<22x32xf32>
    %28 = arith.truncf %27 : vector<22x32xf32> to vector<22x32xbf16>
    %29 = vector.extract_strided_slice %4 {offsets = [0, 0, 0], sizes = [1, 32, 64], strides = [1, 1, 1]} : vector<3x32x64xbf16> to vector<1x32x64xbf16>
    %30 = vector.shape_cast %29 : vector<1x32x64xbf16> to vector<32x64xbf16>
    %cst_15 = arith.constant dense<0.000000e+00> : vector<22x64xf32>
    %31 = tpu.matmul %28, %30, %cst_15 {dimension_numbers = #tpu.dot_dimension_numbers<[1], [0], [0], [1], [0, 0, 1, 1], [], []>} : vector<22x32xbf16>, vector<32x64xbf16>, vector<22x64xf32> -> vector<22x64xf32>
    %32 = arith.addf %26, %31 : vector<22x64xf32>
    %33 = vector.extract_strided_slice %3 {offsets = [1, 0], sizes = [22, 32], strides = [1, 1]} : vector<24x32xf32> to vector<22x32xf32>
    %34 = arith.truncf %33 : vector<22x32xf32> to vector<22x32xbf16>
    %35 = vector.extract_strided_slice %4 {offsets = [1, 0, 0], sizes = [1, 32, 64], strides = [1, 1, 1]} : vector<3x32x64xbf16> to vector<1x32x64xbf16>
    %36 = vector.shape_cast %35 : vector<1x32x64xbf16> to vector<32x64xbf16>
    %cst_16 = arith.constant dense<0.000000e+00> : vector<22x64xf32>
    %37 = tpu.matmul %34, %36, %cst_16 {dimension_numbers = #tpu.dot_dimension_numbers<[1], [0], [0], [1], [0, 0, 1, 1], [], []>} : vector<22x32xbf16>, vector<32x64xbf16>, vector<22x64xf32> -> vector<22x64xf32>
    %38 = arith.addf %32, %37 : vector<22x64xf32>
    %39 = vector.extract_strided_slice %3 {offsets = [2, 0], sizes = [22, 32], strides = [1, 1]} : vector<24x32xf32> to vector<22x32xf32>
    %40 = arith.truncf %39 : vector<22x32xf32> to vector<22x32xbf16>
    %41 = vector.extract_strided_slice %4 {offsets = [2, 0, 0], sizes = [1, 32, 64], strides = [1, 1, 1]} : vector<3x32x64xbf16> to vector<1x32x64xbf16>
    %42 = vector.shape_cast %41 : vector<1x32x64xbf16> to vector<32x64xbf16>
    %cst_17 = arith.constant dense<0.000000e+00> : vector<22x64xf32>
    %43 = tpu.matmul %40, %42, %cst_17 {dimension_numbers = #tpu.dot_dimension_numbers<[1], [0], [0], [1], [0, 0, 1, 1], [], []>} : vector<22x32xbf16>, vector<32x64xbf16>, vector<22x64xf32> -> vector<22x64xf32>
    %44 = arith.addf %38, %43 : vector<22x64xf32>
    %cst_18 = arith.constant dense<0.000000e+00> : vector<64xf32>
    %45 = vector.multi_reduction <add>, %25, %cst_18 [0] : vector<22x64xf32> to vector<64xf32>
    %46 = vector.shape_cast %45 : vector<64xf32> to vector<1x64xf32>
    %cst_19 = arith.constant 0.000000e+00 : f32
    %47 = vector.broadcast %cst_19 : f32 to vector<1x64xf32>
    %48 = arith.addf %47, %46 : vector<1x64xf32>
    %cst_20 = arith.constant dense<0.000000e+00> : vector<64xf32>
    %49 = vector.multi_reduction <add>, %44, %cst_20 [0] : vector<22x64xf32> to vector<64xf32>
    %50 = vector.shape_cast %49 : vector<64xf32> to vector<1x64xf32>
    %51 = arith.addf %48, %50 : vector<1x64xf32>
    %52 = arith.mulf %25, %25 : vector<22x64xf32>
    %cst_21 = arith.constant dense<0.000000e+00> : vector<64xf32>
    %53 = vector.multi_reduction <add>, %52, %cst_21 [0] : vector<22x64xf32> to vector<64xf32>
    %54 = vector.shape_cast %53 : vector<64xf32> to vector<1x64xf32>
    %cst_22 = arith.constant 0.000000e+00 : f32
    %55 = vector.broadcast %cst_22 : f32 to vector<1x64xf32>
    %56 = arith.addf %55, %54 : vector<1x64xf32>
    %57 = arith.mulf %44, %44 : vector<22x64xf32>
    %cst_23 = arith.constant dense<0.000000e+00> : vector<64xf32>
    %58 = vector.multi_reduction <add>, %57, %cst_23 [0] : vector<22x64xf32> to vector<64xf32>
    %59 = vector.shape_cast %58 : vector<64xf32> to vector<1x64xf32>
    %60 = arith.addf %56, %59 : vector<1x64xf32>
    %cst_24 = arith.constant 0.0227272734 : f32
    %61 = vector.broadcast %cst_24 : f32 to vector<1x64xf32>
    %62 = arith.mulf %51, %61 : vector<1x64xf32>
    %cst_25 = arith.constant 0.0227272734 : f32
    %63 = vector.broadcast %cst_25 : f32 to vector<1x64xf32>
    %64 = arith.mulf %60, %63 : vector<1x64xf32>
    %65 = arith.mulf %62, %62 : vector<1x64xf32>
    %66 = arith.subf %64, %65 : vector<1x64xf32>
    %cst_26 = arith.constant 0.000000e+00 : f32
    %67 = vector.broadcast %cst_26 : f32 to vector<1x64xf32>
    %68 = arith.maximumf %66, %67 : vector<1x64xf32>
    %cst_27 = arith.constant 9.99999974E-6 : f32
    %69 = vector.broadcast %cst_27 : f32 to vector<1x64xf32>
    %70 = arith.addf %68, %69 : vector<1x64xf32>
    %71 = math.rsqrt %70 : vector<1x64xf32>
    %72 = arith.mulf %5, %71 : vector<1x64xf32>
    %73 = arith.mulf %62, %72 : vector<1x64xf32>
    %74 = arith.subf %6, %73 : vector<1x64xf32>
    %75 = vector.broadcast %72 : vector<1x64xf32> to vector<22x64xf32>
    %76 = arith.mulf %25, %75 : vector<22x64xf32>
    %77 = vector.broadcast %74 : vector<1x64xf32> to vector<22x64xf32>
    %78 = arith.addf %76, %77 : vector<22x64xf32>
    %cst_28 = arith.constant 0.000000e+00 : f32
    %79 = vector.broadcast %cst_28 : f32 to vector<22x64xf32>
    %80 = arith.maximumf %78, %79 : vector<22x64xf32>
    %81 = vector.broadcast %72 : vector<1x64xf32> to vector<22x64xf32>
    %82 = arith.mulf %44, %81 : vector<22x64xf32>
    %83 = vector.broadcast %74 : vector<1x64xf32> to vector<22x64xf32>
    %84 = arith.addf %82, %83 : vector<22x64xf32>
    %cst_29 = arith.constant 0.000000e+00 : f32
    %85 = vector.broadcast %cst_29 : f32 to vector<22x64xf32>
    %86 = arith.maximumf %84, %85 : vector<22x64xf32>
    %c0_30 = arith.constant 0 : index
    %c0_31 = arith.constant 0 : index
    %c0_32 = arith.constant 0 : index
    %87 = vector.load %arg4[%c0_30, %c0_31, %c0_32] : memref<3x64x128xbf16, #tpu.memory_space<vmem>>, vector<3x64x128xbf16>
    %c0_33 = arith.constant 0 : index
    %c0_34 = arith.constant 0 : index
    %88 = vector.load %arg5[%c0_33, %c0_34] : memref<1x128xf32, #tpu.memory_space<vmem>>, vector<1x128xf32>
    %c0_35 = arith.constant 0 : index
    %c0_36 = arith.constant 0 : index
    %89 = vector.load %arg6[%c0_35, %c0_36] : memref<1x128xf32, #tpu.memory_space<vmem>>, vector<1x128xf32>
    %cst_37 = arith.constant 0.000000e+00 : f32
    %90 = vector.broadcast %cst_37 : f32 to vector<20x128xf32>
    %91 = vector.extract_strided_slice %80 {offsets = [0, 0], sizes = [20, 64], strides = [1, 1]} : vector<22x64xf32> to vector<20x64xf32>
    %92 = arith.truncf %91 : vector<20x64xf32> to vector<20x64xbf16>
    %93 = vector.extract_strided_slice %87 {offsets = [0, 0, 0], sizes = [1, 64, 128], strides = [1, 1, 1]} : vector<3x64x128xbf16> to vector<1x64x128xbf16>
    %94 = vector.shape_cast %93 : vector<1x64x128xbf16> to vector<64x128xbf16>
    %cst_38 = arith.constant dense<0.000000e+00> : vector<20x128xf32>
    %95 = tpu.matmul %92, %94, %cst_38 {dimension_numbers = #tpu.dot_dimension_numbers<[1], [0], [0], [1], [0, 0, 1, 1], [], []>} : vector<20x64xbf16>, vector<64x128xbf16>, vector<20x128xf32> -> vector<20x128xf32>
    %96 = arith.addf %90, %95 : vector<20x128xf32>
    %97 = vector.extract_strided_slice %80 {offsets = [1, 0], sizes = [20, 64], strides = [1, 1]} : vector<22x64xf32> to vector<20x64xf32>
    %98 = arith.truncf %97 : vector<20x64xf32> to vector<20x64xbf16>
    %99 = vector.extract_strided_slice %87 {offsets = [1, 0, 0], sizes = [1, 64, 128], strides = [1, 1, 1]} : vector<3x64x128xbf16> to vector<1x64x128xbf16>
    %100 = vector.shape_cast %99 : vector<1x64x128xbf16> to vector<64x128xbf16>
    %cst_39 = arith.constant dense<0.000000e+00> : vector<20x128xf32>
    %101 = tpu.matmul %98, %100, %cst_39 {dimension_numbers = #tpu.dot_dimension_numbers<[1], [0], [0], [1], [0, 0, 1, 1], [], []>} : vector<20x64xbf16>, vector<64x128xbf16>, vector<20x128xf32> -> vector<20x128xf32>
    %102 = arith.addf %96, %101 : vector<20x128xf32>
    %103 = vector.extract_strided_slice %80 {offsets = [2, 0], sizes = [20, 64], strides = [1, 1]} : vector<22x64xf32> to vector<20x64xf32>
    %104 = arith.truncf %103 : vector<20x64xf32> to vector<20x64xbf16>
    %105 = vector.extract_strided_slice %87 {offsets = [2, 0, 0], sizes = [1, 64, 128], strides = [1, 1, 1]} : vector<3x64x128xbf16> to vector<1x64x128xbf16>
    %106 = vector.shape_cast %105 : vector<1x64x128xbf16> to vector<64x128xbf16>
    %cst_40 = arith.constant dense<0.000000e+00> : vector<20x128xf32>
    %107 = tpu.matmul %104, %106, %cst_40 {dimension_numbers = #tpu.dot_dimension_numbers<[1], [0], [0], [1], [0, 0, 1, 1], [], []>} : vector<20x64xbf16>, vector<64x128xbf16>, vector<20x128xf32> -> vector<20x128xf32>
    %108 = arith.addf %102, %107 : vector<20x128xf32>
    %cst_41 = arith.constant 0.000000e+00 : f32
    %109 = vector.broadcast %cst_41 : f32 to vector<20x128xf32>
    %110 = vector.extract_strided_slice %86 {offsets = [0, 0], sizes = [20, 64], strides = [1, 1]} : vector<22x64xf32> to vector<20x64xf32>
    %111 = arith.truncf %110 : vector<20x64xf32> to vector<20x64xbf16>
    %112 = vector.extract_strided_slice %87 {offsets = [0, 0, 0], sizes = [1, 64, 128], strides = [1, 1, 1]} : vector<3x64x128xbf16> to vector<1x64x128xbf16>
    %113 = vector.shape_cast %112 : vector<1x64x128xbf16> to vector<64x128xbf16>
    %cst_42 = arith.constant dense<0.000000e+00> : vector<20x128xf32>
    %114 = tpu.matmul %111, %113, %cst_42 {dimension_numbers = #tpu.dot_dimension_numbers<[1], [0], [0], [1], [0, 0, 1, 1], [], []>} : vector<20x64xbf16>, vector<64x128xbf16>, vector<20x128xf32> -> vector<20x128xf32>
    %115 = arith.addf %109, %114 : vector<20x128xf32>
    %116 = vector.extract_strided_slice %86 {offsets = [1, 0], sizes = [20, 64], strides = [1, 1]} : vector<22x64xf32> to vector<20x64xf32>
    %117 = arith.truncf %116 : vector<20x64xf32> to vector<20x64xbf16>
    %118 = vector.extract_strided_slice %87 {offsets = [1, 0, 0], sizes = [1, 64, 128], strides = [1, 1, 1]} : vector<3x64x128xbf16> to vector<1x64x128xbf16>
    %119 = vector.shape_cast %118 : vector<1x64x128xbf16> to vector<64x128xbf16>
    %cst_43 = arith.constant dense<0.000000e+00> : vector<20x128xf32>
    %120 = tpu.matmul %117, %119, %cst_43 {dimension_numbers = #tpu.dot_dimension_numbers<[1], [0], [0], [1], [0, 0, 1, 1], [], []>} : vector<20x64xbf16>, vector<64x128xbf16>, vector<20x128xf32> -> vector<20x128xf32>
    %121 = arith.addf %115, %120 : vector<20x128xf32>
    %122 = vector.extract_strided_slice %86 {offsets = [2, 0], sizes = [20, 64], strides = [1, 1]} : vector<22x64xf32> to vector<20x64xf32>
    %123 = arith.truncf %122 : vector<20x64xf32> to vector<20x64xbf16>
    %124 = vector.extract_strided_slice %87 {offsets = [2, 0, 0], sizes = [1, 64, 128], strides = [1, 1, 1]} : vector<3x64x128xbf16> to vector<1x64x128xbf16>
    %125 = vector.shape_cast %124 : vector<1x64x128xbf16> to vector<64x128xbf16>
    %cst_44 = arith.constant dense<0.000000e+00> : vector<20x128xf32>
    %126 = tpu.matmul %123, %125, %cst_44 {dimension_numbers = #tpu.dot_dimension_numbers<[1], [0], [0], [1], [0, 0, 1, 1], [], []>} : vector<20x64xbf16>, vector<64x128xbf16>, vector<20x128xf32> -> vector<20x128xf32>
    %127 = arith.addf %121, %126 : vector<20x128xf32>
    %cst_45 = arith.constant dense<0.000000e+00> : vector<128xf32>
    %128 = vector.multi_reduction <add>, %108, %cst_45 [0] : vector<20x128xf32> to vector<128xf32>
    %129 = vector.shape_cast %128 : vector<128xf32> to vector<1x128xf32>
    %cst_46 = arith.constant 0.000000e+00 : f32
    %130 = vector.broadcast %cst_46 : f32 to vector<1x128xf32>
    %131 = arith.addf %130, %129 : vector<1x128xf32>
    %cst_47 = arith.constant dense<0.000000e+00> : vector<128xf32>
    %132 = vector.multi_reduction <add>, %127, %cst_47 [0] : vector<20x128xf32> to vector<128xf32>
    %133 = vector.shape_cast %132 : vector<128xf32> to vector<1x128xf32>
    %134 = arith.addf %131, %133 : vector<1x128xf32>
    %135 = arith.mulf %108, %108 : vector<20x128xf32>
    %cst_48 = arith.constant dense<0.000000e+00> : vector<128xf32>
    %136 = vector.multi_reduction <add>, %135, %cst_48 [0] : vector<20x128xf32> to vector<128xf32>
    %137 = vector.shape_cast %136 : vector<128xf32> to vector<1x128xf32>
    %cst_49 = arith.constant 0.000000e+00 : f32
    %138 = vector.broadcast %cst_49 : f32 to vector<1x128xf32>
    %139 = arith.addf %138, %137 : vector<1x128xf32>
    %140 = arith.mulf %127, %127 : vector<20x128xf32>
    %cst_50 = arith.constant dense<0.000000e+00> : vector<128xf32>
    %141 = vector.multi_reduction <add>, %140, %cst_50 [0] : vector<20x128xf32> to vector<128xf32>
    %142 = vector.shape_cast %141 : vector<128xf32> to vector<1x128xf32>
    %143 = arith.addf %139, %142 : vector<1x128xf32>
    %cst_51 = arith.constant 2.500000e-02 : f32
    %144 = vector.broadcast %cst_51 : f32 to vector<1x128xf32>
    %145 = arith.mulf %134, %144 : vector<1x128xf32>
    %cst_52 = arith.constant 2.500000e-02 : f32
    %146 = vector.broadcast %cst_52 : f32 to vector<1x128xf32>
    %147 = arith.mulf %143, %146 : vector<1x128xf32>
    %148 = arith.mulf %145, %145 : vector<1x128xf32>
    %149 = arith.subf %147, %148 : vector<1x128xf32>
    %cst_53 = arith.constant 0.000000e+00 : f32
    %150 = vector.broadcast %cst_53 : f32 to vector<1x128xf32>
    %151 = arith.maximumf %149, %150 : vector<1x128xf32>
    %cst_54 = arith.constant 9.99999974E-6 : f32
    %152 = vector.broadcast %cst_54 : f32 to vector<1x128xf32>
    %153 = arith.addf %151, %152 : vector<1x128xf32>
    %154 = math.rsqrt %153 : vector<1x128xf32>
    %155 = arith.mulf %88, %154 : vector<1x128xf32>
    %156 = arith.mulf %145, %155 : vector<1x128xf32>
    %157 = arith.subf %89, %156 : vector<1x128xf32>
    %158 = vector.broadcast %155 : vector<1x128xf32> to vector<20x128xf32>
    %159 = arith.mulf %108, %158 : vector<20x128xf32>
    %160 = vector.broadcast %157 : vector<1x128xf32> to vector<20x128xf32>
    %161 = arith.addf %159, %160 : vector<20x128xf32>
    %cst_55 = arith.constant 0.000000e+00 : f32
    %162 = vector.broadcast %cst_55 : f32 to vector<20x128xf32>
    %163 = arith.maximumf %161, %162 : vector<20x128xf32>
    %164 = vector.broadcast %155 : vector<1x128xf32> to vector<20x128xf32>
    %165 = arith.mulf %127, %164 : vector<20x128xf32>
    %166 = vector.broadcast %157 : vector<1x128xf32> to vector<20x128xf32>
    %167 = arith.addf %165, %166 : vector<20x128xf32>
    %cst_56 = arith.constant 0.000000e+00 : f32
    %168 = vector.broadcast %cst_56 : f32 to vector<20x128xf32>
    %169 = arith.maximumf %167, %168 : vector<20x128xf32>
    %c0_57 = arith.constant 0 : index
    %c0_58 = arith.constant 0 : index
    %c0_59 = arith.constant 0 : index
    %170 = vector.load %arg7[%c0_57, %c0_58, %c0_59] : memref<4x128x128xbf16, #tpu.memory_space<vmem>>, vector<4x128x128xbf16>
    %cst_60 = arith.constant 0.000000e+00 : f32
    %171 = vector.broadcast %cst_60 : f32 to vector<2x128xf32>
    %172 = vector.extract_strided_slice %163 {offsets = [0, 0], sizes = [5, 128], strides = [1, 1]} : vector<20x128xf32> to vector<5x128xf32>
    %cst_61 = arith.constant dense<0xFF800000> : vector<128xf32>
    %173 = vector.multi_reduction <maximumf>, %172, %cst_61 [0] : vector<5x128xf32> to vector<128xf32>
    %174 = vector.shape_cast %173 : vector<128xf32> to vector<1x128xf32>
    %175 = vector.extract_strided_slice %169 {offsets = [0, 0], sizes = [5, 128], strides = [1, 1]} : vector<20x128xf32> to vector<5x128xf32>
    %cst_62 = arith.constant dense<0xFF800000> : vector<128xf32>
    %176 = vector.multi_reduction <maximumf>, %175, %cst_62 [0] : vector<5x128xf32> to vector<128xf32>
    %177 = vector.shape_cast %176 : vector<128xf32> to vector<1x128xf32>
    %178 = tpu.concatenate %174, %177 in 0 : vector<1x128xf32>, vector<1x128xf32> -> vector<2x128xf32>
    %179 = arith.truncf %178 : vector<2x128xf32> to vector<2x128xbf16>
    %180 = vector.extract_strided_slice %170 {offsets = [0, 0, 0], sizes = [1, 128, 128], strides = [1, 1, 1]} : vector<4x128x128xbf16> to vector<1x128x128xbf16>
    %181 = vector.shape_cast %180 : vector<1x128x128xbf16> to vector<128x128xbf16>
    %cst_63 = arith.constant dense<0.000000e+00> : vector<2x128xf32>
    %182 = tpu.matmul %179, %181, %cst_63 {dimension_numbers = #tpu.dot_dimension_numbers<[1], [0], [0], [1], [0, 0, 1, 1], [], []>} : vector<2x128xbf16>, vector<128x128xbf16>, vector<2x128xf32> -> vector<2x128xf32>
    %183 = arith.addf %171, %182 : vector<2x128xf32>
    %184 = vector.extract_strided_slice %163 {offsets = [5, 0], sizes = [5, 128], strides = [1, 1]} : vector<20x128xf32> to vector<5x128xf32>
    %cst_64 = arith.constant dense<0xFF800000> : vector<128xf32>
    %185 = vector.multi_reduction <maximumf>, %184, %cst_64 [0] : vector<5x128xf32> to vector<128xf32>
    %186 = vector.shape_cast %185 : vector<128xf32> to vector<1x128xf32>
    %187 = vector.extract_strided_slice %169 {offsets = [5, 0], sizes = [5, 128], strides = [1, 1]} : vector<20x128xf32> to vector<5x128xf32>
    %cst_65 = arith.constant dense<0xFF800000> : vector<128xf32>
    %188 = vector.multi_reduction <maximumf>, %187, %cst_65 [0] : vector<5x128xf32> to vector<128xf32>
    %189 = vector.shape_cast %188 : vector<128xf32> to vector<1x128xf32>
    %190 = tpu.concatenate %186, %189 in 0 : vector<1x128xf32>, vector<1x128xf32> -> vector<2x128xf32>
    %191 = arith.truncf %190 : vector<2x128xf32> to vector<2x128xbf16>
    %192 = vector.extract_strided_slice %170 {offsets = [1, 0, 0], sizes = [1, 128, 128], strides = [1, 1, 1]} : vector<4x128x128xbf16> to vector<1x128x128xbf16>
    %193 = vector.shape_cast %192 : vector<1x128x128xbf16> to vector<128x128xbf16>
    %cst_66 = arith.constant dense<0.000000e+00> : vector<2x128xf32>
    %194 = tpu.matmul %191, %193, %cst_66 {dimension_numbers = #tpu.dot_dimension_numbers<[1], [0], [0], [1], [0, 0, 1, 1], [], []>} : vector<2x128xbf16>, vector<128x128xbf16>, vector<2x128xf32> -> vector<2x128xf32>
    %195 = arith.addf %183, %194 : vector<2x128xf32>
    %196 = vector.extract_strided_slice %163 {offsets = [10, 0], sizes = [5, 128], strides = [1, 1]} : vector<20x128xf32> to vector<5x128xf32>
    %cst_67 = arith.constant dense<0xFF800000> : vector<128xf32>
    %197 = vector.multi_reduction <maximumf>, %196, %cst_67 [0] : vector<5x128xf32> to vector<128xf32>
    %198 = vector.shape_cast %197 : vector<128xf32> to vector<1x128xf32>
    %199 = vector.extract_strided_slice %169 {offsets = [10, 0], sizes = [5, 128], strides = [1, 1]} : vector<20x128xf32> to vector<5x128xf32>
    %cst_68 = arith.constant dense<0xFF800000> : vector<128xf32>
    %200 = vector.multi_reduction <maximumf>, %199, %cst_68 [0] : vector<5x128xf32> to vector<128xf32>
    %201 = vector.shape_cast %200 : vector<128xf32> to vector<1x128xf32>
    %202 = tpu.concatenate %198, %201 in 0 : vector<1x128xf32>, vector<1x128xf32> -> vector<2x128xf32>
    %203 = arith.truncf %202 : vector<2x128xf32> to vector<2x128xbf16>
    %204 = vector.extract_strided_slice %170 {offsets = [2, 0, 0], sizes = [1, 128, 128], strides = [1, 1, 1]} : vector<4x128x128xbf16> to vector<1x128x128xbf16>
    %205 = vector.shape_cast %204 : vector<1x128x128xbf16> to vector<128x128xbf16>
    %cst_69 = arith.constant dense<0.000000e+00> : vector<2x128xf32>
    %206 = tpu.matmul %203, %205, %cst_69 {dimension_numbers = #tpu.dot_dimension_numbers<[1], [0], [0], [1], [0, 0, 1, 1], [], []>} : vector<2x128xbf16>, vector<128x128xbf16>, vector<2x128xf32> -> vector<2x128xf32>
    %207 = arith.addf %195, %206 : vector<2x128xf32>
    %208 = vector.extract_strided_slice %163 {offsets = [15, 0], sizes = [5, 128], strides = [1, 1]} : vector<20x128xf32> to vector<5x128xf32>
    %cst_70 = arith.constant dense<0xFF800000> : vector<128xf32>
    %209 = vector.multi_reduction <maximumf>, %208, %cst_70 [0] : vector<5x128xf32> to vector<128xf32>
    %210 = vector.shape_cast %209 : vector<128xf32> to vector<1x128xf32>
    %211 = vector.extract_strided_slice %169 {offsets = [15, 0], sizes = [5, 128], strides = [1, 1]} : vector<20x128xf32> to vector<5x128xf32>
    %cst_71 = arith.constant dense<0xFF800000> : vector<128xf32>
    %212 = vector.multi_reduction <maximumf>, %211, %cst_71 [0] : vector<5x128xf32> to vector<128xf32>
    %213 = vector.shape_cast %212 : vector<128xf32> to vector<1x128xf32>
    %214 = tpu.concatenate %210, %213 in 0 : vector<1x128xf32>, vector<1x128xf32> -> vector<2x128xf32>
    %215 = arith.truncf %214 : vector<2x128xf32> to vector<2x128xbf16>
    %216 = vector.extract_strided_slice %170 {offsets = [3, 0, 0], sizes = [1, 128, 128], strides = [1, 1, 1]} : vector<4x128x128xbf16> to vector<1x128x128xbf16>
    %217 = vector.shape_cast %216 : vector<1x128x128xbf16> to vector<128x128xbf16>
    %cst_72 = arith.constant dense<0.000000e+00> : vector<2x128xf32>
    %218 = tpu.matmul %215, %217, %cst_72 {dimension_numbers = #tpu.dot_dimension_numbers<[1], [0], [0], [1], [0, 0, 1, 1], [], []>} : vector<2x128xbf16>, vector<128x128xbf16>, vector<2x128xf32> -> vector<2x128xf32>
    %219 = arith.addf %207, %218 : vector<2x128xf32>
    %c0_73 = arith.constant 0 : index
    %c0_74 = arith.constant 0 : index
    %220 = vector.load %arg8[%c0_73, %c0_74] : memref<1x128xf32, #tpu.memory_space<vmem>>, vector<1x128xf32>
    %221 = vector.broadcast %220 : vector<1x128xf32> to vector<2x128xf32>
    %222 = arith.addf %219, %221 : vector<2x128xf32>
    %cst_75 = arith.constant 0.000000e+00 : f32
    %223 = vector.broadcast %cst_75 : f32 to vector<2x128xf32>
    %224 = arith.maximumf %222, %223 : vector<2x128xf32>
    %c0_76 = arith.constant 0 : index
    %c0_77 = arith.constant 0 : index
    %225 = vector.load %arg9[%c0_76, %c0_77] : memref<2x128xf32, #tpu.memory_space<vmem>>, vector<2x128xf32>
    tpu.vector_store %arg9[%c0_76, %c0_77], %224 {strides = array<i32>} : memref<2x128xf32, #tpu.memory_space<vmem>>, vector<2x128xf32>,
    return
  }
}

</mosaic_0001>

<llo_original>
// kernel: cnn_forward.2
$region0: #{cnn_forward.2}
  #allocation0 [shape = 'u32[]', space=smem, size = 0x4, offset = 0x4, fixed_abs, tag = 'smem constant byte address 0x4 - core index']
  #allocation1 [shape = 'u32[144,128]{1,0:T(1,128)}', space=vmem, size = 0x12000, scoped, tag = 'internal scratch']
  %s0 = inlined_call_operand.vmem [shape: f32[2,64,1], index: 0, kind: input, shape index: {}]
  %s1 = inlined_call_operand.vmem [shape: bf16[15,1,16], index: 1, kind: input, shape index: {}]
  %s2 = inlined_call_operand.vmem [shape: f32[1,16], index: 2, kind: input, shape index: {}]
  %s3 = inlined_call_operand.vmem [shape: f32[1,16], index: 3, kind: input, shape index: {}]
  %s4 = inlined_call_operand.vmem [shape: bf16[3,16,32], index: 4, kind: input, shape index: {}]
  %s5 = inlined_call_operand.vmem [shape: f32[1,32], index: 5, kind: input, shape index: {}]
  %s6 = inlined_call_operand.vmem [shape: f32[1,32], index: 6, kind: input, shape index: {}]
  %s7 = inlined_call_operand.vmem [shape: f32[2,48,32], index: 7, kind: output, shape index: {}]
  %s8 = sld [smem:[#allocation0]]
  $region38: #{cnn_forward.2} parent=0
    _
  %s10 = ssub.s32 1, %s8
  %s11 = scalar_select 0, %s10, %s8
  // Predicated region
  $region2: #{cnn_forward.2} parent=0 // pred_check
    _
  $region3: #{cnn_forward.2} parent=0 // pred_check_branch
    %13 = sbr.rel (0) target = $region5
  $region4: #{cnn_forward.2} parent=0 // pred_region
    _
  $region5: #{cnn_forward.2} parent=0 // pred_fallthru
    _
  // Predicated region
  $region6: #{cnn_forward.2} parent=0 // pred_check
    _
  $region7: #{cnn_forward.2} parent=0 // pred_check_branch
    %15 = sbr.rel (0) target = $region9
  $region8: #{cnn_forward.2} parent=0 // pred_region
    _
  $region9: #{cnn_forward.2} parent=0 // pred_fallthru
    _
  // Predicated region
  $region10: #{cnn_forward.2} parent=0 // pred_check
    _
  $region11: #{cnn_forward.2} parent=0 // pred_check_branch
    %17 = sbr.rel (0) target = $region13
  $region12: #{cnn_forward.2} parent=0 // pred_region
    _
  $region13: #{cnn_forward.2} parent=0 // pred_fallthru
    _
  // Predicated region
  $region14: #{cnn_forward.2} parent=0 // pred_check
    _
  $region15: #{cnn_forward.2} parent=0 // pred_check_branch
    %19 = sbr.rel (0) target = $region17
  $region16: #{cnn_forward.2} parent=0 // pred_region
    _
  $region17: #{cnn_forward.2} parent=0 // pred_fallthru
    _
  // Predicated region
  $region18: #{cnn_forward.2} parent=0 // pred_check
    _
  $region19: #{cnn_forward.2} parent=0 // pred_check_branch
    %21 = sbr.rel (0) target = $region21
  $region20: #{cnn_forward.2} parent=0 // pred_region
    _
  $region21: #{cnn_forward.2} parent=0 // pred_fallthru
    _
  // Predicated region
  $region22: #{cnn_forward.2} parent=0 // pred_check
    _
  $region23: #{cnn_forward.2} parent=0 // pred_check_branch
    %23 = sbr.rel (0) target = $region25
  $region24: #{cnn_forward.2} parent=0 // pred_region
    _
  $region25: #{cnn_forward.2} parent=0 // pred_fallthru
    _
  // Predicated region
  $region26: #{cnn_forward.2} parent=0 // pred_check
    _
  $region27: #{cnn_forward.2} parent=0 // pred_check_branch
    %25 = sbr.rel (0) target = $region29
  $region28: #{cnn_forward.2} parent=0 // pred_region
    _
  $region29: #{cnn_forward.2} parent=0 // pred_fallthru
    _
  %v27 = vld [vmem:[%s0] sm:$0xff]
  %v28 = vld [vmem:[%s0 + $0x8] sm:$0xff]
  %v29 = vld [vmem:[%s0 + $0x10] sm:$0xff]
  %v30 = vld [vmem:[%s0 + $0x18] sm:$0xff]
  %v31 = vld [vmem:[%s0 + $0x20] sm:$0xff]
  %v32 = vld [vmem:[%s0 + $0x28] sm:$0xff]
  %v33 = vld [vmem:[%s0 + $0x30] sm:$0xff]
  %v34 = vld [vmem:[%s0 + $0x38] sm:$0xff]
  %s35 = scalar_lea.vmem %s0, 64
  %v36 = vld [vmem:[%s35] sm:$0xff]
  %v37 = vld [vmem:[%s35 + $0x8] sm:$0xff]
  %v38 = vld [vmem:[%s35 + $0x10] sm:$0xff]
  %v39 = vld [vmem:[%s35 + $0x18] sm:$0xff]
  %v40 = vld [vmem:[%s35 + $0x20] sm:$0xff]
  %v41 = vld [vmem:[%s35 + $0x28] sm:$0xff]
  %v42 = vld [vmem:[%s35 + $0x30] sm:$0xff]
  %v43 = vld [vmem:[%s35 + $0x38] sm:$0xff]
  %v44 = vld [vmem:[%s1] sm:$0x1]
  %v45 = vld [vmem:[%s1 + $0x1] sm:$0x1]
  %v46 = vld [vmem:[%s1 + $0x2] sm:$0x1]
  %v47 = vld [vmem:[%s1 + $0x3] sm:$0x1]
  %v48 = vld [vmem:[%s1 + $0x4] sm:$0x1]
  %v49 = vld [vmem:[%s1 + $0x5] sm:$0x1]
  %v50 = vld [vmem:[%s1 + $0x6] sm:$0x1]
  %v51 = vld [vmem:[%s1 + $0x7] sm:$0x1]
  %v52 = vld [vmem:[%s1 + $0x8] sm:$0x1]
  %v53 = vld [vmem:[%s1 + $0x9] sm:$0x1]
  %v54 = vld [vmem:[%s1 + $0xa] sm:$0x1]
  %v55 = vld [vmem:[%s1 + $0xb] sm:$0x1]
  %v56 = vld [vmem:[%s1 + $0xc] sm:$0x1]
  %v57 = vld [vmem:[%s1 + $0xd] sm:$0x1]
  %v58 = vld [vmem:[%s1 + $0xe] sm:$0x1]
  %v59 = vld [vmem:[%s2] sm:$0x1]
  %v60 = vld [vmem:[%s3] sm:$0x1]
  %v61 = vunpack.c.l.bf16 %v44
  %63 = vset.pattern.permute.xlu0 0
  %64 = vperm.xlu0 %63, %v27
  %v65 = vpop.permute.xlu0 %64
  %68 = vset.pattern.permute.xlu0 0
  %69 = vperm.xlu0 %68, %v28
  %v70 = vpop.permute.xlu0 %69
  %73 = vset.pattern.permute.xlu0 0
  %74 = vperm.xlu0 %73, %v29
  %v75 = vpop.permute.xlu0 %74
  %78 = vset.pattern.permute.xlu0 0
  %79 = vperm.xlu0 %78, %v30
  %v80 = vpop.permute.xlu0 %79
  %83 = vset.pattern.permute.xlu0 0
  %84 = vperm.xlu0 %83, %v31
  %v85 = vpop.permute.xlu0 %84
  %88 = vset.pattern.permute.xlu0 0
  %89 = vperm.xlu0 %88, %v32
  %v90 = vpop.permute.xlu0 %89
  %93 = vset.pattern.permute.xlu0 0
  %94 = vperm.xlu0 %93, %v33
  %v95 = vpop.permute.xlu0 %94
  %v97 = vlaneseq
  %v98 = vshrl.u32 %v97, 7
  %v99 = vsub.s32 0, %v98
  %v100 = vrot.slane %v61, %v99
  %v101 = vmul.f32 %v65, %v100
  %v102 = vmul.f32 %v70, %v100
  %v103 = vmul.f32 %v75, %v100
  %v104 = vmul.f32 %v80, %v100
  %v105 = vmul.f32 %v85, %v100
  %v106 = vmul.f32 %v90, %v100
  %v107 = vmul.f32 %v95, %v100
  %v108 = vadd.f32 %v101, 0.0
  %v109 = vadd.f32 %v102, 0.0
  %v110 = vadd.f32 %v103, 0.0
  %v111 = vadd.f32 %v104, 0.0
  %v112 = vadd.f32 %v105, 0.0
  %v113 = vadd.f32 %v106, 0.0
  %v114 = vadd.f32 %v107, 0.0
  %v115 = vunpack.c.l.bf16 %v45
  %v116 = vlaneseq
  %v117 = vshrl.u32 %v116, 7
  %v118 = vsub.s32 0, %v117
  %v119 = vrot.slane %v115, %v118
  %v120 = vmul.f32 %v65, %v119
  %v121 = vmul.f32 %v70, %v119
  %v122 = vmul.f32 %v75, %v119
  %v123 = vmul.f32 %v80, %v119
  %v124 = vmul.f32 %v85, %v119
  %v125 = vmul.f32 %v90, %v119
  %v126 = vmul.f32 %v95, %v119
  %vm134 = vcmask 1046528
  %v135 = vrot.slane %v120, 1
  %v136 = vrot.slane %v121, 1
  %v137 = vsel %vm134, %v135, %v136
  %v138 = vrot.slane %v122, 1
  %v139 = vsel %vm134, %v136, %v138
  %v140 = vrot.slane %v123, 1
  %v141 = vsel %vm134, %v138, %v140
  %v142 = vrot.slane %v124, 1
  %v143 = vsel %vm134, %v140, %v142
  %v144 = vrot.slane %v125, 1
  %v145 = vsel %vm134, %v142, %v144
  %v146 = vrot.slane %v126, 1
  %v147 = vsel %vm134, %v144, %v146
  %v155 = vadd.f32 %v108, %v137
  %v156 = vadd.f32 %v109, %v139
  %v157 = vadd.f32 %v110, %v141
  %v158 = vadd.f32 %v111, %v143
  %v159 = vadd.f32 %v112, %v145
  %v160 = vadd.f32 %v113, %v147
  %v161 = vadd.f32 %v114, %v146
  %v162 = vunpack.c.l.bf16 %v46
  %v163 = vlaneseq
  %v164 = vshrl.u32 %v163, 7
  %v165 = vsub.s32 0, %v164
  %v166 = vrot.slane %v162, %v165
  %v167 = vmul.f32 %v65, %v166
  %v168 = vmul.f32 %v70, %v166
  %v169 = vmul.f32 %v75, %v166
  %v170 = vmul.f32 %v80, %v166
  %v171 = vmul.f32 %v85, %v166
  %v172 = vmul.f32 %v90, %v166
  %v173 = vmul.f32 %v95, %v166
  %vm181 = vcmask 1045504
  %v182 = vrot.slane %v167, 2
  %v183 = vrot.slane %v168, 2
  %v184 = vsel %vm181, %v182, %v183
  %v185 = vrot.slane %v169, 2
  %v186 = vsel %vm181, %v183, %v185
  %v187 = vrot.slane %v170, 2
  %v188 = vsel %vm181, %v185, %v187
  %v189 = vrot.slane %v171, 2
  %v190 = vsel %vm181, %v187, %v189
  %v191 = vrot.slane %v172, 2
  %v192 = vsel %vm181, %v189, %v191
  %v193 = vrot.slane %v173, 2
  %v194 = vsel %vm181, %v191, %v193
  %v202 = vadd.f32 %v155, %v184
  %v203 = vadd.f32 %v156, %v186
  %v204 = vadd.f32 %v157, %v188
  %v205 = vadd.f32 %v158, %v190
  %v206 = vadd.f32 %v159, %v192
  %v207 = vadd.f32 %v160, %v194
  %v208 = vadd.f32 %v161, %v193
  %v209 = vunpack.c.l.bf16 %v47
  %v210 = vlaneseq
  %v211 = vshrl.u32 %v210, 7
  %v212 = vsub.s32 0, %v211
  %v213 = vrot.slane %v209, %v212
  %v214 = vmul.f32 %v65, %v213
  %v215 = vmul.f32 %v70, %v213
  %v216 = vmul.f32 %v75, %v213
  %v217 = vmul.f32 %v80, %v213
  %v218 = vmul.f32 %v85, %v213
  %v219 = vmul.f32 %v90, %v213
  %v220 = vmul.f32 %v95, %v213
  %vm228 = vcmask 1044480
  %v229 = vrot.slane %v214, 3
  %v230 = vrot.slane %v215, 3
  %v231 = vsel %vm228, %v229, %v230
  %v232 = vrot.slane %v216, 3
  %v233 = vsel %vm228, %v230, %v232
  %v234 = vrot.slane %v217, 3
  %v235 = vsel %vm228, %v232, %v234
  %v236 = vrot.slane %v218, 3
  %v237 = vsel %vm228, %v234, %v236
  %v238 = vrot.slane %v219, 3
  %v239 = vsel %vm228, %v236, %v238
  %v240 = vrot.slane %v220, 3
  %v241 = vsel %vm228, %v238, %v240
  %v249 = vadd.f32 %v202, %v231
  %v250 = vadd.f32 %v203, %v233
  %v251 = vadd.f32 %v204, %v235
  %v252 = vadd.f32 %v205, %v237
  %v253 = vadd.f32 %v206, %v239
  %v254 = vadd.f32 %v207, %v241
  %v255 = vadd.f32 %v208, %v240
  %v256 = vunpack.c.l.bf16 %v48
  %v257 = vlaneseq
  %v258 = vshrl.u32 %v257, 7
  %v259 = vsub.s32 0, %v258
  %v260 = vrot.slane %v256, %v259
  %v261 = vmul.f32 %v65, %v260
  %v262 = vmul.f32 %v70, %v260
  %v263 = vmul.f32 %v75, %v260
  %v264 = vmul.f32 %v80, %v260
  %v265 = vmul.f32 %v85, %v260
  %v266 = vmul.f32 %v90, %v260
  %v267 = vmul.f32 %v95, %v260
  %vm275 = vcmask 1043456
  %v276 = vrot.slane %v261, 4
  %v277 = vrot.slane %v262, 4
  %v278 = vsel %vm275, %v276, %v277
  %v279 = vrot.slane %v263, 4
  %v280 = vsel %vm275, %v277, %v279
  %v281 = vrot.slane %v264, 4
  %v282 = vsel %vm275, %v279, %v281
  %v283 = vrot.slane %v265, 4
  %v284 = vsel %vm275, %v281, %v283
  %v285 = vrot.slane %v266, 4
  %v286 = vsel %vm275, %v283, %v285
  %v287 = vrot.slane %v267, 4
  %v288 = vsel %vm275, %v285, %v287
  %v296 = vadd.f32 %v249, %v278
  %v297 = vadd.f32 %v250, %v280
  %v298 = vadd.f32 %v251, %v282
  %v299 = vadd.f32 %v252, %v284
  %v300 = vadd.f32 %v253, %v286
  %v301 = vadd.f32 %v254, %v288
  %v302 = vadd.f32 %v255, %v287
  %v303 = vunpack.c.l.bf16 %v49
  %v304 = vlaneseq
  %v305 = vshrl.u32 %v304, 7
  %v306 = vsub.s32 0, %v305
  %v307 = vrot.slane %v303, %v306
  %v308 = vmul.f32 %v65, %v307
  %v309 = vmul.f32 %v70, %v307
  %v310 = vmul.f32 %v75, %v307
  %v311 = vmul.f32 %v80, %v307
  %v312 = vmul.f32 %v85, %v307
  %v313 = vmul.f32 %v90, %v307
  %v314 = vmul.f32 %v95, %v307
  %vm322 = vcmask 1042432
  %v323 = vrot.slane %v308, 5
  %v324 = vrot.slane %v309, 5
  %v325 = vsel %vm322, %v323, %v324
  %v326 = vrot.slane %v310, 5
  %v327 = vsel %vm322, %v324, %v326
  %v328 = vrot.slane %v311, 5
  %v329 = vsel %vm322, %v326, %v328
  %v330 = vrot.slane %v312, 5
  %v331 = vsel %vm322, %v328, %v330
  %v332 = vrot.slane %v313, 5
  %v333 = vsel %vm322, %v330, %v332
  %v334 = vrot.slane %v314, 5
  %v335 = vsel %vm322, %v332, %v334
  %v343 = vadd.f32 %v296, %v325
  %v344 = vadd.f32 %v297, %v327
  %v345 = vadd.f32 %v298, %v329
  %v346 = vadd.f32 %v299, %v331
  %v347 = vadd.f32 %v300, %v333
  %v348 = vadd.f32 %v301, %v335
  %v349 = vadd.f32 %v302, %v334
  %v350 = vunpack.c.l.bf16 %v50
  %v351 = vlaneseq
  %v352 = vshrl.u32 %v351, 7
  %v353 = vsub.s32 0, %v352
  %v354 = vrot.slane %v350, %v353
  %v355 = vmul.f32 %v65, %v354
  %v356 = vmul.f32 %v70, %v354
  %v357 = vmul.f32 %v75, %v354
  %v358 = vmul.f32 %v80, %v354
  %v359 = vmul.f32 %v85, %v354
  %v360 = vmul.f32 %v90, %v354
  %v361 = vmul.f32 %v95, %v354
  %vm369 = vcmask 1041408
  %v370 = vrot.slane %v355, 6
  %v371 = vrot.slane %v356, 6
  %v372 = vsel %vm369, %v370, %v371
  %v373 = vrot.slane %v357, 6
  %v374 = vsel %vm369, %v371, %v373
  %v375 = vrot.slane %v358, 6
  %v376 = vsel %vm369, %v373, %v375
  %v377 = vrot.slane %v359, 6
  %v378 = vsel %vm369, %v375, %v377
  %v379 = vrot.slane %v360, 6
  %v380 = vsel %vm369, %v377, %v379
  %v381 = vrot.slane %v361, 6
  %v382 = vsel %vm369, %v379, %v381
  %v390 = vadd.f32 %v343, %v372
  %v391 = vadd.f32 %v344, %v374
  %v392 = vadd.f32 %v345, %v376
  %v393 = vadd.f32 %v346, %v378
  %v394 = vadd.f32 %v347, %v380
  %v395 = vadd.f32 %v348, %v382
  %v396 = vadd.f32 %v349, %v381
  %v397 = vunpack.c.l.bf16 %v51
  %399 = vset.pattern.permute.xlu0 0
  %400 = vperm.xlu0 %399, %v34
  %v401 = vpop.permute.xlu0 %400
  %v403 = vlaneseq
  %v404 = vshrl.u32 %v403, 7
  %v405 = vsub.s32 0, %v404
  %v406 = vrot.slane %v397, %v405
  %v407 = vmul.f32 %v65, %v406
  %v408 = vmul.f32 %v70, %v406
  %v409 = vmul.f32 %v75, %v406
  %v410 = vmul.f32 %v80, %v406
  %v411 = vmul.f32 %v85, %v406
  %v412 = vmul.f32 %v90, %v406
  %v413 = vmul.f32 %v95, %v406
  %v414 = vmul.f32 %v401, %v406
  %vm423 = vcmask 1040384
  %v424 = vrot.slane %v407, 7
  %v425 = vrot.slane %v408, 7
  %v426 = vsel %vm423, %v424, %v425
  %v427 = vrot.slane %v409, 7
  %v428 = vsel %vm423, %v425, %v427
  %v429 = vrot.slane %v410, 7
  %v430 = vsel %vm423, %v427, %v429
  %v431 = vrot.slane %v411, 7
  %v432 = vsel %vm423, %v429, %v431
  %v433 = vrot.slane %v412, 7
  %v434 = vsel %vm423, %v431, %v433
  %v435 = vrot.slane %v413, 7
  %v436 = vsel %vm423, %v433, %v435
  %v437 = vrot.slane %v414, 7
  %v438 = vsel %vm423, %v435, %v437
  %v446 = vadd.f32 %v390, %v426
  %v447 = vadd.f32 %v391, %v428
  %v448 = vadd.f32 %v392, %v430
  %v449 = vadd.f32 %v393, %v432
  %v450 = vadd.f32 %v394, %v434
  %v451 = vadd.f32 %v395, %v436
  %v452 = vadd.f32 %v396, %v438
  %v453 = vunpack.c.l.bf16 %v52
  %v454 = vlaneseq
  %v455 = vshrl.u32 %v454, 7
  %v456 = vsub.s32 0, %v455
  %v457 = vrot.slane %v453, %v456
  %v458 = vmul.f32 %v70, %v457
  %v459 = vmul.f32 %v75, %v457
  %v460 = vmul.f32 %v80, %v457
  %v461 = vmul.f32 %v85, %v457
  %v462 = vmul.f32 %v90, %v457
  %v463 = vmul.f32 %v95, %v457
  %v464 = vmul.f32 %v401, %v457
  %v465 = vadd.f32 %v446, %v458
  %v466 = vadd.f32 %v447, %v459
  %v467 = vadd.f32 %v448, %v460
  %v468 = vadd.f32 %v449, %v461
  %v469 = vadd.f32 %v450, %v462
  %v470 = vadd.f32 %v451, %v463
  %v471 = vadd.f32 %v452, %v464
  %v472 = vunpack.c.l.bf16 %v53
  %v473 = vlaneseq
  %v474 = vshrl.u32 %v473, 7
  %v475 = vsub.s32 0, %v474
  %v476 = vrot.slane %v472, %v475
  %v477 = vmul.f32 %v70, %v476
  %v478 = vmul.f32 %v75, %v476
  %v479 = vmul.f32 %v80, %v476
  %v480 = vmul.f32 %v85, %v476
  %v481 = vmul.f32 %v90, %v476
  %v482 = vmul.f32 %v95, %v476
  %v483 = vmul.f32 %v401, %v476
  %v491 = vrot.slane %v477, 1
  %v492 = vrot.slane %v478, 1
  %v493 = vsel %vm134, %v491, %v492
  %v494 = vrot.slane %v479, 1
  %v495 = vsel %vm134, %v492, %v494
  %v496 = vrot.slane %v480, 1
  %v497 = vsel %vm134, %v494, %v496
  %v498 = vrot.slane %v481, 1
  %v499 = vsel %vm134, %v496, %v498
  %v500 = vrot.slane %v482, 1
  %v501 = vsel %vm134, %v498, %v500
  %v502 = vrot.slane %v483, 1
  %v503 = vsel %vm134, %v500, %v502
  %v511 = vadd.f32 %v465, %v493
  %v512 = vadd.f32 %v466, %v495
  %v513 = vadd.f32 %v467, %v497
  %v514 = vadd.f32 %v468, %v499
  %v515 = vadd.f32 %v469, %v501
  %v516 = vadd.f32 %v470, %v503
  %v517 = vadd.f32 %v471, %v502
  %v518 = vunpack.c.l.bf16 %v54
  %v519 = vlaneseq
  %v520 = vshrl.u32 %v519, 7
  %v521 = vsub.s32 0, %v520
  %v522 = vrot.slane %v518, %v521
  %v523 = vmul.f32 %v70, %v522
  %v524 = vmul.f32 %v75, %v522
  %v525 = vmul.f32 %v80, %v522
  %v526 = vmul.f32 %v85, %v522
  %v527 = vmul.f32 %v90, %v522
  %v528 = vmul.f32 %v95, %v522
  %v529 = vmul.f32 %v401, %v522
  %v537 = vrot.slane %v523, 2
  %v538 = vrot.slane %v524, 2
  %v539 = vsel %vm181, %v537, %v538
  %v540 = vrot.slane %v525, 2
  %v541 = vsel %vm181, %v538, %v540
  %v542 = vrot.slane %v526, 2
  %v543 = vsel %vm181, %v540, %v542
  %v544 = vrot.slane %v527, 2
  %v545 = vsel %vm181, %v542, %v544
  %v546 = vrot.slane %v528, 2
  %v547 = vsel %vm181, %v544, %v546
  %v548 = vrot.slane %v529, 2
  %v549 = vsel %vm181, %v546, %v548
  %v557 = vadd.f32 %v511, %v539
  %v558 = vadd.f32 %v512, %v541
  %v559 = vadd.f32 %v513, %v543
  %v560 = vadd.f32 %v514, %v545
  %v561 = vadd.f32 %v515, %v547
  %v562 = vadd.f32 %v516, %v549
  %v563 = vadd.f32 %v517, %v548
  %v564 = vunpack.c.l.bf16 %v55
  %v565 = vlaneseq
  %v566 = vshrl.u32 %v565, 7
  %v567 = vsub.s32 0, %v566
  %v568 = vrot.slane %v564, %v567
  %v569 = vmul.f32 %v70, %v568
  %v570 = vmul.f32 %v75, %v568
  %v571 = vmul.f32 %v80, %v568
  %v572 = vmul.f32 %v85, %v568
  %v573 = vmul.f32 %v90, %v568
  %v574 = vmul.f32 %v95, %v568
  %v575 = vmul.f32 %v401, %v568
  %v583 = vrot.slane %v569, 3
  %v584 = vrot.slane %v570, 3
  %v585 = vsel %vm228, %v583, %v584
  %v586 = vrot.slane %v571, 3
  %v587 = vsel %vm228, %v584, %v586
  %v588 = vrot.slane %v572, 3
  %v589 = vsel %vm228, %v586, %v588
  %v590 = vrot.slane %v573, 3
  %v591 = vsel %vm228, %v588, %v590
  %v592 = vrot.slane %v574, 3
  %v593 = vsel %vm228, %v590, %v592
  %v594 = vrot.slane %v575, 3
  %v595 = vsel %vm228, %v592, %v594
  %v603 = vadd.f32 %v557, %v585
  %v604 = vadd.f32 %v558, %v587
  %v605 = vadd.f32 %v559, %v589
  %v606 = vadd.f32 %v560, %v591
  %v607 = vadd.f32 %v561, %v593
  %v608 = vadd.f32 %v562, %v595
  %v609 = vadd.f32 %v563, %v594
  %v610 = vunpack.c.l.bf16 %v56
  %v611 = vlaneseq
  %v612 = vshrl.u32 %v611, 7
  %v613 = vsub.s32 0, %v612
  %v614 = vrot.slane %v610, %v613
  %v615 = vmul.f32 %v70, %v614
  %v616 = vmul.f32 %v75, %v614
  %v617 = vmul.f32 %v80, %v614
  %v618 = vmul.f32 %v85, %v614
  %v619 = vmul.f32 %v90, %v614
  %v620 = vmul.f32 %v95, %v614
  %v621 = vmul.f32 %v401, %v614
  %v629 = vrot.slane %v615, 4
  %v630 = vrot.slane %v616, 4
  %v631 = vsel %vm275, %v629, %v630
  %v632 = vrot.slane %v617, 4
  %v633 = vsel %vm275, %v630, %v632
  %v634 = vrot.slane %v618, 4
  %v635 = vsel %vm275, %v632, %v634
  %v636 = vrot.slane %v619, 4
  %v637 = vsel %vm275, %v634, %v636
  %v638 = vrot.slane %v620, 4
  %v639 = vsel %vm275, %v636, %v638
  %v640 = vrot.slane %v621, 4
  %v641 = vsel %vm275, %v638, %v640
  %v649 = vadd.f32 %v603, %v631
  %v650 = vadd.f32 %v604, %v633
  %v651 = vadd.f32 %v605, %v635
  %v652 = vadd.f32 %v606, %v637
  %v653 = vadd.f32 %v607, %v639
  %v654 = vadd.f32 %v608, %v641
  %v655 = vadd.f32 %v609, %v640
  %v656 = vunpack.c.l.bf16 %v57
  %v657 = vlaneseq
  %v658 = vshrl.u32 %v657, 7
  %v659 = vsub.s32 0, %v658
  %v660 = vrot.slane %v656, %v659
  %v661 = vmul.f32 %v70, %v660
  %v662 = vmul.f32 %v75, %v660
  %v663 = vmul.f32 %v80, %v660
  %v664 = vmul.f32 %v85, %v660
  %v665 = vmul.f32 %v90, %v660
  %v666 = vmul.f32 %v95, %v660
  %v667 = vmul.f32 %v401, %v660
  %v675 = vrot.slane %v661, 5
  %v676 = vrot.slane %v662, 5
  %v677 = vsel %vm322, %v675, %v676
  %v678 = vrot.slane %v663, 5
  %v679 = vsel %vm322, %v676, %v678
  %v680 = vrot.slane %v664, 5
  %v681 = vsel %vm322, %v678, %v680
  %v682 = vrot.slane %v665, 5
  %v683 = vsel %vm322, %v680, %v682
  %v684 = vrot.slane %v666, 5
  %v685 = vsel %vm322, %v682, %v684
  %v686 = vrot.slane %v667, 5
  %v687 = vsel %vm322, %v684, %v686
  %v695 = vadd.f32 %v649, %v677
  %v696 = vadd.f32 %v650, %v679
  %v697 = vadd.f32 %v651, %v681
  %v698 = vadd.f32 %v652, %v683
  %v699 = vadd.f32 %v653, %v685
  %v700 = vadd.f32 %v654, %v687
  %v701 = vadd.f32 %v655, %v686
  %v702 = vunpack.c.l.bf16 %v58
  %v703 = vlaneseq
  %v704 = vshrl.u32 %v703, 7
  %v705 = vsub.s32 0, %v704
  %v706 = vrot.slane %v702, %v705
  %v707 = vmul.f32 %v70, %v706
  %v708 = vmul.f32 %v75, %v706
  %v709 = vmul.f32 %v80, %v706
  %v710 = vmul.f32 %v85, %v706
  %v711 = vmul.f32 %v90, %v706
  %v712 = vmul.f32 %v95, %v706
  %v713 = vmul.f32 %v401, %v706
  %v721 = vrot.slane %v707, 6
  %v722 = vrot.slane %v708, 6
  %v723 = vsel %vm369, %v721, %v722
  %v724 = vrot.slane %v709, 6
  %v725 = vsel %vm369, %v722, %v724
  %v726 = vrot.slane %v710, 6
  %v727 = vsel %vm369, %v724, %v726
  %v728 = vrot.slane %v711, 6
  %v729 = vsel %vm369, %v726, %v728
  %v730 = vrot.slane %v712, 6
  %v731 = vsel %vm369, %v728, %v730
  %v732 = vrot.slane %v713, 6
  %v733 = vsel %vm369, %v730, %v732
  %v741 = vadd.f32 %v695, %v723
  %v742 = vadd.f32 %v696, %v725
  %v743 = vadd.f32 %v697, %v727
  %v744 = vadd.f32 %v698, %v729
  %v745 = vadd.f32 %v699, %v731
  %v746 = vadd.f32 %v700, %v733
  %v747 = vadd.f32 %v701, %v732
  %749 = vset.pattern.permute.xlu0 0
  %750 = vperm.xlu0 %749, %v36
  %v751 = vpop.permute.xlu0 %750
  %754 = vset.pattern.permute.xlu0 0
  %755 = vperm.xlu0 %754, %v37
  %v756 = vpop.permute.xlu0 %755
  %759 = vset.pattern.permute.xlu0 0
  %760 = vperm.xlu0 %759, %v38
  %v761 = vpop.permute.xlu0 %760
  %764 = vset.pattern.permute.xlu0 0
  %765 = vperm.xlu0 %764, %v39
  %v766 = vpop.permute.xlu0 %765
  %769 = vset.pattern.permute.xlu0 0
  %770 = vperm.xlu0 %769, %v40
  %v771 = vpop.permute.xlu0 %770
  %774 = vset.pattern.permute.xlu0 0
  %775 = vperm.xlu0 %774, %v41
  %v776 = vpop.permute.xlu0 %775
  %779 = vset.pattern.permute.xlu0 0
  %780 = vperm.xlu0 %779, %v42
  %v781 = vpop.permute.xlu0 %780
  %v783 = vmul.f32 %v751, %v100
  %v784 = vmul.f32 %v756, %v100
  %v785 = vmul.f32 %v761, %v100
  %v786 = vmul.f32 %v766, %v100
  %v787 = vmul.f32 %v771, %v100
  %v788 = vmul.f32 %v776, %v100
  %v789 = vmul.f32 %v781, %v100
  %v790 = vadd.f32 %v783, 0.0
  %v791 = vadd.f32 %v784, 0.0
  %v792 = vadd.f32 %v785, 0.0
  %v793 = vadd.f32 %v786, 0.0
  %v794 = vadd.f32 %v787, 0.0
  %v795 = vadd.f32 %v788, 0.0
  %v796 = vadd.f32 %v789, 0.0
  %v797 = vmul.f32 %v751, %v119
  %v798 = vmul.f32 %v756, %v119
  %v799 = vmul.f32 %v761, %v119
  %v800 = vmul.f32 %v766, %v119
  %v801 = vmul.f32 %v771, %v119
  %v802 = vmul.f32 %v776, %v119
  %v803 = vmul.f32 %v781, %v119
  %v811 = vrot.slane %v797, 1
  %v812 = vrot.slane %v798, 1
  %v813 = vsel %vm134, %v811, %v812
  %v814 = vrot.slane %v799, 1
  %v815 = vsel %vm134, %v812, %v814
  %v816 = vrot.slane %v800, 1
  %v817 = vsel %vm134, %v814, %v816
  %v818 = vrot.slane %v801, 1
  %v819 = vsel %vm134, %v816, %v818
  %v820 = vrot.slane %v802, 1
  %v821 = vsel %vm134, %v818, %v820
  %v822 = vrot.slane %v803, 1
  %v823 = vsel %vm134, %v820, %v822
  %v831 = vadd.f32 %v790, %v813
  %v832 = vadd.f32 %v791, %v815
  %v833 = vadd.f32 %v792, %v817
  %v834 = vadd.f32 %v793, %v819
  %v835 = vadd.f32 %v794, %v821
  %v836 = vadd.f32 %v795, %v823
  %v837 = vadd.f32 %v796, %v822
  %v838 = vmul.f32 %v751, %v166
  %v839 = vmul.f32 %v756, %v166
  %v840 = vmul.f32 %v761, %v166
  %v841 = vmul.f32 %v766, %v166
  %v842 = vmul.f32 %v771, %v166
  %v843 = vmul.f32 %v776, %v166
  %v844 = vmul.f32 %v781, %v166
  %v852 = vrot.slane %v838, 2
  %v853 = vrot.slane %v839, 2
  %v854 = vsel %vm181, %v852, %v853
  %v855 = vrot.slane %v840, 2
  %v856 = vsel %vm181, %v853, %v855
  %v857 = vrot.slane %v841, 2
  %v858 = vsel %vm181, %v855, %v857
  %v859 = vrot.slane %v842, 2
  %v860 = vsel %vm181, %v857, %v859
  %v861 = vrot.slane %v843, 2
  %v862 = vsel %vm181, %v859, %v861
  %v863 = vrot.slane %v844, 2
  %v864 = vsel %vm181, %v861, %v863
  %v872 = vadd.f32 %v831, %v854
  %v873 = vadd.f32 %v832, %v856
  %v874 = vadd.f32 %v833, %v858
  %v875 = vadd.f32 %v834, %v860
  %v876 = vadd.f32 %v835, %v862
  %v877 = vadd.f32 %v836, %v864
  %v878 = vadd.f32 %v837, %v863
  %v879 = vmul.f32 %v751, %v213
  %v880 = vmul.f32 %v756, %v213
  %v881 = vmul.f32 %v761, %v213
  %v882 = vmul.f32 %v766, %v213
  %v883 = vmul.f32 %v771, %v213
  %v884 = vmul.f32 %v776, %v213
  %v885 = vmul.f32 %v781, %v213
  %v893 = vrot.slane %v879, 3
  %v894 = vrot.slane %v880, 3
  %v895 = vsel %vm228, %v893, %v894
  %v896 = vrot.slane %v881, 3
  %v897 = vsel %vm228, %v894, %v896
  %v898 = vrot.slane %v882, 3
  %v899 = vsel %vm228, %v896, %v898
  %v900 = vrot.slane %v883, 3
  %v901 = vsel %vm228, %v898, %v900
  %v902 = vrot.slane %v884, 3
  %v903 = vsel %vm228, %v900, %v902
  %v904 = vrot.slane %v885, 3
  %v905 = vsel %vm228, %v902, %v904
  %v913 = vadd.f32 %v872, %v895
  %v914 = vadd.f32 %v873, %v897
  %v915 = vadd.f32 %v874, %v899
  %v916 = vadd.f32 %v875, %v901
  %v917 = vadd.f32 %v876, %v903
  %v918 = vadd.f32 %v877, %v905
  %v919 = vadd.f32 %v878, %v904
  %v920 = vmul.f32 %v751, %v260
  %v921 = vmul.f32 %v756, %v260
  %v922 = vmul.f32 %v761, %v260
  %v923 = vmul.f32 %v766, %v260
  %v924 = vmul.f32 %v771, %v260
  %v925 = vmul.f32 %v776, %v260
  %v926 = vmul.f32 %v781, %v260
  %v934 = vrot.slane %v920, 4
  %v935 = vrot.slane %v921, 4
  %v936 = vsel %vm275, %v934, %v935
  %v937 = vrot.slane %v922, 4
  %v938 = vsel %vm275, %v935, %v937
  %v939 = vrot.slane %v923, 4
  %v940 = vsel %vm275, %v937, %v939
  %v941 = vrot.slane %v924, 4
  %v942 = vsel %vm275, %v939, %v941
  %v943 = vrot.slane %v925, 4
  %v944 = vsel %vm275, %v941, %v943
  %v945 = vrot.slane %v926, 4
  %v946 = vsel %vm275, %v943, %v945
  %v954 = vadd.f32 %v913, %v936
  %v955 = vadd.f32 %v914, %v938
  %v956 = vadd.f32 %v915, %v940
  %v957 = vadd.f32 %v916, %v942
  %v958 = vadd.f32 %v917, %v944
  %v959 = vadd.f32 %v918, %v946
  %v960 = vadd.f32 %v919, %v945
  %v961 = vmul.f32 %v751, %v307
  %v962 = vmul.f32 %v756, %v307
  %v963 = vmul.f32 %v761, %v307
  %v964 = vmul.f32 %v766, %v307
  %v965 = vmul.f32 %v771, %v307
  %v966 = vmul.f32 %v776, %v307
  %v967 = vmul.f32 %v781, %v307
  %v975 = vrot.slane %v961, 5
  %v976 = vrot.slane %v962, 5
  %v977 = vsel %vm322, %v975, %v976
  %v978 = vrot.slane %v963, 5
  %v979 = vsel %vm322, %v976, %v978
  %v980 = vrot.slane %v964, 5
  %v981 = vsel %vm322, %v978, %v980
  %v982 = vrot.slane %v965, 5
  %v983 = vsel %vm322, %v980, %v982
  %v984 = vrot.slane %v966, 5
  %v985 = vsel %vm322, %v982, %v984
  %v986 = vrot.slane %v967, 5
  %v987 = vsel %vm322, %v984, %v986
  %v995 = vadd.f32 %v954, %v977
  %v996 = vadd.f32 %v955, %v979
  %v997 = vadd.f32 %v956, %v981
  %v998 = vadd.f32 %v957, %v983
  %v999 = vadd.f32 %v958, %v985
  %v1000 = vadd.f32 %v959, %v987
  %v1001 = vadd.f32 %v960, %v986
  %v1002 = vmul.f32 %v751, %v354
  %v1003 = vmul.f32 %v756, %v354
  %v1004 = vmul.f32 %v761, %v354
  %v1005 = vmul.f32 %v766, %v354
  %v1006 = vmul.f32 %v771, %v354
  %v1007 = vmul.f32 %v776, %v354
  %v1008 = vmul.f32 %v781, %v354
  %v1016 = vrot.slane %v1002, 6
  %v1017 = vrot.slane %v1003, 6
  %v1018 = vsel %vm369, %v1016, %v1017
  %v1019 = vrot.slane %v1004, 6
  %v1020 = vsel %vm369, %v1017, %v1019
  %v1021 = vrot.slane %v1005, 6
  %v1022 = vsel %vm369, %v1019, %v1021
  %v1023 = vrot.slane %v1006, 6
  %v1024 = vsel %vm369, %v1021, %v1023
  %v1025 = vrot.slane %v1007, 6
  %v1026 = vsel %vm369, %v1023, %v1025
  %v1027 = vrot.slane %v1008, 6
  %v1028 = vsel %vm369, %v1025, %v1027
  %v1036 = vadd.f32 %v995, %v1018
  %v1037 = vadd.f32 %v996, %v1020
  %v1038 = vadd.f32 %v997, %v1022
  %v1039 = vadd.f32 %v998, %v1024
  %v1040 = vadd.f32 %v999, %v1026
  %v1041 = vadd.f32 %v1000, %v1028
  %v1042 = vadd.f32 %v1001, %v1027
  %1044 = vset.pattern.permute.xlu0 0
  %1045 = vperm.xlu0 %1044, %v43
  %v1046 = vpop.permute.xlu0 %1045
  %v1048 = vmul.f32 %v751, %v406
  %v1049 = vmul.f32 %v756, %v406
  %v1050 = vmul.f32 %v761, %v406
  %v1051 = vmul.f32 %v766, %v406
  %v1052 = vmul.f32 %v771, %v406
  %v1053 = vmul.f32 %v776, %v406
  %v1054 = vmul.f32 %v781, %v406
  %v1055 = vmul.f32 %v1046, %v406
  %v1064 = vrot.slane %v1048, 7
  %v1065 = vrot.slane %v1049, 7
  %v1066 = vsel %vm423, %v1064, %v1065
  %v1067 = vrot.slane %v1050, 7
  %v1068 = vsel %vm423, %v1065, %v1067
  %v1069 = vrot.slane %v1051, 7
  %v1070 = vsel %vm423, %v1067, %v1069
  %v1071 = vrot.slane %v1052, 7
  %v1072 = vsel %vm423, %v1069, %v1071
  %v1073 = vrot.slane %v1053, 7
  %v1074 = vsel %vm423, %v1071, %v1073
  %v1075 = vrot.slane %v1054, 7
  %v1076 = vsel %vm423, %v1073, %v1075
  %v1077 = vrot.slane %v1055, 7
  %v1078 = vsel %vm423, %v1075, %v1077
  %v1086 = vadd.f32 %v1036, %v1066
  %v1087 = vadd.f32 %v1037, %v1068
  %v1088 = vadd.f32 %v1038, %v1070
  %v1089 = vadd.f32 %v1039, %v1072
  %v1090 = vadd.f32 %v1040, %v1074
  %v1091 = vadd.f32 %v1041, %v1076
  %v1092 = vadd.f32 %v1042, %v1078
  %v1093 = vmul.f32 %v756, %v457
  %v1094 = vmul.f32 %v761, %v457
  %v1095 = vmul.f32 %v766, %v457
  %v1096 = vmul.f32 %v771, %v457
  %v1097 = vmul.f32 %v776, %v457
  %v1098 = vmul.f32 %v781, %v457
  %v1099 = vmul.f32 %v1046, %v457
  %v1100 = vadd.f32 %v1086, %v1093
  %v1101 = vadd.f32 %v1087, %v1094
  %v1102 = vadd.f32 %v1088, %v1095
  %v1103 = vadd.f32 %v1089, %v1096
  %v1104 = vadd.f32 %v1090, %v1097
  %v1105 = vadd.f32 %v1091, %v1098
  %v1106 = vadd.f32 %v1092, %v1099
  %v1107 = vmul.f32 %v756, %v476
  %v1108 = vmul.f32 %v761, %v476
  %v1109 = vmul.f32 %v766, %v476
  %v1110 = vmul.f32 %v771, %v476
  %v1111 = vmul.f32 %v776, %v476
  %v1112 = vmul.f32 %v781, %v476
  %v1113 = vmul.f32 %v1046, %v476
  %v1121 = vrot.slane %v1107, 1
  %v1122 = vrot.slane %v1108, 1
  %v1123 = vsel %vm134, %v1121, %v1122
  %v1124 = vrot.slane %v1109, 1
  %v1125 = vsel %vm134, %v1122, %v1124
  %v1126 = vrot.slane %v1110, 1
  %v1127 = vsel %vm134, %v1124, %v1126
  %v1128 = vrot.slane %v1111, 1
  %v1129 = vsel %vm134, %v1126, %v1128
  %v1130 = vrot.slane %v1112, 1
  %v1131 = vsel %vm134, %v1128, %v1130
  %v1132 = vrot.slane %v1113, 1
  %v1133 = vsel %vm134, %v1130, %v1132
  %v1141 = vadd.f32 %v1100, %v1123
  %v1142 = vadd.f32 %v1101, %v1125
  %v1143 = vadd.f32 %v1102, %v1127
  %v1144 = vadd.f32 %v1103, %v1129
  %v1145 = vadd.f32 %v1104, %v1131
  %v1146 = vadd.f32 %v1105, %v1133
  %v1147 = vadd.f32 %v1106, %v1132
  %v1148 = vmul.f32 %v756, %v522
  %v1149 = vmul.f32 %v761, %v522
  %v1150 = vmul.f32 %v766, %v522
  %v1151 = vmul.f32 %v771, %v522
  %v1152 = vmul.f32 %v776, %v522
  %v1153 = vmul.f32 %v781, %v522
  %v1154 = vmul.f32 %v1046, %v522
  %v1162 = vrot.slane %v1148, 2
  %v1163 = vrot.slane %v1149, 2
  %v1164 = vsel %vm181, %v1162, %v1163
  %v1165 = vrot.slane %v1150, 2
  %v1166 = vsel %vm181, %v1163, %v1165
  %v1167 = vrot.slane %v1151, 2
  %v1168 = vsel %vm181, %v1165, %v1167
  %v1169 = vrot.slane %v1152, 2
  %v1170 = vsel %vm181, %v1167, %v1169
  %v1171 = vrot.slane %v1153, 2
  %v1172 = vsel %vm181, %v1169, %v1171
  %v1173 = vrot.slane %v1154, 2
  %v1174 = vsel %vm181, %v1171, %v1173
  %v1182 = vadd.f32 %v1141, %v1164
  %v1183 = vadd.f32 %v1142, %v1166
  %v1184 = vadd.f32 %v1143, %v1168
  %v1185 = vadd.f32 %v1144, %v1170
  %v1186 = vadd.f32 %v1145, %v1172
  %v1187 = vadd.f32 %v1146, %v1174
  %v1188 = vadd.f32 %v1147, %v1173
  %v1189 = vmul.f32 %v756, %v568
  %v1190 = vmul.f32 %v761, %v568
  %v1191 = vmul.f32 %v766, %v568
  %v1192 = vmul.f32 %v771, %v568
  %v1193 = vmul.f32 %v776, %v568
  %v1194 = vmul.f32 %v781, %v568
  %v1195 = vmul.f32 %v1046, %v568
  %v1203 = vrot.slane %v1189, 3
  %v1204 = vrot.slane %v1190, 3
  %v1205 = vsel %vm228, %v1203, %v1204
  %v1206 = vrot.slane %v1191, 3
  %v1207 = vsel %vm228, %v1204, %v1206
  %v1208 = vrot.slane %v1192, 3
  %v1209 = vsel %vm228, %v1206, %v1208
  %v1210 = vrot.slane %v1193, 3
  %v1211 = vsel %vm228, %v1208, %v1210
  %v1212 = vrot.slane %v1194, 3
  %v1213 = vsel %vm228, %v1210, %v1212
  %v1214 = vrot.slane %v1195, 3
  %v1215 = vsel %vm228, %v1212, %v1214
  %v1223 = vadd.f32 %v1182, %v1205
  %v1224 = vadd.f32 %v1183, %v1207
  %v1225 = vadd.f32 %v1184, %v1209
  %v1226 = vadd.f32 %v1185, %v1211
  %v1227 = vadd.f32 %v1186, %v1213
  %v1228 = vadd.f32 %v1187, %v1215
  %v1229 = vadd.f32 %v1188, %v1214
  %v1230 = vmul.f32 %v756, %v614
  %v1231 = vmul.f32 %v761, %v614
  %v1232 = vmul.f32 %v766, %v614
  %v1233 = vmul.f32 %v771, %v614
  %v1234 = vmul.f32 %v776, %v614
  %v1235 = vmul.f32 %v781, %v614
  %v1236 = vmul.f32 %v1046, %v614
  %v1244 = vrot.slane %v1230, 4
  %v1245 = vrot.slane %v1231, 4
  %v1246 = vsel %vm275, %v1244, %v1245
  %v1247 = vrot.slane %v1232, 4
  %v1248 = vsel %vm275, %v1245, %v1247
  %v1249 = vrot.slane %v1233, 4
  %v1250 = vsel %vm275, %v1247, %v1249
  %v1251 = vrot.slane %v1234, 4
  %v1252 = vsel %vm275, %v1249, %v1251
  %v1253 = vrot.slane %v1235, 4
  %v1254 = vsel %vm275, %v1251, %v1253
  %v1255 = vrot.slane %v1236, 4
  %v1256 = vsel %vm275, %v1253, %v1255
  %v1264 = vadd.f32 %v1223, %v1246
  %v1265 = vadd.f32 %v1224, %v1248
  %v1266 = vadd.f32 %v1225, %v1250
  %v1267 = vadd.f32 %v1226, %v1252
  %v1268 = vadd.f32 %v1227, %v1254
  %v1269 = vadd.f32 %v1228, %v1256
  %v1270 = vadd.f32 %v1229, %v1255
  %v1271 = vmul.f32 %v756, %v660
  %v1272 = vmul.f32 %v761, %v660
  %v1273 = vmul.f32 %v766, %v660
  %v1274 = vmul.f32 %v771, %v660
  %v1275 = vmul.f32 %v776, %v660
  %v1276 = vmul.f32 %v781, %v660
  %v1277 = vmul.f32 %v1046, %v660
  %v1285 = vrot.slane %v1271, 5
  %v1286 = vrot.slane %v1272, 5
  %v1287 = vsel %vm322, %v1285, %v1286
  %v1288 = vrot.slane %v1273, 5
  %v1289 = vsel %vm322, %v1286, %v1288
  %v1290 = vrot.slane %v1274, 5
  %v1291 = vsel %vm322, %v1288, %v1290
  %v1292 = vrot.slane %v1275, 5
  %v1293 = vsel %vm322, %v1290, %v1292
  %v1294 = vrot.slane %v1276, 5
  %v1295 = vsel %vm322, %v1292, %v1294
  %v1296 = vrot.slane %v1277, 5
  %v1297 = vsel %vm322, %v1294, %v1296
  %v1305 = vadd.f32 %v1264, %v1287
  %v1306 = vadd.f32 %v1265, %v1289
  %v1307 = vadd.f32 %v1266, %v1291
  %v1308 = vadd.f32 %v1267, %v1293
  %v1309 = vadd.f32 %v1268, %v1295
  %v1310 = vadd.f32 %v1269, %v1297
  %v1311 = vadd.f32 %v1270, %v1296
  %v1312 = vmul.f32 %v756, %v706
  %v1313 = vmul.f32 %v761, %v706
  %v1314 = vmul.f32 %v766, %v706
  %v1315 = vmul.f32 %v771, %v706
  %v1316 = vmul.f32 %v776, %v706
  %v1317 = vmul.f32 %v781, %v706
  %v1318 = vmul.f32 %v1046, %v706
  %v1326 = vrot.slane %v1312, 6
  %v1327 = vrot.slane %v1313, 6
  %v1328 = vsel %vm369, %v1326, %v1327
  %v1329 = vrot.slane %v1314, 6
  %v1330 = vsel %vm369, %v1327, %v1329
  %v1331 = vrot.slane %v1315, 6
  %v1332 = vsel %vm369, %v1329, %v1331
  %v1333 = vrot.slane %v1316, 6
  %v1334 = vsel %vm369, %v1331, %v1333
  %v1335 = vrot.slane %v1317, 6
  %v1336 = vsel %vm369, %v1333, %v1335
  %v1337 = vrot.slane %v1318, 6
  %v1338 = vsel %vm369, %v1335, %v1337
  %v1346 = vadd.f32 %v1305, %v1328
  %v1347 = vadd.f32 %v1306, %v1330
  %v1348 = vadd.f32 %v1307, %v1332
  %v1349 = vadd.f32 %v1308, %v1334
  %v1350 = vadd.f32 %v1309, %v1336
  %v1351 = vadd.f32 %v1310, %v1338
  %v1352 = vadd.f32 %v1311, %v1337
  %vm1353 = vcmask 130048
  %v1354 = vsel %vm1353, %v741, 0.0
  %v1355 = vsel %vm1353, %v742, 0.0
  %v1356 = vadd.f32 %v1354, %v1355
  %v1357 = vsel %vm1353, %v743, 0.0
  %v1358 = vadd.f32 %v1356, %v1357
  %v1359 = vsel %vm1353, %v744, 0.0
  %v1360 = vadd.f32 %v1358, %v1359
  %v1361 = vsel %vm1353, %v745, 0.0
  %v1362 = vadd.f32 %v1360, %v1361
  %v1363 = vsel %vm1353, %v746, 0.0
  %v1364 = vadd.f32 %v1362, %v1363
  %vm1365 = vcmask 123904
  %v1366 = vsel %vm1365, %v747, 0.0
  %v1367 = vadd.f32 %v1364, %v1366
  %v1368 = vrot.slane %v1367, 4
  %v1369 = vadd.f32 %v1367, %v1368
  %v1370 = vrot.slane %v1369, 2
  %v1371 = vadd.f32 %v1369, %v1370
  %v1372 = vrot.slane %v1371, 1
  %v1373 = vadd.f32 %v1371, %v1372
  %v1374 = vadd.f32 %v1373, 0.0
  %v1375 = vsel %vm1353, %v1346, 0.0
  %v1376 = vsel %vm1353, %v1347, 0.0
  %v1377 = vadd.f32 %v1375, %v1376
  %v1378 = vsel %vm1353, %v1348, 0.0
  %v1379 = vadd.f32 %v1377, %v1378
  %v1380 = vsel %vm1353, %v1349, 0.0
  %v1381 = vadd.f32 %v1379, %v1380
  %v1382 = vsel %vm1353, %v1350, 0.0
  %v1383 = vadd.f32 %v1381, %v1382
  %v1384 = vsel %vm1353, %v1351, 0.0
  %v1385 = vadd.f32 %v1383, %v1384
  %v1386 = vsel %vm1365, %v1352, 0.0
  %v1387 = vadd.f32 %v1385, %v1386
  %v1388 = vrot.slane %v1387, 4
  %v1389 = vadd.f32 %v1387, %v1388
  %v1390 = vrot.slane %v1389, 2
  %v1391 = vadd.f32 %v1389, %v1390
  %v1392 = vrot.slane %v1391, 1
  %v1393 = vadd.f32 %v1391, %v1392
  %v1394 = vadd.f32 %v1374, %v1393
  %v1395 = vmul.f32 %v741, %v741
  %v1396 = vmul.f32 %v742, %v742
  %v1397 = vmul.f32 %v743, %v743
  %v1398 = vmul.f32 %v744, %v744
  %v1399 = vmul.f32 %v745, %v745
  %v1400 = vmul.f32 %v746, %v746
  %v1401 = vmul.f32 %v747, %v747
  %v1402 = vsel %vm1353, %v1395, 0.0
  %v1403 = vsel %vm1353, %v1396, 0.0
  %v1404 = vadd.f32 %v1402, %v1403
  %v1405 = vsel %vm1353, %v1397, 0.0
  %v1406 = vadd.f32 %v1404, %v1405
  %v1407 = vsel %vm1353, %v1398, 0.0
  %v1408 = vadd.f32 %v1406, %v1407
  %v1409 = vsel %vm1353, %v1399, 0.0
  %v1410 = vadd.f32 %v1408, %v1409
  %v1411 = vsel %vm1353, %v1400, 0.0
  %v1412 = vadd.f32 %v1410, %v1411
  %v1413 = vsel %vm1365, %v1401, 0.0
  %v1414 = vadd.f32 %v1412, %v1413
  %v1415 = vrot.slane %v1414, 4
  %v1416 = vadd.f32 %v1414, %v1415
  %v1417 = vrot.slane %v1416, 2
  %v1418 = vadd.f32 %v1416, %v1417
  %v1419 = vrot.slane %v1418, 1
  %v1420 = vadd.f32 %v1418, %v1419
  %v1421 = vadd.f32 %v1420, 0.0
  %v1422 = vmul.f32 %v1346, %v1346
  %v1423 = vmul.f32 %v1347, %v1347
  %v1424 = vmul.f32 %v1348, %v1348
  %v1425 = vmul.f32 %v1349, %v1349
  %v1426 = vmul.f32 %v1350, %v1350
  %v1427 = vmul.f32 %v1351, %v1351
  %v1428 = vmul.f32 %v1352, %v1352
  %v1429 = vsel %vm1353, %v1422, 0.0
  %v1430 = vsel %vm1353, %v1423, 0.0
  %v1431 = vadd.f32 %v1429, %v1430
  %v1432 = vsel %vm1353, %v1424, 0.0
  %v1433 = vadd.f32 %v1431, %v1432
  %v1434 = vsel %vm1353, %v1425, 0.0
  %v1435 = vadd.f32 %v1433, %v1434
  %v1436 = vsel %vm1353, %v1426, 0.0
  %v1437 = vadd.f32 %v1435, %v1436
  %v1438 = vsel %vm1353, %v1427, 0.0
  %v1439 = vadd.f32 %v1437, %v1438
  %v1440 = vsel %vm1365, %v1428, 0.0
  %v1441 = vadd.f32 %v1439, %v1440
  %v1442 = vrot.slane %v1441, 4
  %v1443 = vadd.f32 %v1441, %v1442
  %v1444 = vrot.slane %v1443, 2
  %v1445 = vadd.f32 %v1443, %v1444
  %v1446 = vrot.slane %v1445, 1
  %v1447 = vadd.f32 %v1445, %v1446
  %v1448 = vadd.f32 %v1421, %v1447
  %v1449 = vmul.f32 %v1394, 0.01
  %v1450 = vmul.f32 %v1448, 0.01
  %v1451 = vmul.f32 %v1449, %v1449
  %v1452 = vsub.f32 %v1450, %v1451
  %v1453 = vmax.f32 %v1452, 0.0
  %v1454 = vadd.f32 %v1453, 1e-05
  %v1455 = vrsqrt.pop %v1454
  %v1456 = vmul.f32 %v59, %v1455
  %v1457 = vmul.f32 %v1449, %v1456
  %v1458 = vsub.f32 %v60, %v1457
  %v1460 = vlaneseq
  %v1461 = vshrl.u32 %v1460, 7
  %v1462 = vsub.s32 0, %v1461
  %v1463 = vrot.slane %v1456, %v1462
  %v1465 = vmul.f32 %v741, %v1463
  %v1466 = vmul.f32 %v742, %v1463
  %v1467 = vmul.f32 %v743, %v1463
  %v1468 = vmul.f32 %v744, %v1463
  %v1469 = vmul.f32 %v745, %v1463
  %v1470 = vmul.f32 %v746, %v1463
  %v1471 = vmul.f32 %v747, %v1463
  %v1473 = vlaneseq
  %v1474 = vshrl.u32 %v1473, 7
  %v1475 = vsub.s32 0, %v1474
  %v1476 = vrot.slane %v1458, %v1475
  %v1478 = vadd.f32 %v1465, %v1476
  %v1479 = vadd.f32 %v1466, %v1476
  %v1480 = vadd.f32 %v1467, %v1476
  %v1481 = vadd.f32 %v1468, %v1476
  %v1482 = vadd.f32 %v1469, %v1476
  %v1483 = vadd.f32 %v1470, %v1476
  %v1484 = vadd.f32 %v1471, %v1476
  %v1485 = vmax.f32 %v1478, 0.0
  %v1486 = vmax.f32 %v1479, 0.0
  %v1487 = vmax.f32 %v1480, 0.0
  %v1488 = vmax.f32 %v1481, 0.0
  %v1489 = vmax.f32 %v1482, 0.0
  %v1490 = vmax.f32 %v1483, 0.0
  %v1491 = vmax.f32 %v1484, 0.0
  %v1492 = vmul.f32 %v1346, %v1463
  %v1493 = vmul.f32 %v1347, %v1463
  %v1494 = vmul.f32 %v1348, %v1463
  %v1495 = vmul.f32 %v1349, %v1463
  %v1496 = vmul.f32 %v1350, %v1463
  %v1497 = vmul.f32 %v1351, %v1463
  %v1498 = vmul.f32 %v1352, %v1463
  %v1499 = vadd.f32 %v1492, %v1476
  %v1500 = vadd.f32 %v1493, %v1476
  %v1501 = vadd.f32 %v1494, %v1476
  %v1502 = vadd.f32 %v1495, %v1476
  %v1503 = vadd.f32 %v1496, %v1476
  %v1504 = vadd.f32 %v1497, %v1476
  %v1505 = vadd.f32 %v1498, %v1476
  %v1506 = vmax.f32 %v1499, 0.0
  %v1507 = vmax.f32 %v1500, 0.0
  %v1508 = vmax.f32 %v1501, 0.0
  %v1509 = vmax.f32 %v1502, 0.0
  %v1510 = vmax.f32 %v1503, 0.0
  %v1511 = vmax.f32 %v1504, 0.0
  %v1512 = vmax.f32 %v1505, 0.0
  %v1513 = vld [vmem:[%s4] sm:$0xf]
  %v1514 = vld [vmem:[%s4 + $0x4] sm:$0xf]
  %v1515 = vld [vmem:[%s4 + $0x8] sm:$0xf]
  %v1516 = vld [vmem:[%s4 + $0xc] sm:$0xf]
  %v1517 = vld [vmem:[%s4 + $0x10] sm:$0xf]
  %v1518 = vld [vmem:[%s4 + $0x14] sm:$0xf]
  %v1519 = vld [vmem:[%s5] sm:$0x1]
  %v1520 = vld [vmem:[%s6] sm:$0x1]
  %v1521 = vpack.c.bf16 %v1486, %v1485
  %v1522 = vpack.c.bf16 %v1488, %v1487
  %v1523 = vpack.c.bf16 %v1490, %v1489
  %v1524 = vpack.c.bf16 %v1491, %v1491
  %vm1525 = vsmask.f32 7424
  %v1527 = vshrl.u32 %v1521, 16
  %v1529 = vshll.u32 %v1521, 16
  %v1531 = vrot.slane %v1529, 1
  %v1532 = vor.u32 %v1527, %v1531
  %v1534 = vshll.u32 %v1522, 16
  %v1536 = vrot.slane %v1534, 1
  %v1537 = vsel %vm1525, %v1532, %v1536
  %v1538 = vshrl.u32 %v1522, 16
  %v1540 = vor.u32 %v1538, %v1536
  %v1542 = vshll.u32 %v1523, 16
  %v1544 = vrot.slane %v1542, 1
  %v1545 = vsel %vm1525, %v1540, %v1544
  %v1546 = vshrl.u32 %v1523, 16
  %v1548 = vor.u32 %v1546, %v1544
  %v1550 = vshll.u32 %v1524, 16
  %v1552 = vrot.slane %v1550, 1
  %v1553 = vsel %vm1525, %v1548, %v1552
  %v1556 = vunpack.c.l.b16 %v1515
  %v1557 = vunpack.c.l.b16 %v1516
  %v1558 = vpack.c.b16 %v1557, %v1556
  %v1561 = vsel %vm1353, %v1537, 0
  %v1564 = vsel %vm1353, %v1545, 0
  %v1567 = vsel %vm1353, %v1553, 0
  %1569 = vmatprep.subr.bf16.mxu0 0
  %1570 = vmatpush1.bf16.msra.mxu0 %v1558
  %1571 = vmatprep.subr.bf16.mxu0 0
  %1572 = vmatpush1.bf16.msra.mxu0 0
  %1573 = vmatprep.subr.bf16.mxu0 0
  %1574 = vmatpush1.bf16.msra.mxu0 0
  %1575 = vmatprep.subr.bf16.mxu0 0
  %1576 = vmatpush1.bf16.msra.mxu0 0
  %1577 = vmatprep.subr.bf16.mxu0 0
  %1578 = vmatpush1.bf16.msra.mxu0 0
  %1579 = vmatprep.subr.bf16.mxu0 0
  %1580 = vmatpush1.bf16.msra.mxu0 0
  %1581 = vmatprep.subr.bf16.mxu0 0
  %1582 = vmatpush1.bf16.msra.mxu0 0
  %1583 = vmatprep.subr.bf16.mxu0 0
  %1584 = vmatpush1.bf16.msra.mxu0 0
  %1585 = vmatprep.subr.bf16.mxu0 0
  %1586 = vmatpush1.bf16.msra.mxu0 0
  %1587 = vmatprep.subr.bf16.mxu0 0
  %1588 = vmatpush1.bf16.msra.mxu0 0
  %1589 = vmatprep.subr.bf16.mxu0 0
  %1590 = vmatpush1.bf16.msra.mxu0 0
  %1591 = vmatprep.subr.bf16.mxu0 0
  %1592 = vmatpush1.bf16.msra.mxu0 0
  %1593 = vmatprep.subr.bf16.mxu0 0
  %1594 = vmatpush1.bf16.msra.mxu0 0
  %1595 = vmatprep.subr.bf16.mxu0 0
  %1596 = vmatpush1.bf16.msra.mxu0 0
  %1597 = vmatprep.subr.bf16.mxu0 0
  %1598 = vmatpush1.bf16.msra.mxu0 0
  %1599 = vmatprep.subr.bf16.mxu0 0
  %1600 = vmatpush1.bf16.msra.mxu0 0
  %1601 = vmatprep.mubr.bf16.mxu0 0
  %1602 = vmatmul.mubr.bf16.gmra.mrb[0].mxu0 %v1561
  %v1603 = vpop.f32.mrb[0].mxu0
  %v1604 = vadd.f32 0.0, %v1603
  %v1605 = vpop.f32.mrb[0].mxu0
  %v1606 = vpop.f32.mrb[0].mxu0
  %v1607 = vadd.f32 0.0, %v1606
  %v1608 = vpop.f32.mrb[0].mxu0
  %1609 = vmatprep.mubr.bf16.mxu0 0
  %1610 = vmatmul.mubr.bf16.gmra.mrb[0].mxu0 %v1564
  %v1611 = vpop.f32.mrb[0].mxu0
  %v1612 = vadd.f32 0.0, %v1611
  %v1613 = vpop.f32.mrb[0].mxu0
  %v1614 = vpop.f32.mrb[0].mxu0
  %v1615 = vadd.f32 0.0, %v1614
  %v1616 = vpop.f32.mrb[0].mxu0
  %1617 = vmatprep.mubr.bf16.mxu0 0
  %1618 = vmatmul.mubr.bf16.gmra.mrb[0].mxu0 %v1567
  %v1619 = vpop.f32.mrb[0].mxu0
  %v1620 = vadd.f32 0.0, %v1619
  %v1621 = vpop.f32.mrb[0].mxu0
  %v1622 = vpop.f32.mrb[0].mxu0
  %v1623 = vadd.f32 0.0, %v1622
  %v1624 = vpop.f32.mrb[0].mxu0
  %1625 = vdwg.mxu0
  %v1628 = vunpack.c.l.b16 %v1513
  %v1629 = vunpack.c.l.b16 %v1514
  %v1630 = vpack.c.b16 %v1629, %v1628
  %v1632 = vsel %vm1353, %v1521, 0
  %v1634 = vsel %vm1353, %v1522, 0
  %v1636 = vsel %vm1353, %v1523, 0
  %1638 = vmatprep.subr.bf16.mxu0 0
  %1639 = vmatpush1.bf16.msra.mxu0 %v1630
  %1640 = vmatprep.subr.bf16.mxu0 0
  %1641 = vmatpush1.bf16.msra.mxu0 0
  %1642 = vmatprep.subr.bf16.mxu0 0
  %1643 = vmatpush1.bf16.msra.mxu0 0
  %1644 = vmatprep.subr.bf16.mxu0 0
  %1645 = vmatpush1.bf16.msra.mxu0 0
  %1646 = vmatprep.subr.bf16.mxu0 0
  %1647 = vmatpush1.bf16.msra.mxu0 0
  %1648 = vmatprep.subr.bf16.mxu0 0
  %1649 = vmatpush1.bf16.msra.mxu0 0
  %1650 = vmatprep.subr.bf16.mxu0 0
  %1651 = vmatpush1.bf16.msra.mxu0 0
  %1652 = vmatprep.subr.bf16.mxu0 0
  %1653 = vmatpush1.bf16.msra.mxu0 0
  %1654 = vmatprep.subr.bf16.mxu0 0
  %1655 = vmatpush1.bf16.msra.mxu0 0
  %1656 = vmatprep.subr.bf16.mxu0 0
  %1657 = vmatpush1.bf16.msra.mxu0 0
  %1658 = vmatprep.subr.bf16.mxu0 0
  %1659 = vmatpush1.bf16.msra.mxu0 0
  %1660 = vmatprep.subr.bf16.mxu0 0
  %1661 = vmatpush1.bf16.msra.mxu0 0
  %1662 = vmatprep.subr.bf16.mxu0 0
  %1663 = vmatpush1.bf16.msra.mxu0 0
  %1664 = vmatprep.subr.bf16.mxu0 0
  %1665 = vmatpush1.bf16.msra.mxu0 0
  %1666 = vmatprep.subr.bf16.mxu0 0
  %1667 = vmatpush1.bf16.msra.mxu0 0
  %1668 = vmatprep.subr.bf16.mxu0 0
  %1669 = vmatpush1.bf16.msra.mxu0 0
  %1670 = vmatprep.mubr.bf16.mxu0 0
  %1671 = vmatmul.mubr.bf16.gmra.mrb[0].mxu0 %v1632
  %v1672 = vpop.f32.mrb[0].mxu0
  %v1673 = vadd.f32 %v1604, %v1672
  %v1674 = vpop.f32.mrb[0].mxu0
  %v1675 = vpop.f32.mrb[0].mxu0
  %v1676 = vadd.f32 %v1607, %v1675
  %v1677 = vpop.f32.mrb[0].mxu0
  %1678 = vmatprep.mubr.bf16.mxu0 0
  %1679 = vmatmul.mubr.bf16.gmra.mrb[0].mxu0 %v1634
  %v1680 = vpop.f32.mrb[0].mxu0
  %v1681 = vadd.f32 %v1612, %v1680
  %v1682 = vpop.f32.mrb[0].mxu0
  %v1683 = vpop.f32.mrb[0].mxu0
  %v1684 = vadd.f32 %v1615, %v1683
  %v1685 = vpop.f32.mrb[0].mxu0
  %1686 = vmatprep.mubr.bf16.mxu0 0
  %1687 = vmatmul.mubr.bf16.gmra.mrb[0].mxu0 %v1636
  %v1688 = vpop.f32.mrb[0].mxu0
  %v1689 = vadd.f32 %v1620, %v1688
  %v1690 = vpop.f32.mrb[0].mxu0
  %v1691 = vpop.f32.mrb[0].mxu0
  %v1692 = vadd.f32 %v1623, %v1691
  %v1693 = vpop.f32.mrb[0].mxu0
  %1694 = vdwg.mxu0
  %vm1699 = vcmask 1046528
  %v1700 = vrot.slane %v1521, 1
  %v1701 = vrot.slane %v1522, 1
  %v1702 = vsel %vm1699, %v1700, %v1701
  %v1703 = vrot.slane %v1523, 1
  %v1704 = vsel %vm1699, %v1701, %v1703
  %v1705 = vrot.slane %v1524, 1
  %v1706 = vsel %vm1699, %v1703, %v1705
  %v1709 = vunpack.c.l.b16 %v1517
  %v1710 = vunpack.c.l.b16 %v1518
  %v1711 = vpack.c.b16 %v1710, %v1709
  %v1714 = vsel %vm1353, %v1702, 0
  %v1717 = vsel %vm1353, %v1704, 0
  %v1720 = vsel %vm1353, %v1706, 0
  %1722 = vmatprep.subr.bf16.mxu0 0
  %1723 = vmatpush1.bf16.msra.mxu0 %v1711
  %1724 = vmatprep.subr.bf16.mxu0 0
  %1725 = vmatpush1.bf16.msra.mxu0 0
  %1726 = vmatprep.subr.bf16.mxu0 0
  %1727 = vmatpush1.bf16.msra.mxu0 0
  %1728 = vmatprep.subr.bf16.mxu0 0
  %1729 = vmatpush1.bf16.msra.mxu0 0
  %1730 = vmatprep.subr.bf16.mxu0 0
  %1731 = vmatpush1.bf16.msra.mxu0 0
  %1732 = vmatprep.subr.bf16.mxu0 0
  %1733 = vmatpush1.bf16.msra.mxu0 0
  %1734 = vmatprep.subr.bf16.mxu0 0
  %1735 = vmatpush1.bf16.msra.mxu0 0
  %1736 = vmatprep.subr.bf16.mxu0 0
  %1737 = vmatpush1.bf16.msra.mxu0 0
  %1738 = vmatprep.subr.bf16.mxu0 0
  %1739 = vmatpush1.bf16.msra.mxu0 0
  %1740 = vmatprep.subr.bf16.mxu0 0
  %1741 = vmatpush1.bf16.msra.mxu0 0
  %1742 = vmatprep.subr.bf16.mxu0 0
  %1743 = vmatpush1.bf16.msra.mxu0 0
  %1744 = vmatprep.subr.bf16.mxu0 0
  %1745 = vmatpush1.bf16.msra.mxu0 0
  %1746 = vmatprep.subr.bf16.mxu0 0
  %1747 = vmatpush1.bf16.msra.mxu0 0
  %1748 = vmatprep.subr.bf16.mxu0 0
  %1749 = vmatpush1.bf16.msra.mxu0 0
  %1750 = vmatprep.subr.bf16.mxu0 0
  %1751 = vmatpush1.bf16.msra.mxu0 0
  %1752 = vmatprep.subr.bf16.mxu0 0
  %1753 = vmatpush1.bf16.msra.mxu0 0
  %1754 = vmatprep.mubr.bf16.mxu0 0
  %1755 = vmatmul.mubr.bf16.gmra.mrb[0].mxu0 %v1714
  %v1756 = vpop.f32.mrb[0].mxu0
  %v1757 = vadd.f32 0.0, %v1756
  %v1758 = vpop.f32.mrb[0].mxu0
  %v1759 = vpop.f32.mrb[0].mxu0
  %v1760 = vadd.f32 0.0, %v1759
  %v1761 = vpop.f32.mrb[0].mxu0
  %1762 = vmatprep.mubr.bf16.mxu0 0
  %1763 = vmatmul.mubr.bf16.gmra.mrb[0].mxu0 %v1717
  %v1764 = vpop.f32.mrb[0].mxu0
  %v1765 = vadd.f32 0.0, %v1764
  %v1766 = vpop.f32.mrb[0].mxu0
  %v1767 = vpop.f32.mrb[0].mxu0
  %v1768 = vadd.f32 0.0, %v1767
  %v1769 = vpop.f32.mrb[0].mxu0
  %1770 = vmatprep.mubr.bf16.mxu0 0
  %1771 = vmatmul.mubr.bf16.gmra.mrb[0].mxu0 %v1720
  %v1772 = vpop.f32.mrb[0].mxu0
  %v1773 = vadd.f32 0.0, %v1772
  %v1774 = vpop.f32.mrb[0].mxu0
  %v1775 = vpop.f32.mrb[0].mxu0
  %v1776 = vadd.f32 0.0, %v1775
  %v1777 = vpop.f32.mrb[0].mxu0
  %1778 = vdwg.mxu0
  %v1779 = vadd.f32 %v1673, %v1757
  %v1780 = vadd.f32 %v1676, %v1760
  %v1781 = vadd.f32 %v1681, %v1765
  %v1782 = vadd.f32 %v1684, %v1768
  %v1783 = vadd.f32 %v1689, %v1773
  %v1784 = vadd.f32 %v1692, %v1776
  %v1785 = vpack.c.bf16 %v1507, %v1506
  %v1786 = vpack.c.bf16 %v1509, %v1508
  %v1787 = vpack.c.bf16 %v1511, %v1510
  %v1788 = vpack.c.bf16 %v1512, %v1512
  %v1790 = vshrl.u32 %v1785, 16
  %v1792 = vshll.u32 %v1785, 16
  %v1794 = vrot.slane %v1792, 1
  %v1795 = vor.u32 %v1790, %v1794
  %v1797 = vshll.u32 %v1786, 16
  %v1799 = vrot.slane %v1797, 1
  %v1800 = vsel %vm1525, %v1795, %v1799
  %v1801 = vshrl.u32 %v1786, 16
  %v1803 = vor.u32 %v1801, %v1799
  %v1805 = vshll.u32 %v1787, 16
  %v1807 = vrot.slane %v1805, 1
  %v1808 = vsel %vm1525, %v1803, %v1807
  %v1809 = vshrl.u32 %v1787, 16
  %v1811 = vor.u32 %v1809, %v1807
  %v1813 = vshll.u32 %v1788, 16
  %v1815 = vrot.slane %v1813, 1
  %v1816 = vsel %vm1525, %v1811, %v1815
  %v1818 = vsel %vm1353, %v1800, 0
  %v1821 = vsel %vm1353, %v1808, 0
  %v1824 = vsel %vm1353, %v1816, 0
  %1826 = vmatprep.subr.bf16.mxu0 0
  %1827 = vmatpush1.bf16.msra.mxu0 %v1558
  %1828 = vmatprep.subr.bf16.mxu0 0
  %1829 = vmatpush1.bf16.msra.mxu0 0
  %1830 = vmatprep.subr.bf16.mxu0 0
  %1831 = vmatpush1.bf16.msra.mxu0 0
  %1832 = vmatprep.subr.bf16.mxu0 0
  %1833 = vmatpush1.bf16.msra.mxu0 0
  %1834 = vmatprep.subr.bf16.mxu0 0
  %1835 = vmatpush1.bf16.msra.mxu0 0
  %1836 = vmatprep.subr.bf16.mxu0 0
  %1837 = vmatpush1.bf16.msra.mxu0 0
  %1838 = vmatprep.subr.bf16.mxu0 0
  %1839 = vmatpush1.bf16.msra.mxu0 0
  %1840 = vmatprep.subr.bf16.mxu0 0
  %1841 = vmatpush1.bf16.msra.mxu0 0
  %1842 = vmatprep.subr.bf16.mxu0 0
  %1843 = vmatpush1.bf16.msra.mxu0 0
  %1844 = vmatprep.subr.bf16.mxu0 0
  %1845 = vmatpush1.bf16.msra.mxu0 0
  %1846 = vmatprep.subr.bf16.mxu0 0
  %1847 = vmatpush1.bf16.msra.mxu0 0
  %1848 = vmatprep.subr.bf16.mxu0 0
  %1849 = vmatpush1.bf16.msra.mxu0 0
  %1850 = vmatprep.subr.bf16.mxu0 0
  %1851 = vmatpush1.bf16.msra.mxu0 0
  %1852 = vmatprep.subr.bf16.mxu0 0
  %1853 = vmatpush1.bf16.msra.mxu0 0
  %1854 = vmatprep.subr.bf16.mxu0 0
  %1855 = vmatpush1.bf16.msra.mxu0 0
  %1856 = vmatprep.subr.bf16.mxu0 0
  %1857 = vmatpush1.bf16.msra.mxu0 0
  %1858 = vmatprep.mubr.bf16.mxu0 0
  %1859 = vmatmul.mubr.bf16.gmra.mrb[0].mxu0 %v1818
  %v1860 = vpop.f32.mrb[0].mxu0
  %v1861 = vadd.f32 0.0, %v1860
  %v1862 = vpop.f32.mrb[0].mxu0
  %v1863 = vpop.f32.mrb[0].mxu0
  %v1864 = vadd.f32 0.0, %v1863
  %v1865 = vpop.f32.mrb[0].mxu0
  %1866 = vmatprep.mubr.bf16.mxu0 0
  %1867 = vmatmul.mubr.bf16.gmra.mrb[0].mxu0 %v1821
  %v1868 = vpop.f32.mrb[0].mxu0
  %v1869 = vadd.f32 0.0, %v1868
  %v1870 = vpop.f32.mrb[0].mxu0
  %v1871 = vpop.f32.mrb[0].mxu0
  %v1872 = vadd.f32 0.0, %v1871
  %v1873 = vpop.f32.mrb[0].mxu0
  %1874 = vmatprep.mubr.bf16.mxu0 0
  %1875 = vmatmul.mubr.bf16.gmra.mrb[0].mxu0 %v1824
  %v1876 = vpop.f32.mrb[0].mxu0
  %v1877 = vadd.f32 0.0, %v1876
  %v1878 = vpop.f32.mrb[0].mxu0
  %v1879 = vpop.f32.mrb[0].mxu0
  %v1880 = vadd.f32 0.0, %v1879
  %v1881 = vpop.f32.mrb[0].mxu0
  %1882 = vdwg.mxu0
  %v1883 = vsel %vm1353, %v1785, 0
  %v1885 = vsel %vm1353, %v1786, 0
  %v1887 = vsel %vm1353, %v1787, 0
  %1889 = vmatprep.subr.bf16.mxu0 0
  %1890 = vmatpush1.bf16.msra.mxu0 %v1630
  %1891 = vmatprep.subr.bf16.mxu0 0
  %1892 = vmatpush1.bf16.msra.mxu0 0
  %1893 = vmatprep.subr.bf16.mxu0 0
  %1894 = vmatpush1.bf16.msra.mxu0 0
  %1895 = vmatprep.subr.bf16.mxu0 0
  %1896 = vmatpush1.bf16.msra.mxu0 0
  %1897 = vmatprep.subr.bf16.mxu0 0
  %1898 = vmatpush1.bf16.msra.mxu0 0
  %1899 = vmatprep.subr.bf16.mxu0 0
  %1900 = vmatpush1.bf16.msra.mxu0 0
  %1901 = vmatprep.subr.bf16.mxu0 0
  %1902 = vmatpush1.bf16.msra.mxu0 0
  %1903 = vmatprep.subr.bf16.mxu0 0
  %1904 = vmatpush1.bf16.msra.mxu0 0
  %1905 = vmatprep.subr.bf16.mxu0 0
  %1906 = vmatpush1.bf16.msra.mxu0 0
  %1907 = vmatprep.subr.bf16.mxu0 0
  %1908 = vmatpush1.bf16.msra.mxu0 0
  %1909 = vmatprep.subr.bf16.mxu0 0
  %1910 = vmatpush1.bf16.msra.mxu0 0
  %1911 = vmatprep.subr.bf16.mxu0 0
  %1912 = vmatpush1.bf16.msra.mxu0 0
  %1913 = vmatprep.subr.bf16.mxu0 0
  %1914 = vmatpush1.bf16.msra.mxu0 0
  %1915 = vmatprep.subr.bf16.mxu0 0
  %1916 = vmatpush1.bf16.msra.mxu0 0
  %1917 = vmatprep.subr.bf16.mxu0 0
  %1918 = vmatpush1.bf16.msra.mxu0 0
  %1919 = vmatprep.subr.bf16.mxu0 0
  %1920 = vmatpush1.bf16.msra.mxu0 0
  %1921 = vmatprep.mubr.bf16.mxu0 0
  %1922 = vmatmul.mubr.bf16.gmra.mrb[0].mxu0 %v1883
  %v1923 = vpop.f32.mrb[0].mxu0
  %v1924 = vadd.f32 %v1861, %v1923
  %v1925 = vpop.f32.mrb[0].mxu0
  %v1926 = vpop.f32.mrb[0].mxu0
  %v1927 = vadd.f32 %v1864, %v1926
  %v1928 = vpop.f32.mrb[0].mxu0
  %1929 = vmatprep.mubr.bf16.mxu0 0
  %1930 = vmatmul.mubr.bf16.gmra.mrb[0].mxu0 %v1885
  %v1931 = vpop.f32.mrb[0].mxu0
  %v1932 = vadd.f32 %v1869, %v1931
  %v1933 = vpop.f32.mrb[0].mxu0
  %v1934 = vpop.f32.mrb[0].mxu0
  %v1935 = vadd.f32 %v1872, %v1934
  %v1936 = vpop.f32.mrb[0].mxu0
  %1937 = vmatprep.mubr.bf16.mxu0 0
  %1938 = vmatmul.mubr.bf16.gmra.mrb[0].mxu0 %v1887
  %v1939 = vpop.f32.mrb[0].mxu0
  %v1940 = vadd.f32 %v1877, %v1939
  %v1941 = vpop.f32.mrb[0].mxu0
  %v1942 = vpop.f32.mrb[0].mxu0
  %v1943 = vadd.f32 %v1880, %v1942
  %v1944 = vpop.f32.mrb[0].mxu0
  %1945 = vdwg.mxu0
  %v1950 = vrot.slane %v1785, 1
  %v1951 = vrot.slane %v1786, 1
  %v1952 = vsel %vm1699, %v1950, %v1951
  %v1953 = vrot.slane %v1787, 1
  %v1954 = vsel %vm1699, %v1951, %v1953
  %v1955 = vrot.slane %v1788, 1
  %v1956 = vsel %vm1699, %v1953, %v1955
  %v1958 = vsel %vm1353, %v1952, 0
  %v1961 = vsel %vm1353, %v1954, 0
  %v1964 = vsel %vm1353, %v1956, 0
  %1966 = vmatprep.subr.bf16.mxu0 0
  %1967 = vmatpush1.bf16.msra.mxu0 %v1711
  %1968 = vmatprep.subr.bf16.mxu0 0
  %1969 = vmatpush1.bf16.msra.mxu0 0
  %1970 = vmatprep.subr.bf16.mxu0 0
  %1971 = vmatpush1.bf16.msra.mxu0 0
  %1972 = vmatprep.subr.bf16.mxu0 0
  %1973 = vmatpush1.bf16.msra.mxu0 0
  %1974 = vmatprep.subr.bf16.mxu0 0
  %1975 = vmatpush1.bf16.msra.mxu0 0
  %1976 = vmatprep.subr.bf16.mxu0 0
  %1977 = vmatpush1.bf16.msra.mxu0 0
  %1978 = vmatprep.subr.bf16.mxu0 0
  %1979 = vmatpush1.bf16.msra.mxu0 0
  %1980 = vmatprep.subr.bf16.mxu0 0
  %1981 = vmatpush1.bf16.msra.mxu0 0
  %1982 = vmatprep.subr.bf16.mxu0 0
  %1983 = vmatpush1.bf16.msra.mxu0 0
  %1984 = vmatprep.subr.bf16.mxu0 0
  %1985 = vmatpush1.bf16.msra.mxu0 0
  %1986 = vmatprep.subr.bf16.mxu0 0
  %1987 = vmatpush1.bf16.msra.mxu0 0
  %1988 = vmatprep.subr.bf16.mxu0 0
  %1989 = vmatpush1.bf16.msra.mxu0 0
  %1990 = vmatprep.subr.bf16.mxu0 0
  %1991 = vmatpush1.bf16.msra.mxu0 0
  %1992 = vmatprep.subr.bf16.mxu0 0
  %1993 = vmatpush1.bf16.msra.mxu0 0
  %1994 = vmatprep.subr.bf16.mxu0 0
  %1995 = vmatpush1.bf16.msra.mxu0 0
  %1996 = vmatprep.subr.bf16.mxu0 0
  %1997 = vmatpush1.bf16.msra.mxu0 0
  %1998 = vmatprep.mubr.bf16.mxu0 0
  %1999 = vmatmul.mubr.bf16.gmra.mrb[0].mxu0 %v1958
  %v2000 = vpop.f32.mrb[0].mxu0
  %v2001 = vadd.f32 0.0, %v2000
  %v2002 = vpop.f32.mrb[0].mxu0
  %v2003 = vpop.f32.mrb[0].mxu0
  %v2004 = vadd.f32 0.0, %v2003
  %v2005 = vpop.f32.mrb[0].mxu0
  %2006 = vmatprep.mubr.bf16.mxu0 0
  %2007 = vmatmul.mubr.bf16.gmra.mrb[0].mxu0 %v1961
  %v2008 = vpop.f32.mrb[0].mxu0
  %v2009 = vadd.f32 0.0, %v2008
  %v2010 = vpop.f32.mrb[0].mxu0
  %v2011 = vpop.f32.mrb[0].mxu0
  %v2012 = vadd.f32 0.0, %v2011
  %v2013 = vpop.f32.mrb[0].mxu0
  %2014 = vmatprep.mubr.bf16.mxu0 0
  %2015 = vmatmul.mubr.bf16.gmra.mrb[0].mxu0 %v1964
  %v2016 = vpop.f32.mrb[0].mxu0
  %v2017 = vadd.f32 0.0, %v2016
  %v2018 = vpop.f32.mrb[0].mxu0
  %v2019 = vpop.f32.mrb[0].mxu0
  %v2020 = vadd.f32 0.0, %v2019
  %v2021 = vpop.f32.mrb[0].mxu0
  %2022 = vdwg.mxu0
  %v2023 = vadd.f32 %v1924, %v2001
  %v2024 = vadd.f32 %v1927, %v2004
  %v2025 = vadd.f32 %v1932, %v2009
  %v2026 = vadd.f32 %v1935, %v2012
  %v2027 = vadd.f32 %v1940, %v2017
  %v2028 = vadd.f32 %v1943, %v2020
  %vm2029 = vcmask 261120
  %v2030 = vsel %vm2029, %v1779, 0.0
  %v2031 = vsel %vm2029, %v1780, 0.0
  %v2032 = vadd.f32 %v2030, %v2031
  %v2033 = vsel %vm2029, %v1781, 0.0
  %v2034 = vadd.f32 %v2032, %v2033
  %v2035 = vsel %vm2029, %v1782, 0.0
  %v2036 = vadd.f32 %v2034, %v2035
  %v2037 = vsel %vm2029, %v1783, 0.0
  %v2038 = vadd.f32 %v2036, %v2037
  %v2039 = vsel %vm2029, %v1784, 0.0
  %v2040 = vadd.f32 %v2038, %v2039
  %v2041 = vrot.slane %v2040, 4
  %v2042 = vadd.f32 %v2040, %v2041
  %v2043 = vrot.slane %v2042, 2
  %v2044 = vadd.f32 %v2042, %v2043
  %v2045 = vrot.slane %v2044, 1
  %v2046 = vadd.f32 %v2044, %v2045
  %v2047 = vadd.f32 %v2046, 0.0
  %v2048 = vsel %vm2029, %v2023, 0.0
  %v2049 = vsel %vm2029, %v2024, 0.0
  %v2050 = vadd.f32 %v2048, %v2049
  %v2051 = vsel %vm2029, %v2025, 0.0
  %v2052 = vadd.f32 %v2050, %v2051
  %v2053 = vsel %vm2029, %v2026, 0.0
  %v2054 = vadd.f32 %v2052, %v2053
  %v2055 = vsel %vm2029, %v2027, 0.0
  %v2056 = vadd.f32 %v2054, %v2055
  %v2057 = vsel %vm2029, %v2028, 0.0
  %v2058 = vadd.f32 %v2056, %v2057
  %v2059 = vrot.slane %v2058, 4
  %v2060 = vadd.f32 %v2058, %v2059
  %v2061 = vrot.slane %v2060, 2
  %v2062 = vadd.f32 %v2060, %v2061
  %v2063 = vrot.slane %v2062, 1
  %v2064 = vadd.f32 %v2062, %v2063
  %v2065 = vadd.f32 %v2047, %v2064
  %v2066 = vmul.f32 %v1779, %v1779
  %v2067 = vmul.f32 %v1780, %v1780
  %v2068 = vmul.f32 %v1781, %v1781
  %v2069 = vmul.f32 %v1782, %v1782
  %v2070 = vmul.f32 %v1783, %v1783
  %v2071 = vmul.f32 %v1784, %v1784
  %v2072 = vsel %vm2029, %v2066, 0.0
  %v2073 = vsel %vm2029, %v2067, 0.0
  %v2074 = vadd.f32 %v2072, %v2073
  %v2075 = vsel %vm2029, %v2068, 0.0
  %v2076 = vadd.f32 %v2074, %v2075
  %v2077 = vsel %vm2029, %v2069, 0.0
  %v2078 = vadd.f32 %v2076, %v2077
  %v2079 = vsel %vm2029, %v2070, 0.0
  %v2080 = vadd.f32 %v2078, %v2079
  %v2081 = vsel %vm2029, %v2071, 0.0
  %v2082 = vadd.f32 %v2080, %v2081
  %v2083 = vrot.slane %v2082, 4
  %v2084 = vadd.f32 %v2082, %v2083
  %v2085 = vrot.slane %v2084, 2
  %v2086 = vadd.f32 %v2084, %v2085
  %v2087 = vrot.slane %v2086, 1
  %v2088 = vadd.f32 %v2086, %v2087
  %v2089 = vadd.f32 %v2088, 0.0
  %v2090 = vmul.f32 %v2023, %v2023
  %v2091 = vmul.f32 %v2024, %v2024
  %v2092 = vmul.f32 %v2025, %v2025
  %v2093 = vmul.f32 %v2026, %v2026
  %v2094 = vmul.f32 %v2027, %v2027
  %v2095 = vmul.f32 %v2028, %v2028
  %v2096 = vsel %vm2029, %v2090, 0.0
  %v2097 = vsel %vm2029, %v2091, 0.0
  %v2098 = vadd.f32 %v2096, %v2097
  %v2099 = vsel %vm2029, %v2092, 0.0
  %v2100 = vadd.f32 %v2098, %v2099
  %v2101 = vsel %vm2029, %v2093, 0.0
  %v2102 = vadd.f32 %v2100, %v2101
  %v2103 = vsel %vm2029, %v2094, 0.0
  %v2104 = vadd.f32 %v2102, %v2103
  %v2105 = vsel %vm2029, %v2095, 0.0
  %v2106 = vadd.f32 %v2104, %v2105
  %v2107 = vrot.slane %v2106, 4
  %v2108 = vadd.f32 %v2106, %v2107
  %v2109 = vrot.slane %v2108, 2
  %v2110 = vadd.f32 %v2108, %v2109
  %v2111 = vrot.slane %v2110, 1
  %v2112 = vadd.f32 %v2110, %v2111
  %v2113 = vadd.f32 %v2089, %v2112
  %v2114 = vmul.f32 %v2065, 0.010416667
  %v2115 = vmul.f32 %v2113, 0.010416667
  %v2116 = vmul.f32 %v2114, %v2114
  %v2117 = vsub.f32 %v2115, %v2116
  %v2118 = vmax.f32 %v2117, 0.0
  %v2119 = vadd.f32 %v2118, 1e-05
  %v2120 = vrsqrt.pop %v2119
  %v2121 = vmul.f32 %v1519, %v2120
  %v2122 = vmul.f32 %v2114, %v2121
  %v2123 = vsub.f32 %v1520, %v2122
  %v2125 = vlaneseq
  %v2126 = vshrl.u32 %v2125, 7
  %v2127 = vsub.s32 0, %v2126
  %v2128 = vrot.slane %v2121, %v2127
  %v2130 = vmul.f32 %v1779, %v2128
  %v2131 = vmul.f32 %v1780, %v2128
  %v2132 = vmul.f32 %v1781, %v2128
  %v2133 = vmul.f32 %v1782, %v2128
  %v2134 = vmul.f32 %v1783, %v2128
  %v2135 = vmul.f32 %v1784, %v2128
  %v2137 = vlaneseq
  %v2138 = vshrl.u32 %v2137, 7
  %v2139 = vsub.s32 0, %v2138
  %v2140 = vrot.slane %v2123, %v2139
  %v2142 = vadd.f32 %v2130, %v2140
  %v2143 = vadd.f32 %v2131, %v2140
  %v2144 = vadd.f32 %v2132, %v2140
  %v2145 = vadd.f32 %v2133, %v2140
  %v2146 = vadd.f32 %v2134, %v2140
  %v2147 = vadd.f32 %v2135, %v2140
  %v2148 = vmax.f32 %v2142, 0.0
  %v2149 = vmax.f32 %v2143, 0.0
  %v2150 = vmax.f32 %v2144, 0.0
  %v2151 = vmax.f32 %v2145, 0.0
  %v2152 = vmax.f32 %v2146, 0.0
  %v2153 = vmax.f32 %v2147, 0.0
  %v2154 = vmul.f32 %v2023, %v2128
  %v2155 = vmul.f32 %v2024, %v2128
  %v2156 = vmul.f32 %v2025, %v2128
  %v2157 = vmul.f32 %v2026, %v2128
  %v2158 = vmul.f32 %v2027, %v2128
  %v2159 = vmul.f32 %v2028, %v2128
  %v2160 = vadd.f32 %v2154, %v2140
  %v2161 = vadd.f32 %v2155, %v2140
  %v2162 = vadd.f32 %v2156, %v2140
  %v2163 = vadd.f32 %v2157, %v2140
  %v2164 = vadd.f32 %v2158, %v2140
  %v2165 = vadd.f32 %v2159, %v2140
  %v2166 = vmax.f32 %v2160, 0.0
  %v2167 = vmax.f32 %v2161, 0.0
  %v2168 = vmax.f32 %v2162, 0.0
  %v2169 = vmax.f32 %v2163, 0.0
  %v2170 = vmax.f32 %v2164, 0.0
  %v2171 = vmax.f32 %v2165, 0.0
  %2172 = vst.msk [vmem:[%s7] sm:$0xff] %vm2029, %v2148
  %2173 = vst.msk [vmem:[%s7 + $0x8] sm:$0xff] %vm2029, %v2149
  %2174 = vst.msk [vmem:[%s7 + $0x10] sm:$0xff] %vm2029, %v2150
  %2175 = vst.msk [vmem:[%s7 + $0x18] sm:$0xff] %vm2029, %v2151
  %2176 = vst.msk [vmem:[%s7 + $0x20] sm:$0xff] %vm2029, %v2152
  %2177 = vst.msk [vmem:[%s7 + $0x28] sm:$0xff] %vm2029, %v2153
  %s2178 = scalar_lea.vmem %s7, 48
  %2179 = vst.msk [vmem:[%s2178] sm:$0xff] %vm2029, %v2166
  %2180 = vst.msk [vmem:[%s2178 + $0x8] sm:$0xff] %vm2029, %v2167
  %2181 = vst.msk [vmem:[%s2178 + $0x10] sm:$0xff] %vm2029, %v2168
  %2182 = vst.msk [vmem:[%s2178 + $0x18] sm:$0xff] %vm2029, %v2169
  %2183 = vst.msk [vmem:[%s2178 + $0x20] sm:$0xff] %vm2029, %v2170
  %2184 = vst.msk [vmem:[%s2178 + $0x28] sm:$0xff] %vm2029, %v2171
  // Predicated region
  $region30: #{cnn_forward.2} parent=0 // pred_check
    _
  $region31: #{cnn_forward.2} parent=0 // pred_check_branch
    %2186 = sbr.rel (0) target = $region33
  $region32: #{cnn_forward.2} parent=0 // pred_region
    _
  $region33: #{cnn_forward.2} parent=0 // pred_fallthru
    _
  // Predicated region
  $region34: #{cnn_forward.2} parent=0 // pred_check
    _
  $region35: #{cnn_forward.2} parent=0 // pred_check_branch
    %2188 = sbr.rel (0) target = $region37
  $region36: #{cnn_forward.2} parent=0 // pred_region
    _
  $region37: #{cnn_forward.2} parent=0 // pred_fallthru
    _

// kernel: cnn_forward.3
$region0: #{cnn_forward.3}
  #allocation0 [shape = 'u32[]', space=smem, size = 0x4, offset = 0x4, fixed_abs, tag = 'smem constant byte address 0x4 - core index']
  #allocation1 [shape = 'u32[144,128]{1,0:T(1,128)}', space=vmem, size = 0x12000, scoped, tag = 'internal scratch']
  %s0 = inlined_call_operand.vmem [shape: f32[2,24,32], index: 0, kind: input, shape index: {}]
  %s1 = inlined_call_operand.vmem [shape: bf16[3,32,64], index: 1, kind: input, shape index: {}]
  %s2 = inlined_call_operand.vmem [shape: f32[1,64], index: 2, kind: input, shape index: {}]
  %s3 = inlined_call_operand.vmem [shape: f32[1,64], index: 3, kind: input, shape index: {}]
  %s4 = inlined_call_operand.vmem [shape: bf16[3,64,128], index: 4, kind: input, shape index: {}]
  %s5 = inlined_call_operand.vmem [shape: f32[1,128], index: 5, kind: input, shape index: {}]
  %s6 = inlined_call_operand.vmem [shape: f32[1,128], index: 6, kind: input, shape index: {}]
  %s7 = inlined_call_operand.vmem [shape: bf16[4,128,128], index: 7, kind: input, shape index: {}]
  %s8 = inlined_call_operand.vmem [shape: f32[1,128], index: 8, kind: input, shape index: {}]
  %s9 = inlined_call_operand.hbm [shape: f32[2,128], index: 9, kind: output, shape index: {}]
  %s10 = sld [smem:[#allocation0]]
  $region46: #{cnn_forward.3} parent=0
    _
  %s12 = ssub.s32 1, %s10
  %s13 = scalar_select 0, %s12, %s10
  $region1: #{cnn_forward.3} parent=0
    #allocation2 [shape = 'u8[1024]{0}', space=vmem, size = 0x400, scoped, tag = 'output window, operand 0, single buffered']
    #allocation3 [shape = 's32[1]{0}', space=sflag, size = 0x4, scoped, tag = 'scoped memory for cnn_forward.3']
    %14 = vsyncpa [#allocation3], 0
    // Predicated region
    $region2: #{cnn_forward.3} parent=1 // pred_check
      _
    $region3: #{cnn_forward.3} parent=1 // pred_check_branch
      %16 = sbr.rel (0) target = $region5
    $region4: #{cnn_forward.3} parent=1 // pred_region
      _
    $region5: #{cnn_forward.3} parent=1 // pred_fallthru
      _
    // Predicated region
    $region6: #{cnn_forward.3} parent=1 // pred_check
      _
    $region7: #{cnn_forward.3} parent=1 // pred_check_branch
      %18 = sbr.rel (0) target = $region9
    $region8: #{cnn_forward.3} parent=1 // pred_region
      _
    $region9: #{cnn_forward.3} parent=1 // pred_fallthru
      _
    // Predicated region
    $region10: #{cnn_forward.3} parent=1 // pred_check
      _
    $region11: #{cnn_forward.3} parent=1 // pred_check_branch
      %20 = sbr.rel (0) target = $region13
    $region12: #{cnn_forward.3} parent=1 // pred_region
      _
    $region13: #{cnn_forward.3} parent=1 // pred_fallthru
      _
    // Predicated region
    $region14: #{cnn_forward.3} parent=1 // pred_check
      _
    $region15: #{cnn_forward.3} parent=1 // pred_check_branch
      %22 = sbr.rel (0) target = $region17
    $region16: #{cnn_forward.3} parent=1 // pred_region
      _
    $region17: #{cnn_forward.3} parent=1 // pred_fallthru
      _
    // Predicated region
    $region18: #{cnn_forward.3} parent=1 // pred_check
      _
    $region19: #{cnn_forward.3} parent=1 // pred_check_branch
      %24 = sbr.rel (0) target = $region21
    $region20: #{cnn_forward.3} parent=1 // pred_region
      _
    $region21: #{cnn_forward.3} parent=1 // pred_fallthru
      _
    // Predicated region
    $region22: #{cnn_forward.3} parent=1 // pred_check
      _
    $region23: #{cnn_forward.3} parent=1 // pred_check_branch
      %26 = sbr.rel (0) target = $region25
    $region24: #{cnn_forward.3} parent=1 // pred_region
      _
    $region25: #{cnn_forward.3} parent=1 // pred_fallthru
      _
    // Predicated region
    $region26: #{cnn_forward.3} parent=1 // pred_check
      _
    $region27: #{cnn_forward.3} parent=1 // pred_check_branch
      %28 = sbr.rel (0) target = $region29
    $region28: #{cnn_forward.3} parent=1 // pred_region
      _
    $region29: #{cnn_forward.3} parent=1 // pred_fallthru
      _
    // Predicated region
    $region30: #{cnn_forward.3} parent=1 // pred_check
      _
    $region31: #{cnn_forward.3} parent=1 // pred_check_branch
      %30 = sbr.rel (0) target = $region33
    $region32: #{cnn_forward.3} parent=1 // pred_region
      _
    $region33: #{cnn_forward.3} parent=1 // pred_fallthru
      _
    // Predicated region
    $region34: #{cnn_forward.3} parent=1 // pred_check
      _
    $region35: #{cnn_forward.3} parent=1 // pred_check_branch
      %32 = sbr.rel (0) target = $region37
    $region36: #{cnn_forward.3} parent=1 // pred_region
      _
    $region37: #{cnn_forward.3} parent=1 // pred_fallthru
      _
    %v34 = vld [vmem:[%s0] sm:$0xff]
    %v35 = vld [vmem:[%s0 + $0x8] sm:$0xff]
    %v36 = vld [vmem:[%s0 + $0x10] sm:$0xff]
    %s37 = scalar_lea.vmem %s0, 24
    %v38 = vld [vmem:[%s37] sm:$0xff]
    %v39 = vld [vmem:[%s37 + $0x8] sm:$0xff]
    %v40 = vld [vmem:[%s37 + $0x10] sm:$0xff]
    %v41 = vld [vmem:[%s1] sm:$0xf]
    %v42 = vld [vmem:[%s1 + $0x4] sm:$0xf]
    %v43 = vld [vmem:[%s1 + $0x8] sm:$0xf]
    %v44 = vld [vmem:[%s1 + $0xc] sm:$0xf]
    %v45 = vld [vmem:[%s1 + $0x10] sm:$0xf]
    %v46 = vld [vmem:[%s1 + $0x14] sm:$0xf]
    %v47 = vld [vmem:[%s1 + $0x18] sm:$0xf]
    %v48 = vld [vmem:[%s1 + $0x1c] sm:$0xf]
    %v49 = vld [vmem:[%s1 + $0x20] sm:$0xf]
    %v50 = vld [vmem:[%s1 + $0x24] sm:$0xf]
    %v51 = vld [vmem:[%s1 + $0x28] sm:$0xf]
    %v52 = vld [vmem:[%s1 + $0x2c] sm:$0xf]
    %v53 = vld [vmem:[%s2] sm:$0x1]
    %v54 = vld [vmem:[%s3] sm:$0x1]
    %v55 = vpack.c.bf16 %v35, %v34
    %v56 = vpack.c.bf16 %v36, %v36
    %vm57 = vsmask.f32 7424
    %v59 = vshrl.u32 %v55, 16
    %v61 = vshll.u32 %v55, 16
    %v63 = vrot.slane %v61, 1
    %v64 = vor.u32 %v59, %v63
    %v66 = vshll.u32 %v56, 16
    %v68 = vrot.slane %v66, 1
    %v69 = vsel %vm57, %v64, %v68
    %v70 = vshrl.u32 %v56, 16
    %v72 = vor.u32 %v70, %v68
    %v77 = vunpack.c.l.b16 %v45
    %v78 = vunpack.c.l.b16 %v46
    %v79 = vunpack.c.l.b16 %v47
    %v80 = vunpack.c.l.b16 %v48
    %v81 = vpack.c.b16 %v78, %v77
    %v82 = vpack.c.b16 %v80, %v79
    %vm85 = vcmask 261120
    %v87 = vsel %vm85, %v69, 0
    %v90 = vsel %vm85, %v72, 0
    %92 = vmatprep.subr.bf16.mxu0 0
    %93 = vmatpush1.bf16.msra.mxu0 %v81
    %94 = vmatprep.subr.bf16.mxu0 0
    %95 = vmatpush1.bf16.msra.mxu0 %v82
    %96 = vmatprep.subr.bf16.mxu0 0
    %97 = vmatpush1.bf16.msra.mxu0 0
    %98 = vmatprep.subr.bf16.mxu0 0
    %99 = vmatpush1.bf16.msra.mxu0 0
    %100 = vmatprep.subr.bf16.mxu0 0
    %101 = vmatpush1.bf16.msra.mxu0 0
    %102 = vmatprep.subr.bf16.mxu0 0
    %103 = vmatpush1.bf16.msra.mxu0 0
    %104 = vmatprep.subr.bf16.mxu0 0
    %105 = vmatpush1.bf16.msra.mxu0 0
    %106 = vmatprep.subr.bf16.mxu0 0
    %107 = vmatpush1.bf16.msra.mxu0 0
    %108 = vmatprep.subr.bf16.mxu0 0
    %109 = vmatpush1.bf16.msra.mxu0 0
    %110 = vmatprep.subr.bf16.mxu0 0
    %111 = vmatpush1.bf16.msra.mxu0 0
    %112 = vmatprep.subr.bf16.mxu0 0
    %113 = vmatpush1.bf16.msra.mxu0 0
    %114 = vmatprep.subr.bf16.mxu0 0
    %115 = vmatpush1.bf16.msra.mxu0 0
    %116 = vmatprep.subr.bf16.mxu0 0
    %117 = vmatpush1.bf16.msra.mxu0 0
    %118 = vmatprep.subr.bf16.mxu0 0
    %119 = vmatpush1.bf16.msra.mxu0 0
    %120 = vmatprep.subr.bf16.mxu0 0
    %121 = vmatpush1.bf16.msra.mxu0 0
    %122 = vmatprep.subr.bf16.mxu0 0
    %123 = vmatpush1.bf16.msra.mxu0 0
    %124 = vmatprep.mubr.bf16.mxu0 0
    %125 = vmatmul.mubr.bf16.gmra.mrb[0].mxu0 %v87
    %v126 = vpop.f32.mrb[0].mxu0
    %v127 = vadd.f32 0.0, %v126
    %v128 = vpop.f32.mrb[0].mxu0
    %v129 = vpop.f32.mrb[0].mxu0
    %v130 = vadd.f32 0.0, %v129
    %v131 = vpop.f32.mrb[0].mxu0
    %132 = vmatprep.mubr.bf16.mxu0 0
    %133 = vmatmul.mubr.bf16.gmra.mrb[0].mxu0 %v90
    %v134 = vpop.f32.mrb[0].mxu0
    %v135 = vadd.f32 0.0, %v134
    %v136 = vpop.f32.mrb[0].mxu0
    %v137 = vpop.f32.mrb[0].mxu0
    %v138 = vpop.f32.mrb[0].mxu0
    %139 = vdwg.mxu0
    %v144 = vunpack.c.l.b16 %v41
    %v145 = vunpack.c.l.b16 %v42
    %v146 = vunpack.c.l.b16 %v43
    %v147 = vunpack.c.l.b16 %v44
    %v148 = vpack.c.b16 %v145, %v144
    %v149 = vpack.c.b16 %v147, %v146
    %v152 = vsel %vm85, %v55, 0
    %v154 = vsel %vm85, %v56, 0
    %156 = vmatprep.subr.bf16.mxu0 0
    %157 = vmatpush1.bf16.msra.mxu0 %v148
    %158 = vmatprep.subr.bf16.mxu0 0
    %159 = vmatpush1.bf16.msra.mxu0 %v149
    %160 = vmatprep.subr.bf16.mxu0 0
    %161 = vmatpush1.bf16.msra.mxu0 0
    %162 = vmatprep.subr.bf16.mxu0 0
    %163 = vmatpush1.bf16.msra.mxu0 0
    %164 = vmatprep.subr.bf16.mxu0 0
    %165 = vmatpush1.bf16.msra.mxu0 0
    %166 = vmatprep.subr.bf16.mxu0 0
    %167 = vmatpush1.bf16.msra.mxu0 0
    %168 = vmatprep.subr.bf16.mxu0 0
    %169 = vmatpush1.bf16.msra.mxu0 0
    %170 = vmatprep.subr.bf16.mxu0 0
    %171 = vmatpush1.bf16.msra.mxu0 0
    %172 = vmatprep.subr.bf16.mxu0 0
    %173 = vmatpush1.bf16.msra.mxu0 0
    %174 = vmatprep.subr.bf16.mxu0 0
    %175 = vmatpush1.bf16.msra.mxu0 0
    %176 = vmatprep.subr.bf16.mxu0 0
    %177 = vmatpush1.bf16.msra.mxu0 0
    %178 = vmatprep.subr.bf16.mxu0 0
    %179 = vmatpush1.bf16.msra.mxu0 0
    %180 = vmatprep.subr.bf16.mxu0 0
    %181 = vmatpush1.bf16.msra.mxu0 0
    %182 = vmatprep.subr.bf16.mxu0 0
    %183 = vmatpush1.bf16.msra.mxu0 0
    %184 = vmatprep.subr.bf16.mxu0 0
    %185 = vmatpush1.bf16.msra.mxu0 0
    %186 = vmatprep.subr.bf16.mxu0 0
    %187 = vmatpush1.bf16.msra.mxu0 0
    %188 = vmatprep.mubr.bf16.mxu0 0
    %189 = vmatmul.mubr.bf16.gmra.mrb[0].mxu0 %v152
    %v190 = vpop.f32.mrb[0].mxu0
    %v191 = vadd.f32 %v127, %v190
    %v192 = vpop.f32.mrb[0].mxu0
    %v193 = vpop.f32.mrb[0].mxu0
    %v194 = vadd.f32 %v130, %v193
    %v195 = vpop.f32.mrb[0].mxu0
    %196 = vmatprep.mubr.bf16.mxu0 0
    %197 = vmatmul.mubr.bf16.gmra.mrb[0].mxu0 %v154
    %v198 = vpop.f32.mrb[0].mxu0
    %v199 = vadd.f32 %v135, %v198
    %v200 = vpop.f32.mrb[0].mxu0
    %v201 = vpop.f32.mrb[0].mxu0
    %v202 = vpop.f32.mrb[0].mxu0
    %203 = vdwg.mxu0
    %vm206 = vcmask 1046528
    %v207 = vrot.slane %v55, 1
    %v208 = vrot.slane %v56, 1
    %v209 = vsel %vm206, %v207, %v208
    %v214 = vunpack.c.l.b16 %v49
    %v215 = vunpack.c.l.b16 %v50
    %v216 = vunpack.c.l.b16 %v51
    %v217 = vunpack.c.l.b16 %v52
    %v218 = vpack.c.b16 %v215, %v214
    %v219 = vpack.c.b16 %v217, %v216
    %v223 = vsel %vm85, %v209, 0
    %v226 = vsel %vm85, %v208, 0
    %228 = vmatprep.subr.bf16.mxu0 0
    %229 = vmatpush1.bf16.msra.mxu0 %v218
    %230 = vmatprep.subr.bf16.mxu0 0
    %231 = vmatpush1.bf16.msra.mxu0 %v219
    %232 = vmatprep.subr.bf16.mxu0 0
    %233 = vmatpush1.bf16.msra.mxu0 0
    %234 = vmatprep.subr.bf16.mxu0 0
    %235 = vmatpush1.bf16.msra.mxu0 0
    %236 = vmatprep.subr.bf16.mxu0 0
    %237 = vmatpush1.bf16.msra.mxu0 0
    %238 = vmatprep.subr.bf16.mxu0 0
    %239 = vmatpush1.bf16.msra.mxu0 0
    %240 = vmatprep.subr.bf16.mxu0 0
    %241 = vmatpush1.bf16.msra.mxu0 0
    %242 = vmatprep.subr.bf16.mxu0 0
    %243 = vmatpush1.bf16.msra.mxu0 0
    %244 = vmatprep.subr.bf16.mxu0 0
    %245 = vmatpush1.bf16.msra.mxu0 0
    %246 = vmatprep.subr.bf16.mxu0 0
    %247 = vmatpush1.bf16.msra.mxu0 0
    %248 = vmatprep.subr.bf16.mxu0 0
    %249 = vmatpush1.bf16.msra.mxu0 0
    %250 = vmatprep.subr.bf16.mxu0 0
    %251 = vmatpush1.bf16.msra.mxu0 0
    %252 = vmatprep.subr.bf16.mxu0 0
    %253 = vmatpush1.bf16.msra.mxu0 0
    %254 = vmatprep.subr.bf16.mxu0 0
    %255 = vmatpush1.bf16.msra.mxu0 0
    %256 = vmatprep.subr.bf16.mxu0 0
    %257 = vmatpush1.bf16.msra.mxu0 0
    %258 = vmatprep.subr.bf16.mxu0 0
    %259 = vmatpush1.bf16.msra.mxu0 0
    %260 = vmatprep.mubr.bf16.mxu0 0
    %261 = vmatmul.mubr.bf16.gmra.mrb[0].mxu0 %v223
    %v262 = vpop.f32.mrb[0].mxu0
    %v263 = vadd.f32 0.0, %v262
    %v264 = vpop.f32.mrb[0].mxu0
    %v265 = vpop.f32.mrb[0].mxu0
    %v266 = vadd.f32 0.0, %v265
    %v267 = vpop.f32.mrb[0].mxu0
    %268 = vmatprep.mubr.bf16.mxu0 0
    %269 = vmatmul.mubr.bf16.gmra.mrb[0].mxu0 %v226
    %v270 = vpop.f32.mrb[0].mxu0
    %v271 = vadd.f32 0.0, %v270
    %v272 = vpop.f32.mrb[0].mxu0
    %v273 = vpop.f32.mrb[0].mxu0
    %v274 = vpop.f32.mrb[0].mxu0
    %275 = vdwg.mxu0
    %v276 = vadd.f32 %v191, %v263
    %v277 = vadd.f32 %v194, %v266
    %v278 = vadd.f32 %v199, %v271
    %v279 = vpack.c.bf16 %v39, %v38
    %v280 = vpack.c.bf16 %v40, %v40
    %v282 = vshrl.u32 %v279, 16
    %v284 = vshll.u32 %v279, 16
    %v286 = vrot.slane %v284, 1
    %v287 = vor.u32 %v282, %v286
    %v289 = vshll.u32 %v280, 16
    %v291 = vrot.slane %v289, 1
    %v292 = vsel %vm57, %v287, %v291
    %v293 = vshrl.u32 %v280, 16
    %v295 = vor.u32 %v293, %v291
    %v297 = vsel %vm85, %v292, 0
    %v300 = vsel %vm85, %v295, 0
    %302 = vmatprep.subr.bf16.mxu0 0
    %303 = vmatpush1.bf16.msra.mxu0 %v81
    %304 = vmatprep.subr.bf16.mxu0 0
    %305 = vmatpush1.bf16.msra.mxu0 %v82
    %306 = vmatprep.subr.bf16.mxu0 0
    %307 = vmatpush1.bf16.msra.mxu0 0
    %308 = vmatprep.subr.bf16.mxu0 0
    %309 = vmatpush1.bf16.msra.mxu0 0
    %310 = vmatprep.subr.bf16.mxu0 0
    %311 = vmatpush1.bf16.msra.mxu0 0
    %312 = vmatprep.subr.bf16.mxu0 0
    %313 = vmatpush1.bf16.msra.mxu0 0
    %314 = vmatprep.subr.bf16.mxu0 0
    %315 = vmatpush1.bf16.msra.mxu0 0
    %316 = vmatprep.subr.bf16.mxu0 0
    %317 = vmatpush1.bf16.msra.mxu0 0
    %318 = vmatprep.subr.bf16.mxu0 0
    %319 = vmatpush1.bf16.msra.mxu0 0
    %320 = vmatprep.subr.bf16.mxu0 0
    %321 = vmatpush1.bf16.msra.mxu0 0
    %322 = vmatprep.subr.bf16.mxu0 0
    %323 = vmatpush1.bf16.msra.mxu0 0
    %324 = vmatprep.subr.bf16.mxu0 0
    %325 = vmatpush1.bf16.msra.mxu0 0
    %326 = vmatprep.subr.bf16.mxu0 0
    %327 = vmatpush1.bf16.msra.mxu0 0
    %328 = vmatprep.subr.bf16.mxu0 0
    %329 = vmatpush1.bf16.msra.mxu0 0
    %330 = vmatprep.subr.bf16.mxu0 0
    %331 = vmatpush1.bf16.msra.mxu0 0
    %332 = vmatprep.subr.bf16.mxu0 0
    %333 = vmatpush1.bf16.msra.mxu0 0
    %334 = vmatprep.mubr.bf16.mxu0 0
    %335 = vmatmul.mubr.bf16.gmra.mrb[0].mxu0 %v297
    %v336 = vpop.f32.mrb[0].mxu0
    %v337 = vadd.f32 0.0, %v336
    %v338 = vpop.f32.mrb[0].mxu0
    %v339 = vpop.f32.mrb[0].mxu0
    %v340 = vadd.f32 0.0, %v339
    %v341 = vpop.f32.mrb[0].mxu0
    %342 = vmatprep.mubr.bf16.mxu0 0
    %343 = vmatmul.mubr.bf16.gmra.mrb[0].mxu0 %v300
    %v344 = vpop.f32.mrb[0].mxu0
    %v345 = vadd.f32 0.0, %v344
    %v346 = vpop.f32.mrb[0].mxu0
    %v347 = vpop.f32.mrb[0].mxu0
    %v348 = vpop.f32.mrb[0].mxu0
    %349 = vdwg.mxu0
    %v350 = vsel %vm85, %v279, 0
    %v352 = vsel %vm85, %v280, 0
    %354 = vmatprep.subr.bf16.mxu0 0
    %355 = vmatpush1.bf16.msra.mxu0 %v148
    %356 = vmatprep.subr.bf16.mxu0 0
    %357 = vmatpush1.bf16.msra.mxu0 %v149
    %358 = vmatprep.subr.bf16.mxu0 0
    %359 = vmatpush1.bf16.msra.mxu0 0
    %360 = vmatprep.subr.bf16.mxu0 0
    %361 = vmatpush1.bf16.msra.mxu0 0
    %362 = vmatprep.subr.bf16.mxu0 0
    %363 = vmatpush1.bf16.msra.mxu0 0
    %364 = vmatprep.subr.bf16.mxu0 0
    %365 = vmatpush1.bf16.msra.mxu0 0
    %366 = vmatprep.subr.bf16.mxu0 0
    %367 = vmatpush1.bf16.msra.mxu0 0
    %368 = vmatprep.subr.bf16.mxu0 0
    %369 = vmatpush1.bf16.msra.mxu0 0
    %370 = vmatprep.subr.bf16.mxu0 0
    %371 = vmatpush1.bf16.msra.mxu0 0
    %372 = vmatprep.subr.bf16.mxu0 0
    %373 = vmatpush1.bf16.msra.mxu0 0
    %374 = vmatprep.subr.bf16.mxu0 0
    %375 = vmatpush1.bf16.msra.mxu0 0
    %376 = vmatprep.subr.bf16.mxu0 0
    %377 = vmatpush1.bf16.msra.mxu0 0
    %378 = vmatprep.subr.bf16.mxu0 0
    %379 = vmatpush1.bf16.msra.mxu0 0
    %380 = vmatprep.subr.bf16.mxu0 0
    %381 = vmatpush1.bf16.msra.mxu0 0
    %382 = vmatprep.subr.bf16.mxu0 0
    %383 = vmatpush1.bf16.msra.mxu0 0
    %384 = vmatprep.subr.bf16.mxu0 0
    %385 = vmatpush1.bf16.msra.mxu0 0
    %386 = vmatprep.mubr.bf16.mxu0 0
    %387 = vmatmul.mubr.bf16.gmra.mrb[0].mxu0 %v350
    %v388 = vpop.f32.mrb[0].mxu0
    %v389 = vadd.f32 %v337, %v388
    %v390 = vpop.f32.mrb[0].mxu0
    %v391 = vpop.f32.mrb[0].mxu0
    %v392 = vadd.f32 %v340, %v391
    %v393 = vpop.f32.mrb[0].mxu0
    %394 = vmatprep.mubr.bf16.mxu0 0
    %395 = vmatmul.mubr.bf16.gmra.mrb[0].mxu0 %v352
    %v396 = vpop.f32.mrb[0].mxu0
    %v397 = vadd.f32 %v345, %v396
    %v398 = vpop.f32.mrb[0].mxu0
    %v399 = vpop.f32.mrb[0].mxu0
    %v400 = vpop.f32.mrb[0].mxu0
    %401 = vdwg.mxu0
    %v404 = vrot.slane %v279, 1
    %v405 = vrot.slane %v280, 1
    %v406 = vsel %vm206, %v404, %v405
    %v408 = vsel %vm85, %v406, 0
    %v411 = vsel %vm85, %v405, 0
    %413 = vmatprep.subr.bf16.mxu0 0
    %414 = vmatpush1.bf16.msra.mxu0 %v218
    %415 = vmatprep.subr.bf16.mxu0 0
    %416 = vmatpush1.bf16.msra.mxu0 %v219
    %417 = vmatprep.subr.bf16.mxu0 0
    %418 = vmatpush1.bf16.msra.mxu0 0
    %419 = vmatprep.subr.bf16.mxu0 0
    %420 = vmatpush1.bf16.msra.mxu0 0
    %421 = vmatprep.subr.bf16.mxu0 0
    %422 = vmatpush1.bf16.msra.mxu0 0
    %423 = vmatprep.subr.bf16.mxu0 0
    %424 = vmatpush1.bf16.msra.mxu0 0
    %425 = vmatprep.subr.bf16.mxu0 0
    %426 = vmatpush1.bf16.msra.mxu0 0
    %427 = vmatprep.subr.bf16.mxu0 0
    %428 = vmatpush1.bf16.msra.mxu0 0
    %429 = vmatprep.subr.bf16.mxu0 0
    %430 = vmatpush1.bf16.msra.mxu0 0
    %431 = vmatprep.subr.bf16.mxu0 0
    %432 = vmatpush1.bf16.msra.mxu0 0
    %433 = vmatprep.subr.bf16.mxu0 0
    %434 = vmatpush1.bf16.msra.mxu0 0
    %435 = vmatprep.subr.bf16.mxu0 0
    %436 = vmatpush1.bf16.msra.mxu0 0
    %437 = vmatprep.subr.bf16.mxu0 0
    %438 = vmatpush1.bf16.msra.mxu0 0
    %439 = vmatprep.subr.bf16.mxu0 0
    %440 = vmatpush1.bf16.msra.mxu0 0
    %441 = vmatprep.subr.bf16.mxu0 0
    %442 = vmatpush1.bf16.msra.mxu0 0
    %443 = vmatprep.subr.bf16.mxu0 0
    %444 = vmatpush1.bf16.msra.mxu0 0
    %445 = vmatprep.mubr.bf16.mxu0 0
    %446 = vmatmul.mubr.bf16.gmra.mrb[0].mxu0 %v408
    %v447 = vpop.f32.mrb[0].mxu0
    %v448 = vadd.f32 0.0, %v447
    %v449 = vpop.f32.mrb[0].mxu0
    %v450 = vpop.f32.mrb[0].mxu0
    %v451 = vadd.f32 0.0, %v450
    %v452 = vpop.f32.mrb[0].mxu0
    %453 = vmatprep.mubr.bf16.mxu0 0
    %454 = vmatmul.mubr.bf16.gmra.mrb[0].mxu0 %v411
    %v455 = vpop.f32.mrb[0].mxu0
    %v456 = vadd.f32 0.0, %v455
    %v457 = vpop.f32.mrb[0].mxu0
    %v458 = vpop.f32.mrb[0].mxu0
    %v459 = vpop.f32.mrb[0].mxu0
    %460 = vdwg.mxu0
    %v461 = vadd.f32 %v389, %v448
    %v462 = vadd.f32 %v392, %v451
    %v463 = vadd.f32 %v397, %v456
    %vm464 = vcmask 523264
    %v465 = vsel %vm464, %v276, 0.0
    %v466 = vsel %vm464, %v277, 0.0
    %v467 = vadd.f32 %v465, %v466
    %vm468 = vcmask 521216
    %v469 = vsel %vm468, %v278, 0.0
    %v470 = vadd.f32 %v467, %v469
    %v471 = vrot.slane %v470, 4
    %v472 = vadd.f32 %v470, %v471
    %v473 = vrot.slane %v472, 2
    %v474 = vadd.f32 %v472, %v473
    %v475 = vrot.slane %v474, 1
    %v476 = vadd.f32 %v474, %v475
    %v477 = vadd.f32 %v476, 0.0
    %v478 = vsel %vm464, %v461, 0.0
    %v479 = vsel %vm464, %v462, 0.0
    %v480 = vadd.f32 %v478, %v479
    %v481 = vsel %vm468, %v463, 0.0
    %v482 = vadd.f32 %v480, %v481
    %v483 = vrot.slane %v482, 4
    %v484 = vadd.f32 %v482, %v483
    %v485 = vrot.slane %v484, 2
    %v486 = vadd.f32 %v484, %v485
    %v487 = vrot.slane %v486, 1
    %v488 = vadd.f32 %v486, %v487
    %v489 = vadd.f32 %v477, %v488
    %v490 = vmul.f32 %v276, %v276
    %v491 = vmul.f32 %v277, %v277
    %v492 = vmul.f32 %v278, %v278
    %v493 = vsel %vm464, %v490, 0.0
    %v494 = vsel %vm464, %v491, 0.0
    %v495 = vadd.f32 %v493, %v494
    %v496 = vsel %vm468, %v492, 0.0
    %v497 = vadd.f32 %v495, %v496
    %v498 = vrot.slane %v497, 4
    %v499 = vadd.f32 %v497, %v498
    %v500 = vrot.slane %v499, 2
    %v501 = vadd.f32 %v499, %v500
    %v502 = vrot.slane %v501, 1
    %v503 = vadd.f32 %v501, %v502
    %v504 = vadd.f32 %v503, 0.0
    %v505 = vmul.f32 %v461, %v461
    %v506 = vmul.f32 %v462, %v462
    %v507 = vmul.f32 %v463, %v463
    %v508 = vsel %vm464, %v505, 0.0
    %v509 = vsel %vm464, %v506, 0.0
    %v510 = vadd.f32 %v508, %v509
    %v511 = vsel %vm468, %v507, 0.0
    %v512 = vadd.f32 %v510, %v511
    %v513 = vrot.slane %v512, 4
    %v514 = vadd.f32 %v512, %v513
    %v515 = vrot.slane %v514, 2
    %v516 = vadd.f32 %v514, %v515
    %v517 = vrot.slane %v516, 1
    %v518 = vadd.f32 %v516, %v517
    %v519 = vadd.f32 %v504, %v518
    %v520 = vmul.f32 %v489, 0.022727273
    %v521 = vmul.f32 %v519, 0.022727273
    %v522 = vmul.f32 %v520, %v520
    %v523 = vsub.f32 %v521, %v522
    %v524 = vmax.f32 %v523, 0.0
    %v525 = vadd.f32 %v524, 1e-05
    %v526 = vrsqrt.pop %v525
    %v527 = vmul.f32 %v53, %v526
    %v528 = vmul.f32 %v520, %v527
    %v529 = vsub.f32 %v54, %v528
    %v531 = vlaneseq
    %v532 = vshrl.u32 %v531, 7
    %v533 = vsub.s32 0, %v532
    %v534 = vrot.slane %v527, %v533
    %v536 = vmul.f32 %v276, %v534
    %v537 = vmul.f32 %v277, %v534
    %v538 = vmul.f32 %v278, %v534
    %v540 = vlaneseq
    %v541 = vshrl.u32 %v540, 7
    %v542 = vsub.s32 0, %v541
    %v543 = vrot.slane %v529, %v542
    %v545 = vadd.f32 %v536, %v543
    %v546 = vadd.f32 %v537, %v543
    %v547 = vadd.f32 %v538, %v543
    %v548 = vmax.f32 %v545, 0.0
    %v549 = vmax.f32 %v546, 0.0
    %v550 = vmax.f32 %v547, 0.0
    %v551 = vmul.f32 %v461, %v534
    %v552 = vmul.f32 %v462, %v534
    %v553 = vmul.f32 %v463, %v534
    %v554 = vadd.f32 %v551, %v543
    %v555 = vadd.f32 %v552, %v543
    %v556 = vadd.f32 %v553, %v543
    %v557 = vmax.f32 %v554, 0.0
    %v558 = vmax.f32 %v555, 0.0
    %v559 = vmax.f32 %v556, 0.0
    %v560 = vld [vmem:[%s4] sm:$0xf]
    %v561 = vld [vmem:[%s4 + $0x4] sm:$0xf]
    %v562 = vld [vmem:[%s4 + $0x8] sm:$0xf]
    %v563 = vld [vmem:[%s4 + $0xc] sm:$0xf]
    %v564 = vld [vmem:[%s4 + $0x10] sm:$0xf]
    %v565 = vld [vmem:[%s4 + $0x14] sm:$0xf]
    %v566 = vld [vmem:[%s4 + $0x18] sm:$0xf]
    %v567 = vld [vmem:[%s4 + $0x1c] sm:$0xf]
    %v568 = vld [vmem:[%s4 + $0x20] sm:$0xf]
    %v569 = vld [vmem:[%s4 + $0x24] sm:$0xf]
    %v570 = vld [vmem:[%s4 + $0x28] sm:$0xf]
    %v571 = vld [vmem:[%s4 + $0x2c] sm:$0xf]
    %v572 = vld [vmem:[%s4 + $0x30] sm:$0xf]
    %v573 = vld [vmem:[%s4 + $0x34] sm:$0xf]
    %v574 = vld [vmem:[%s4 + $0x38] sm:$0xf]
    %v575 = vld [vmem:[%s4 + $0x3c] sm:$0xf]
    %v576 = vld [vmem:[%s4 + $0x40] sm:$0xf]
    %v577 = vld [vmem:[%s4 + $0x44] sm:$0xf]
    %v578 = vld [vmem:[%s4 + $0x48] sm:$0xf]
    %v579 = vld [vmem:[%s4 + $0x4c] sm:$0xf]
    %v580 = vld [vmem:[%s4 + $0x50] sm:$0xf]
    %v581 = vld [vmem:[%s4 + $0x54] sm:$0xf]
    %v582 = vld [vmem:[%s4 + $0x58] sm:$0xf]
    %v583 = vld [vmem:[%s4 + $0x5c] sm:$0xf]
    %v584 = vld [vmem:[%s5] sm:$0x1]
    %v585 = vld [vmem:[%s6] sm:$0x1]
    %v586 = vpack.c.bf16 %v549, %v548
    %v587 = vpack.c.bf16 %v550, %v550
    %v589 = vshrl.u32 %v586, 16
    %v591 = vshll.u32 %v586, 16
    %v593 = vrot.slane %v591, 1
    %v594 = vor.u32 %v589, %v593
    %v596 = vshll.u32 %v587, 16
    %v598 = vrot.slane %v596, 1
    %v599 = vsel %vm57, %v594, %v598
    %v600 = vshrl.u32 %v587, 16
    %v602 = vor.u32 %v600, %v598
    %v611 = vunpack.c.l.b16 %v568
    %v612 = vunpack.c.l.b16 %v569
    %v613 = vunpack.c.l.b16 %v570
    %v614 = vunpack.c.l.b16 %v571
    %v615 = vunpack.c.l.b16 %v572
    %v616 = vunpack.c.l.b16 %v573
    %v617 = vunpack.c.l.b16 %v574
    %v618 = vunpack.c.l.b16 %v575
    %v619 = vpack.c.b16 %v612, %v611
    %v620 = vpack.c.b16 %v614, %v613
    %v621 = vpack.c.b16 %v616, %v615
    %v622 = vpack.c.b16 %v618, %v617
    %v628 = vsel %vm464, %v599, 0
    %v631 = vsel %vm464, %v602, 0
    %633 = vmatprep.subr.bf16.mxu0 0
    %634 = vmatpush1.bf16.msra.mxu0 %v619
    %635 = vmatprep.subr.bf16.mxu0 0
    %636 = vmatpush1.bf16.msra.mxu0 %v620
    %637 = vmatprep.subr.bf16.mxu0 0
    %638 = vmatpush1.bf16.msra.mxu0 %v621
    %639 = vmatprep.subr.bf16.mxu0 0
    %640 = vmatpush1.bf16.msra.mxu0 %v622
    %641 = vmatprep.subr.bf16.mxu0 0
    %642 = vmatpush1.bf16.msra.mxu0 0
    %643 = vmatprep.subr.bf16.mxu0 0
    %644 = vmatpush1.bf16.msra.mxu0 0
    %645 = vmatprep.subr.bf16.mxu0 0
    %646 = vmatpush1.bf16.msra.mxu0 0
    %647 = vmatprep.subr.bf16.mxu0 0
    %648 = vmatpush1.bf16.msra.mxu0 0
    %649 = vmatprep.subr.bf16.mxu0 0
    %650 = vmatpush1.bf16.msra.mxu0 0
    %651 = vmatprep.subr.bf16.mxu0 0
    %652 = vmatpush1.bf16.msra.mxu0 0
    %653 = vmatprep.subr.bf16.mxu0 0
    %654 = vmatpush1.bf16.msra.mxu0 0
    %655 = vmatprep.subr.bf16.mxu0 0
    %656 = vmatpush1.bf16.msra.mxu0 0
    %657 = vmatprep.subr.bf16.mxu0 0
    %658 = vmatpush1.bf16.msra.mxu0 0
    %659 = vmatprep.subr.bf16.mxu0 0
    %660 = vmatpush1.bf16.msra.mxu0 0
    %661 = vmatprep.subr.bf16.mxu0 0
    %662 = vmatpush1.bf16.msra.mxu0 0
    %663 = vmatprep.subr.bf16.mxu0 0
    %664 = vmatpush1.bf16.msra.mxu0 0
    %665 = vmatprep.mubr.bf16.mxu0 0
    %666 = vmatmul.mubr.bf16.gmra.mrb[0].mxu0 %v628
    %v667 = vpop.f32.mrb[0].mxu0
    %v668 = vadd.f32 0.0, %v667
    %v669 = vpop.f32.mrb[0].mxu0
    %v670 = vpop.f32.mrb[0].mxu0
    %v671 = vadd.f32 0.0, %v670
    %v672 = vpop.f32.mrb[0].mxu0
    %673 = vmatprep.mubr.bf16.mxu0 0
    %674 = vmatmul.mubr.bf16.gmra.mrb[0].mxu0 %v631
    %v675 = vpop.f32.mrb[0].mxu0
    %v676 = vadd.f32 0.0, %v675
    %v677 = vpop.f32.mrb[0].mxu0
    %v678 = vpop.f32.mrb[0].mxu0
    %v679 = vpop.f32.mrb[0].mxu0
    %680 = vdwg.mxu0
    %v689 = vunpack.c.l.b16 %v560
    %v690 = vunpack.c.l.b16 %v561
    %v691 = vunpack.c.l.b16 %v562
    %v692 = vunpack.c.l.b16 %v563
    %v693 = vunpack.c.l.b16 %v564
    %v694 = vunpack.c.l.b16 %v565
    %v695 = vunpack.c.l.b16 %v566
    %v696 = vunpack.c.l.b16 %v567
    %v697 = vpack.c.b16 %v690, %v689
    %v698 = vpack.c.b16 %v692, %v691
    %v699 = vpack.c.b16 %v694, %v693
    %v700 = vpack.c.b16 %v696, %v695
    %v705 = vsel %vm464, %v586, 0
    %v707 = vsel %vm464, %v587, 0
    %709 = vmatprep.subr.bf16.mxu0 0
    %710 = vmatpush1.bf16.msra.mxu0 %v697
    %711 = vmatprep.subr.bf16.mxu0 0
    %712 = vmatpush1.bf16.msra.mxu0 %v698
    %713 = vmatprep.subr.bf16.mxu0 0
    %714 = vmatpush1.bf16.msra.mxu0 %v699
    %715 = vmatprep.subr.bf16.mxu0 0
    %716 = vmatpush1.bf16.msra.mxu0 %v700
    %717 = vmatprep.subr.bf16.mxu0 0
    %718 = vmatpush1.bf16.msra.mxu0 0
    %719 = vmatprep.subr.bf16.mxu0 0
    %720 = vmatpush1.bf16.msra.mxu0 0
    %721 = vmatprep.subr.bf16.mxu0 0
    %722 = vmatpush1.bf16.msra.mxu0 0
    %723 = vmatprep.subr.bf16.mxu0 0
    %724 = vmatpush1.bf16.msra.mxu0 0
    %725 = vmatprep.subr.bf16.mxu0 0
    %726 = vmatpush1.bf16.msra.mxu0 0
    %727 = vmatprep.subr.bf16.mxu0 0
    %728 = vmatpush1.bf16.msra.mxu0 0
    %729 = vmatprep.subr.bf16.mxu0 0
    %730 = vmatpush1.bf16.msra.mxu0 0
    %731 = vmatprep.subr.bf16.mxu0 0
    %732 = vmatpush1.bf16.msra.mxu0 0
    %733 = vmatprep.subr.bf16.mxu0 0
    %734 = vmatpush1.bf16.msra.mxu0 0
    %735 = vmatprep.subr.bf16.mxu0 0
    %736 = vmatpush1.bf16.msra.mxu0 0
    %737 = vmatprep.subr.bf16.mxu0 0
    %738 = vmatpush1.bf16.msra.mxu0 0
    %739 = vmatprep.subr.bf16.mxu0 0
    %740 = vmatpush1.bf16.msra.mxu0 0
    %741 = vmatprep.mubr.bf16.mxu0 0
    %742 = vmatmul.mubr.bf16.gmra.mrb[0].mxu0 %v705
    %v743 = vpop.f32.mrb[0].mxu0
    %v744 = vadd.f32 %v668, %v743
    %v745 = vpop.f32.mrb[0].mxu0
    %v746 = vpop.f32.mrb[0].mxu0
    %v747 = vadd.f32 %v671, %v746
    %v748 = vpop.f32.mrb[0].mxu0
    %749 = vmatprep.mubr.bf16.mxu0 0
    %750 = vmatmul.mubr.bf16.gmra.mrb[0].mxu0 %v707
    %v751 = vpop.f32.mrb[0].mxu0
    %v752 = vadd.f32 %v676, %v751
    %v753 = vpop.f32.mrb[0].mxu0
    %v754 = vpop.f32.mrb[0].mxu0
    %v755 = vpop.f32.mrb[0].mxu0
    %756 = vdwg.mxu0
    %v759 = vrot.slane %v586, 1
    %v760 = vrot.slane %v587, 1
    %v761 = vsel %vm206, %v759, %v760
    %v770 = vunpack.c.l.b16 %v576
    %v771 = vunpack.c.l.b16 %v577
    %v772 = vunpack.c.l.b16 %v578
    %v773 = vunpack.c.l.b16 %v579
    %v774 = vunpack.c.l.b16 %v580
    %v775 = vunpack.c.l.b16 %v581
    %v776 = vunpack.c.l.b16 %v582
    %v777 = vunpack.c.l.b16 %v583
    %v778 = vpack.c.b16 %v771, %v770
    %v779 = vpack.c.b16 %v773, %v772
    %v780 = vpack.c.b16 %v775, %v774
    %v781 = vpack.c.b16 %v777, %v776
    %v787 = vsel %vm464, %v761, 0
    %v790 = vsel %vm464, %v760, 0
    %792 = vmatprep.subr.bf16.mxu0 0
    %793 = vmatpush1.bf16.msra.mxu0 %v778
    %794 = vmatprep.subr.bf16.mxu0 0
    %795 = vmatpush1.bf16.msra.mxu0 %v779
    %796 = vmatprep.subr.bf16.mxu0 0
    %797 = vmatpush1.bf16.msra.mxu0 %v780
    %798 = vmatprep.subr.bf16.mxu0 0
    %799 = vmatpush1.bf16.msra.mxu0 %v781
    %800 = vmatprep.subr.bf16.mxu0 0
    %801 = vmatpush1.bf16.msra.mxu0 0
    %802 = vmatprep.subr.bf16.mxu0 0
    %803 = vmatpush1.bf16.msra.mxu0 0
    %804 = vmatprep.subr.bf16.mxu0 0
    %805 = vmatpush1.bf16.msra.mxu0 0
    %806 = vmatprep.subr.bf16.mxu0 0
    %807 = vmatpush1.bf16.msra.mxu0 0
    %808 = vmatprep.subr.bf16.mxu0 0
    %809 = vmatpush1.bf16.msra.mxu0 0
    %810 = vmatprep.subr.bf16.mxu0 0
    %811 = vmatpush1.bf16.msra.mxu0 0
    %812 = vmatprep.subr.bf16.mxu0 0
    %813 = vmatpush1.bf16.msra.mxu0 0
    %814 = vmatprep.subr.bf16.mxu0 0
    %815 = vmatpush1.bf16.msra.mxu0 0
    %816 = vmatprep.subr.bf16.mxu0 0
    %817 = vmatpush1.bf16.msra.mxu0 0
    %818 = vmatprep.subr.bf16.mxu0 0
    %819 = vmatpush1.bf16.msra.mxu0 0
    %820 = vmatprep.subr.bf16.mxu0 0
    %821 = vmatpush1.bf16.msra.mxu0 0
    %822 = vmatprep.subr.bf16.mxu0 0
    %823 = vmatpush1.bf16.msra.mxu0 0
    %824 = vmatprep.mubr.bf16.mxu0 0
    %825 = vmatmul.mubr.bf16.gmra.mrb[0].mxu0 %v787
    %v826 = vpop.f32.mrb[0].mxu0
    %v827 = vadd.f32 0.0, %v826
    %v828 = vpop.f32.mrb[0].mxu0
    %v829 = vpop.f32.mrb[0].mxu0
    %v830 = vadd.f32 0.0, %v829
    %v831 = vpop.f32.mrb[0].mxu0
    %832 = vmatprep.mubr.bf16.mxu0 0
    %833 = vmatmul.mubr.bf16.gmra.mrb[0].mxu0 %v790
    %v834 = vpop.f32.mrb[0].mxu0
    %v835 = vadd.f32 0.0, %v834
    %v836 = vpop.f32.mrb[0].mxu0
    %v837 = vpop.f32.mrb[0].mxu0
    %v838 = vpop.f32.mrb[0].mxu0
    %839 = vdwg.mxu0
    %v840 = vadd.f32 %v744, %v827
    %v841 = vadd.f32 %v747, %v830
    %v842 = vadd.f32 %v752, %v835
    %v843 = vpack.c.bf16 %v558, %v557
    %v844 = vpack.c.bf16 %v559, %v559
    %v846 = vshrl.u32 %v843, 16
    %v848 = vshll.u32 %v843, 16
    %v850 = vrot.slane %v848, 1
    %v851 = vor.u32 %v846, %v850
    %v853 = vshll.u32 %v844, 16
    %v855 = vrot.slane %v853, 1
    %v856 = vsel %vm57, %v851, %v855
    %v857 = vshrl.u32 %v844, 16
    %v859 = vor.u32 %v857, %v855
    %v861 = vsel %vm464, %v856, 0
    %v864 = vsel %vm464, %v859, 0
    %866 = vmatprep.subr.bf16.mxu0 0
    %867 = vmatpush1.bf16.msra.mxu0 %v619
    %868 = vmatprep.subr.bf16.mxu0 0
    %869 = vmatpush1.bf16.msra.mxu0 %v620
    %870 = vmatprep.subr.bf16.mxu0 0
    %871 = vmatpush1.bf16.msra.mxu0 %v621
    %872 = vmatprep.subr.bf16.mxu0 0
    %873 = vmatpush1.bf16.msra.mxu0 %v622
    %874 = vmatprep.subr.bf16.mxu0 0
    %875 = vmatpush1.bf16.msra.mxu0 0
    %876 = vmatprep.subr.bf16.mxu0 0
    %877 = vmatpush1.bf16.msra.mxu0 0
    %878 = vmatprep.subr.bf16.mxu0 0
    %879 = vmatpush1.bf16.msra.mxu0 0
    %880 = vmatprep.subr.bf16.mxu0 0
    %881 = vmatpush1.bf16.msra.mxu0 0
    %882 = vmatprep.subr.bf16.mxu0 0
    %883 = vmatpush1.bf16.msra.mxu0 0
    %884 = vmatprep.subr.bf16.mxu0 0
    %885 = vmatpush1.bf16.msra.mxu0 0
    %886 = vmatprep.subr.bf16.mxu0 0
    %887 = vmatpush1.bf16.msra.mxu0 0
    %888 = vmatprep.subr.bf16.mxu0 0
    %889 = vmatpush1.bf16.msra.mxu0 0
    %890 = vmatprep.subr.bf16.mxu0 0
    %891 = vmatpush1.bf16.msra.mxu0 0
    %892 = vmatprep.subr.bf16.mxu0 0
    %893 = vmatpush1.bf16.msra.mxu0 0
    %894 = vmatprep.subr.bf16.mxu0 0
    %895 = vmatpush1.bf16.msra.mxu0 0
    %896 = vmatprep.subr.bf16.mxu0 0
    %897 = vmatpush1.bf16.msra.mxu0 0
    %898 = vmatprep.mubr.bf16.mxu0 0
    %899 = vmatmul.mubr.bf16.gmra.mrb[0].mxu0 %v861
    %v900 = vpop.f32.mrb[0].mxu0
    %v901 = vadd.f32 0.0, %v900
    %v902 = vpop.f32.mrb[0].mxu0
    %v903 = vpop.f32.mrb[0].mxu0
    %v904 = vadd.f32 0.0, %v903
    %v905 = vpop.f32.mrb[0].mxu0
    %906 = vmatprep.mubr.bf16.mxu0 0
    %907 = vmatmul.mubr.bf16.gmra.mrb[0].mxu0 %v864
    %v908 = vpop.f32.mrb[0].mxu0
    %v909 = vadd.f32 0.0, %v908
    %v910 = vpop.f32.mrb[0].mxu0
    %v911 = vpop.f32.mrb[0].mxu0
    %v912 = vpop.f32.mrb[0].mxu0
    %913 = vdwg.mxu0
    %v914 = vsel %vm464, %v843, 0
    %v916 = vsel %vm464, %v844, 0
    %918 = vmatprep.subr.bf16.mxu0 0
    %919 = vmatpush1.bf16.msra.mxu0 %v697
    %920 = vmatprep.subr.bf16.mxu0 0
    %921 = vmatpush1.bf16.msra.mxu0 %v698
    %922 = vmatprep.subr.bf16.mxu0 0
    %923 = vmatpush1.bf16.msra.mxu0 %v699
    %924 = vmatprep.subr.bf16.mxu0 0
    %925 = vmatpush1.bf16.msra.mxu0 %v700
    %926 = vmatprep.subr.bf16.mxu0 0
    %927 = vmatpush1.bf16.msra.mxu0 0
    %928 = vmatprep.subr.bf16.mxu0 0
    %929 = vmatpush1.bf16.msra.mxu0 0
    %930 = vmatprep.subr.bf16.mxu0 0
    %931 = vmatpush1.bf16.msra.mxu0 0
    %932 = vmatprep.subr.bf16.mxu0 0
    %933 = vmatpush1.bf16.msra.mxu0 0
    %934 = vmatprep.subr.bf16.mxu0 0
    %935 = vmatpush1.bf16.msra.mxu0 0
    %936 = vmatprep.subr.bf16.mxu0 0
    %937 = vmatpush1.bf16.msra.mxu0 0
    %938 = vmatprep.subr.bf16.mxu0 0
    %939 = vmatpush1.bf16.msra.mxu0 0
    %940 = vmatprep.subr.bf16.mxu0 0
    %941 = vmatpush1.bf16.msra.mxu0 0
    %942 = vmatprep.subr.bf16.mxu0 0
    %943 = vmatpush1.bf16.msra.mxu0 0
    %944 = vmatprep.subr.bf16.mxu0 0
    %945 = vmatpush1.bf16.msra.mxu0 0
    %946 = vmatprep.subr.bf16.mxu0 0
    %947 = vmatpush1.bf16.msra.mxu0 0
    %948 = vmatprep.subr.bf16.mxu0 0
    %949 = vmatpush1.bf16.msra.mxu0 0
    %950 = vmatprep.mubr.bf16.mxu0 0
    %951 = vmatmul.mubr.bf16.gmra.mrb[0].mxu0 %v914
    %v952 = vpop.f32.mrb[0].mxu0
    %v953 = vadd.f32 %v901, %v952
    %v954 = vpop.f32.mrb[0].mxu0
    %v955 = vpop.f32.mrb[0].mxu0
    %v956 = vadd.f32 %v904, %v955
    %v957 = vpop.f32.mrb[0].mxu0
    %958 = vmatprep.mubr.bf16.mxu0 0
    %959 = vmatmul.mubr.bf16.gmra.mrb[0].mxu0 %v916
    %v960 = vpop.f32.mrb[0].mxu0
    %v961 = vadd.f32 %v909, %v960
    %v962 = vpop.f32.mrb[0].mxu0
    %v963 = vpop.f32.mrb[0].mxu0
    %v964 = vpop.f32.mrb[0].mxu0
    %965 = vdwg.mxu0
    %v968 = vrot.slane %v843, 1
    %v969 = vrot.slane %v844, 1
    %v970 = vsel %vm206, %v968, %v969
    %v972 = vsel %vm464, %v970, 0
    %v975 = vsel %vm464, %v969, 0
    %977 = vmatprep.subr.bf16.mxu0 0
    %978 = vmatpush1.bf16.msra.mxu0 %v778
    %979 = vmatprep.subr.bf16.mxu0 0
    %980 = vmatpush1.bf16.msra.mxu0 %v779
    %981 = vmatprep.subr.bf16.mxu0 0
    %982 = vmatpush1.bf16.msra.mxu0 %v780
    %983 = vmatprep.subr.bf16.mxu0 0
    %984 = vmatpush1.bf16.msra.mxu0 %v781
    %985 = vmatprep.subr.bf16.mxu0 0
    %986 = vmatpush1.bf16.msra.mxu0 0
    %987 = vmatprep.subr.bf16.mxu0 0
    %988 = vmatpush1.bf16.msra.mxu0 0
    %989 = vmatprep.subr.bf16.mxu0 0
    %990 = vmatpush1.bf16.msra.mxu0 0
    %991 = vmatprep.subr.bf16.mxu0 0
    %992 = vmatpush1.bf16.msra.mxu0 0
    %993 = vmatprep.subr.bf16.mxu0 0
    %994 = vmatpush1.bf16.msra.mxu0 0
    %995 = vmatprep.subr.bf16.mxu0 0
    %996 = vmatpush1.bf16.msra.mxu0 0
    %997 = vmatprep.subr.bf16.mxu0 0
    %998 = vmatpush1.bf16.msra.mxu0 0
    %999 = vmatprep.subr.bf16.mxu0 0
    %1000 = vmatpush1.bf16.msra.mxu0 0
    %1001 = vmatprep.subr.bf16.mxu0 0
    %1002 = vmatpush1.bf16.msra.mxu0 0
    %1003 = vmatprep.subr.bf16.mxu0 0
    %1004 = vmatpush1.bf16.msra.mxu0 0
    %1005 = vmatprep.subr.bf16.mxu0 0
    %1006 = vmatpush1.bf16.msra.mxu0 0
    %1007 = vmatprep.subr.bf16.mxu0 0
    %1008 = vmatpush1.bf16.msra.mxu0 0
    %1009 = vmatprep.mubr.bf16.mxu0 0
    %1010 = vmatmul.mubr.bf16.gmra.mrb[0].mxu0 %v972
    %v1011 = vpop.f32.mrb[0].mxu0
    %v1012 = vadd.f32 0.0, %v1011
    %v1013 = vpop.f32.mrb[0].mxu0
    %v1014 = vpop.f32.mrb[0].mxu0
    %v1015 = vadd.f32 0.0, %v1014
    %v1016 = vpop.f32.mrb[0].mxu0
    %1017 = vmatprep.mubr.bf16.mxu0 0
    %1018 = vmatmul.mubr.bf16.gmra.mrb[0].mxu0 %v975
    %v1019 = vpop.f32.mrb[0].mxu0
    %v1020 = vadd.f32 0.0, %v1019
    %v1021 = vpop.f32.mrb[0].mxu0
    %v1022 = vpop.f32.mrb[0].mxu0
    %v1023 = vpop.f32.mrb[0].mxu0
    %1024 = vdwg.mxu0
    %v1025 = vadd.f32 %v953, %v1012
    %v1026 = vadd.f32 %v956, %v1015
    %v1027 = vadd.f32 %v961, %v1020
    %v1028 = vadd.f32 %v840, %v841
    %vm1029 = vcmask 1043456
    %v1030 = vsel %vm1029, %v842, 0.0
    %v1031 = vadd.f32 %v1028, %v1030
    %v1032 = vrot.slane %v1031, 4
    %v1033 = vadd.f32 %v1031, %v1032
    %v1034 = vrot.slane %v1033, 2
    %v1035 = vadd.f32 %v1033, %v1034
    %v1036 = vrot.slane %v1035, 1
    %v1037 = vadd.f32 %v1035, %v1036
    %v1038 = vadd.f32 %v1037, 0.0
    %v1039 = vadd.f32 %v1025, %v1026
    %v1040 = vsel %vm1029, %v1027, 0.0
    %v1041 = vadd.f32 %v1039, %v1040
    %v1042 = vrot.slane %v1041, 4
    %v1043 = vadd.f32 %v1041, %v1042
    %v1044 = vrot.slane %v1043, 2
    %v1045 = vadd.f32 %v1043, %v1044
    %v1046 = vrot.slane %v1045, 1
    %v1047 = vadd.f32 %v1045, %v1046
    %v1048 = vadd.f32 %v1038, %v1047
    %v1049 = vmul.f32 %v840, %v840
    %v1050 = vmul.f32 %v841, %v841
    %v1051 = vmul.f32 %v842, %v842
    %v1052 = vadd.f32 %v1049, %v1050
    %v1053 = vsel %vm1029, %v1051, 0.0
    %v1054 = vadd.f32 %v1052, %v1053
    %v1055 = vrot.slane %v1054, 4
    %v1056 = vadd.f32 %v1054, %v1055
    %v1057 = vrot.slane %v1056, 2
    %v1058 = vadd.f32 %v1056, %v1057
    %v1059 = vrot.slane %v1058, 1
    %v1060 = vadd.f32 %v1058, %v1059
    %v1061 = vadd.f32 %v1060, 0.0
    %v1062 = vmul.f32 %v1025, %v1025
    %v1063 = vmul.f32 %v1026, %v1026
    %v1064 = vmul.f32 %v1027, %v1027
    %v1065 = vadd.f32 %v1062, %v1063
    %v1066 = vsel %vm1029, %v1064, 0.0
    %v1067 = vadd.f32 %v1065, %v1066
    %v1068 = vrot.slane %v1067, 4
    %v1069 = vadd.f32 %v1067, %v1068
    %v1070 = vrot.slane %v1069, 2
    %v1071 = vadd.f32 %v1069, %v1070
    %v1072 = vrot.slane %v1071, 1
    %v1073 = vadd.f32 %v1071, %v1072
    %v1074 = vadd.f32 %v1061, %v1073
    %v1075 = vmul.f32 %v1048, 0.025
    %v1076 = vmul.f32 %v1074, 0.025
    %v1077 = vmul.f32 %v1075, %v1075
    %v1078 = vsub.f32 %v1076, %v1077
    %v1079 = vmax.f32 %v1078, 0.0
    %v1080 = vadd.f32 %v1079, 1e-05
    %v1081 = vrsqrt.pop %v1080
    %v1082 = vmul.f32 %v584, %v1081
    %v1083 = vmul.f32 %v1075, %v1082
    %v1084 = vsub.f32 %v585, %v1083
    %v1086 = vlaneseq
    %v1087 = vshrl.u32 %v1086, 7
    %v1088 = vsub.s32 0, %v1087
    %v1089 = vrot.slane %v1082, %v1088
    %v1091 = vmul.f32 %v840, %v1089
    %v1092 = vmul.f32 %v841, %v1089
    %v1093 = vmul.f32 %v842, %v1089
    %v1095 = vlaneseq
    %v1096 = vshrl.u32 %v1095, 7
    %v1097 = vsub.s32 0, %v1096
    %v1098 = vrot.slane %v1084, %v1097
    %v1100 = vadd.f32 %v1091, %v1098
    %v1101 = vadd.f32 %v1092, %v1098
    %v1102 = vadd.f32 %v1093, %v1098
    %v1103 = vmax.f32 %v1100, 0.0
    %v1104 = vmax.f32 %v1101, 0.0
    %v1105 = vmax.f32 %v1102, 0.0
    %v1106 = vmul.f32 %v1025, %v1089
    %v1107 = vmul.f32 %v1026, %v1089
    %v1108 = vmul.f32 %v1027, %v1089
    %v1109 = vadd.f32 %v1106, %v1098
    %v1110 = vadd.f32 %v1107, %v1098
    %v1111 = vadd.f32 %v1108, %v1098
    %v1112 = vmax.f32 %v1109, 0.0
    %v1113 = vmax.f32 %v1110, 0.0
    %v1114 = vmax.f32 %v1111, 0.0
    %v1115 = vld [vmem:[%s7] sm:$0xf]
    %v1116 = vld [vmem:[%s7 + $0x4] sm:$0xf]
    %v1117 = vld [vmem:[%s7 + $0x8] sm:$0xf]
    %v1118 = vld [vmem:[%s7 + $0xc] sm:$0xf]
    %v1119 = vld [vmem:[%s7 + $0x10] sm:$0xf]
    %v1120 = vld [vmem:[%s7 + $0x14] sm:$0xf]
    %v1121 = vld [vmem:[%s7 + $0x18] sm:$0xf]
    %v1122 = vld [vmem:[%s7 + $0x1c] sm:$0xf]
    %v1123 = vld [vmem:[%s7 + $0x20] sm:$0xf]
    %v1124 = vld [vmem:[%s7 + $0x24] sm:$0xf]
    %v1125 = vld [vmem:[%s7 + $0x28] sm:$0xf]
    %v1126 = vld [vmem:[%s7 + $0x2c] sm:$0xf]
    %v1127 = vld [vmem:[%s7 + $0x30] sm:$0xf]
    %v1128 = vld [vmem:[%s7 + $0x34] sm:$0xf]
    %v1129 = vld [vmem:[%s7 + $0x38] sm:$0xf]
    %v1130 = vld [vmem:[%s7 + $0x3c] sm:$0xf]
    %v1131 = vld [vmem:[%s7 + $0x40] sm:$0xf]
    %v1132 = vld [vmem:[%s7 + $0x44] sm:$0xf]
    %v1133 = vld [vmem:[%s7 + $0x48] sm:$0xf]
    %v1134 = vld [vmem:[%s7 + $0x4c] sm:$0xf]
    %v1135 = vld [vmem:[%s7 + $0x50] sm:$0xf]
    %v1136 = vld [vmem:[%s7 + $0x54] sm:$0xf]
    %v1137 = vld [vmem:[%s7 + $0x58] sm:$0xf]
    %v1138 = vld [vmem:[%s7 + $0x5c] sm:$0xf]
    %v1139 = vld [vmem:[%s7 + $0x60] sm:$0xf]
    %v1140 = vld [vmem:[%s7 + $0x64] sm:$0xf]
    %v1141 = vld [vmem:[%s7 + $0x68] sm:$0xf]
    %v1142 = vld [vmem:[%s7 + $0x6c] sm:$0xf]
    %v1143 = vld [vmem:[%s7 + $0x70] sm:$0xf]
    %v1144 = vld [vmem:[%s7 + $0x74] sm:$0xf]
    %v1145 = vld [vmem:[%s7 + $0x78] sm:$0xf]
    %v1146 = vld [vmem:[%s7 + $0x7c] sm:$0xf]
    %v1147 = vld [vmem:[%s7 + $0x80] sm:$0xf]
    %v1148 = vld [vmem:[%s7 + $0x84] sm:$0xf]
    %v1149 = vld [vmem:[%s7 + $0x88] sm:$0xf]
    %v1150 = vld [vmem:[%s7 + $0x8c] sm:$0xf]
    %v1151 = vld [vmem:[%s7 + $0x90] sm:$0xf]
    %v1152 = vld [vmem:[%s7 + $0x94] sm:$0xf]
    %v1153 = vld [vmem:[%s7 + $0x98] sm:$0xf]
    %v1154 = vld [vmem:[%s7 + $0x9c] sm:$0xf]
    %v1155 = vld [vmem:[%s7 + $0xa0] sm:$0xf]
    %v1156 = vld [vmem:[%s7 + $0xa4] sm:$0xf]
    %v1157 = vld [vmem:[%s7 + $0xa8] sm:$0xf]
    %v1158 = vld [vmem:[%s7 + $0xac] sm:$0xf]
    %v1159 = vld [vmem:[%s7 + $0xb0] sm:$0xf]
    %v1160 = vld [vmem:[%s7 + $0xb4] sm:$0xf]
    %v1161 = vld [vmem:[%s7 + $0xb8] sm:$0xf]
    %v1162 = vld [vmem:[%s7 + $0xbc] sm:$0xf]
    %v1163 = vld [vmem:[%s7 + $0xc0] sm:$0xf]
    %v1164 = vld [vmem:[%s7 + $0xc4] sm:$0xf]
    %v1165 = vld [vmem:[%s7 + $0xc8] sm:$0xf]
    %v1166 = vld [vmem:[%s7 + $0xcc] sm:$0xf]
    %v1167 = vld [vmem:[%s7 + $0xd0] sm:$0xf]
    %v1168 = vld [vmem:[%s7 + $0xd4] sm:$0xf]
    %v1169 = vld [vmem:[%s7 + $0xd8] sm:$0xf]
    %v1170 = vld [vmem:[%s7 + $0xdc] sm:$0xf]
    %v1171 = vld [vmem:[%s7 + $0xe0] sm:$0xf]
    %v1172 = vld [vmem:[%s7 + $0xe4] sm:$0xf]
    %v1173 = vld [vmem:[%s7 + $0xe8] sm:$0xf]
    %v1174 = vld [vmem:[%s7 + $0xec] sm:$0xf]
    %v1175 = vld [vmem:[%s7 + $0xf0] sm:$0xf]
    %v1176 = vld [vmem:[%s7 + $0xf4] sm:$0xf]
    %v1177 = vld [vmem:[%s7 + $0xf8] sm:$0xf]
    %v1178 = vld [vmem:[%s7 + $0xfc] sm:$0xf]
    %vm1179 = vcmask 1044480
    %v1180 = vsel %vm1179, %v1103, -inf
    %v1181 = vrot.slane %v1180, 4
    %v1182 = vmax.f32 %v1180, %v1181
    %v1183 = vrot.slane %v1182, 2
    %v1184 = vmax.f32 %v1182, %v1183
    %v1185 = vrot.slane %v1184, 1
    %v1186 = vmax.f32 %v1184, %v1185
    %v1187 = vsel %vm1179, %v1112, -inf
    %v1188 = vrot.slane %v1187, 4
    %v1189 = vmax.f32 %v1187, %v1188
    %v1190 = vrot.slane %v1189, 2
    %v1191 = vmax.f32 %v1189, %v1190
    %v1192 = vrot.slane %v1191, 1
    %v1193 = vmax.f32 %v1191, %v1192
    %vm1194 = vcmask 1040384
    %v1195 = vsel %vm1194, %v1186, %v1193
    %v1196 = vpack.c.bf16 %v1195, %v1195
    %vm1197 = vcmask 1047557
    %v1198 = vsel %vm1197, %v1103, -inf
    %vm1199 = vcmask 1041408
    %v1200 = vsel %vm1199, %v1104, -inf
    %v1201 = vmax.f32 %v1198, %v1200
    %v1202 = vrot.slane %v1201, 4
    %v1203 = vmax.f32 %v1201, %v1202
    %v1204 = vrot.slane %v1203, 2
    %v1205 = vmax.f32 %v1203, %v1204
    %v1206 = vrot.slane %v1205, 1
    %v1207 = vmax.f32 %v1205, %v1206
    %v1208 = vsel %vm1197, %v1112, -inf
    %v1209 = vsel %vm1199, %v1113, -inf
    %v1210 = vmax.f32 %v1208, %v1209
    %v1211 = vrot.slane %v1210, 4
    %v1212 = vmax.f32 %v1210, %v1211
    %v1213 = vrot.slane %v1212, 2
    %v1214 = vmax.f32 %v1212, %v1213
    %v1215 = vrot.slane %v1214, 1
    %v1216 = vmax.f32 %v1214, %v1215
    %v1217 = vsel %vm1194, %v1207, %v1216
    %v1218 = vpack.c.bf16 %v1217, %v1217
    %v1235 = vunpack.c.l.b16 %v1131
    %v1236 = vunpack.c.l.b16 %v1132
    %v1237 = vunpack.c.l.b16 %v1133
    %v1238 = vunpack.c.l.b16 %v1134
    %v1239 = vunpack.c.l.b16 %v1135
    %v1240 = vunpack.c.l.b16 %v1136
    %v1241 = vunpack.c.l.b16 %v1137
    %v1242 = vunpack.c.l.b16 %v1138
    %v1243 = vunpack.c.l.b16 %v1139
    %v1244 = vunpack.c.l.b16 %v1140
    %v1245 = vunpack.c.l.b16 %v1141
    %v1246 = vunpack.c.l.b16 %v1142
    %v1247 = vunpack.c.l.b16 %v1143
    %v1248 = vunpack.c.l.b16 %v1144
    %v1249 = vunpack.c.l.b16 %v1145
    %v1250 = vunpack.c.l.b16 %v1146
    %v1251 = vpack.c.b16 %v1236, %v1235
    %v1252 = vpack.c.b16 %v1238, %v1237
    %v1253 = vpack.c.b16 %v1240, %v1239
    %v1254 = vpack.c.b16 %v1242, %v1241
    %v1255 = vpack.c.b16 %v1244, %v1243
    %v1256 = vpack.c.b16 %v1246, %v1245
    %v1257 = vpack.c.b16 %v1248, %v1247
    %v1258 = vpack.c.b16 %v1250, %v1249
    %1267 = vmatprep.subr.bf16.mxu0 0
    %1268 = vmatpush1.bf16.msra.mxu0 %v1251
    %1269 = vmatprep.subr.bf16.mxu0 0
    %1270 = vmatpush1.bf16.msra.mxu0 %v1252
    %1271 = vmatprep.subr.bf16.mxu0 0
    %1272 = vmatpush1.bf16.msra.mxu0 %v1253
    %1273 = vmatprep.subr.bf16.mxu0 0
    %1274 = vmatpush1.bf16.msra.mxu0 %v1254
    %1275 = vmatprep.subr.bf16.mxu0 0
    %1276 = vmatpush1.bf16.msra.mxu0 %v1255
    %1277 = vmatprep.subr.bf16.mxu0 0
    %1278 = vmatpush1.bf16.msra.mxu0 %v1256
    %1279 = vmatprep.subr.bf16.mxu0 0
    %1280 = vmatpush1.bf16.msra.mxu0 %v1257
    %1281 = vmatprep.subr.bf16.mxu0 0
    %1282 = vmatpush1.bf16.msra.mxu0 %v1258
    %1283 = vmatprep.subr.bf16.mxu0 0
    %1284 = vmatpush1.bf16.msra.mxu0 0
    %1285 = vmatprep.subr.bf16.mxu0 0
    %1286 = vmatpush1.bf16.msra.mxu0 0
    %1287 = vmatprep.subr.bf16.mxu0 0
    %1288 = vmatpush1.bf16.msra.mxu0 0
    %1289 = vmatprep.subr.bf16.mxu0 0
    %1290 = vmatpush1.bf16.msra.mxu0 0
    %1291 = vmatprep.subr.bf16.mxu0 0
    %1292 = vmatpush1.bf16.msra.mxu0 0
    %1293 = vmatprep.subr.bf16.mxu0 0
    %1294 = vmatpush1.bf16.msra.mxu0 0
    %1295 = vmatprep.subr.bf16.mxu0 0
    %1296 = vmatpush1.bf16.msra.mxu0 0
    %1297 = vmatprep.subr.bf16.mxu0 0
    %1298 = vmatpush1.bf16.msra.mxu0 0
    %1299 = vmatprep.mubr.bf16.mxu0 0
    %1300 = vmatmul.mubr.bf16.gmra.mrb[0].mxu0 %v1218
    %v1301 = vpop.f32.mrb[0].mxu0
    %v1302 = vadd.f32 0.0, %v1301
    %v1303 = vpop.f32.mrb[0].mxu0
    %v1304 = vpop.f32.mrb[0].mxu0
    %v1305 = vpop.f32.mrb[0].mxu0
    %1306 = vdwg.mxu0
    %v1323 = vunpack.c.l.b16 %v1115
    %v1324 = vunpack.c.l.b16 %v1116
    %v1325 = vunpack.c.l.b16 %v1117
    %v1326 = vunpack.c.l.b16 %v1118
    %v1327 = vunpack.c.l.b16 %v1119
    %v1328 = vunpack.c.l.b16 %v1120
    %v1329 = vunpack.c.l.b16 %v1121
    %v1330 = vunpack.c.l.b16 %v1122
    %v1331 = vunpack.c.l.b16 %v1123
    %v1332 = vunpack.c.l.b16 %v1124
    %v1333 = vunpack.c.l.b16 %v1125
    %v1334 = vunpack.c.l.b16 %v1126
    %v1335 = vunpack.c.l.b16 %v1127
    %v1336 = vunpack.c.l.b16 %v1128
    %v1337 = vunpack.c.l.b16 %v1129
    %v1338 = vunpack.c.l.b16 %v1130
    %v1339 = vpack.c.b16 %v1324, %v1323
    %v1340 = vpack.c.b16 %v1326, %v1325
    %v1341 = vpack.c.b16 %v1328, %v1327
    %v1342 = vpack.c.b16 %v1330, %v1329
    %v1343 = vpack.c.b16 %v1332, %v1331
    %v1344 = vpack.c.b16 %v1334, %v1333
    %v1345 = vpack.c.b16 %v1336, %v1335
    %v1346 = vpack.c.b16 %v1338, %v1337
    %1355 = vmatprep.subr.bf16.mxu0 0
    %1356 = vmatpush1.bf16.msra.mxu0 %v1339
    %1357 = vmatprep.subr.bf16.mxu0 0
    %1358 = vmatpush1.bf16.msra.mxu0 %v1340
    %1359 = vmatprep.subr.bf16.mxu0 0
    %1360 = vmatpush1.bf16.msra.mxu0 %v1341
    %1361 = vmatprep.subr.bf16.mxu0 0
    %1362 = vmatpush1.bf16.msra.mxu0 %v1342
    %1363 = vmatprep.subr.bf16.mxu0 0
    %1364 = vmatpush1.bf16.msra.mxu0 %v1343
    %1365 = vmatprep.subr.bf16.mxu0 0
    %1366 = vmatpush1.bf16.msra.mxu0 %v1344
    %1367 = vmatprep.subr.bf16.mxu0 0
    %1368 = vmatpush1.bf16.msra.mxu0 %v1345
    %1369 = vmatprep.subr.bf16.mxu0 0
    %1370 = vmatpush1.bf16.msra.mxu0 %v1346
    %1371 = vmatprep.subr.bf16.mxu0 0
    %1372 = vmatpush1.bf16.msra.mxu0 0
    %1373 = vmatprep.subr.bf16.mxu0 0
    %1374 = vmatpush1.bf16.msra.mxu0 0
    %1375 = vmatprep.subr.bf16.mxu0 0
    %1376 = vmatpush1.bf16.msra.mxu0 0
    %1377 = vmatprep.subr.bf16.mxu0 0
    %1378 = vmatpush1.bf16.msra.mxu0 0
    %1379 = vmatprep.subr.bf16.mxu0 0
    %1380 = vmatpush1.bf16.msra.mxu0 0
    %1381 = vmatprep.subr.bf16.mxu0 0
    %1382 = vmatpush1.bf16.msra.mxu0 0
    %1383 = vmatprep.subr.bf16.mxu0 0
    %1384 = vmatpush1.bf16.msra.mxu0 0
    %1385 = vmatprep.subr.bf16.mxu0 0
    %1386 = vmatpush1.bf16.msra.mxu0 0
    %1387 = vmatprep.mubr.bf16.mxu0 0
    %1388 = vmatmul.mubr.bf16.gmra.mrb[0].mxu0 %v1196
    %v1389 = vpop.f32.mrb[0].mxu0
    %v1390 = vadd.f32 %v1302, %v1389
    %v1391 = vpop.f32.mrb[0].mxu0
    %v1392 = vpop.f32.mrb[0].mxu0
    %v1393 = vpop.f32.mrb[0].mxu0
    %1394 = vdwg.mxu0
    %vm1395 = vcmask 1046530
    %v1396 = vsel %vm1395, %v1104, -inf
    %v1397 = vrot.slane %v1396, 4
    %v1398 = vmax.f32 %v1396, %v1397
    %v1399 = vrot.slane %v1398, 2
    %v1400 = vmax.f32 %v1398, %v1399
    %v1401 = vrot.slane %v1400, 1
    %v1402 = vmax.f32 %v1400, %v1401
    %v1403 = vsel %vm1395, %v1113, -inf
    %v1404 = vrot.slane %v1403, 4
    %v1405 = vmax.f32 %v1403, %v1404
    %v1406 = vrot.slane %v1405, 2
    %v1407 = vmax.f32 %v1405, %v1406
    %v1408 = vrot.slane %v1407, 1
    %v1409 = vmax.f32 %v1407, %v1408
    %v1410 = vsel %vm1194, %v1402, %v1409
    %v1411 = vpack.c.bf16 %v1410, %v1410
    %v1428 = vunpack.c.l.b16 %v1147
    %v1429 = vunpack.c.l.b16 %v1148
    %v1430 = vunpack.c.l.b16 %v1149
    %v1431 = vunpack.c.l.b16 %v1150
    %v1432 = vunpack.c.l.b16 %v1151
    %v1433 = vunpack.c.l.b16 %v1152
    %v1434 = vunpack.c.l.b16 %v1153
    %v1435 = vunpack.c.l.b16 %v1154
    %v1436 = vunpack.c.l.b16 %v1155
    %v1437 = vunpack.c.l.b16 %v1156
    %v1438 = vunpack.c.l.b16 %v1157
    %v1439 = vunpack.c.l.b16 %v1158
    %v1440 = vunpack.c.l.b16 %v1159
    %v1441 = vunpack.c.l.b16 %v1160
    %v1442 = vunpack.c.l.b16 %v1161
    %v1443 = vunpack.c.l.b16 %v1162
    %v1444 = vpack.c.b16 %v1429, %v1428
    %v1445 = vpack.c.b16 %v1431, %v1430
    %v1446 = vpack.c.b16 %v1433, %v1432
    %v1447 = vpack.c.b16 %v1435, %v1434
    %v1448 = vpack.c.b16 %v1437, %v1436
    %v1449 = vpack.c.b16 %v1439, %v1438
    %v1450 = vpack.c.b16 %v1441, %v1440
    %v1451 = vpack.c.b16 %v1443, %v1442
    %1460 = vmatprep.subr.bf16.mxu0 0
    %1461 = vmatpush1.bf16.msra.mxu0 %v1444
    %1462 = vmatprep.subr.bf16.mxu0 0
    %1463 = vmatpush1.bf16.msra.mxu0 %v1445
    %1464 = vmatprep.subr.bf16.mxu0 0
    %1465 = vmatpush1.bf16.msra.mxu0 %v1446
    %1466 = vmatprep.subr.bf16.mxu0 0
    %1467 = vmatpush1.bf16.msra.mxu0 %v1447
    %1468 = vmatprep.subr.bf16.mxu0 0
    %1469 = vmatpush1.bf16.msra.mxu0 %v1448
    %1470 = vmatprep.subr.bf16.mxu0 0
    %1471 = vmatpush1.bf16.msra.mxu0 %v1449
    %1472 = vmatprep.subr.bf16.mxu0 0
    %1473 = vmatpush1.bf16.msra.mxu0 %v1450
    %1474 = vmatprep.subr.bf16.mxu0 0
    %1475 = vmatpush1.bf16.msra.mxu0 %v1451
    %1476 = vmatprep.subr.bf16.mxu0 0
    %1477 = vmatpush1.bf16.msra.mxu0 0
    %1478 = vmatprep.subr.bf16.mxu0 0
    %1479 = vmatpush1.bf16.msra.mxu0 0
    %1480 = vmatprep.subr.bf16.mxu0 0
    %1481 = vmatpush1.bf16.msra.mxu0 0
    %1482 = vmatprep.subr.bf16.mxu0 0
    %1483 = vmatpush1.bf16.msra.mxu0 0
    %1484 = vmatprep.subr.bf16.mxu0 0
    %1485 = vmatpush1.bf16.msra.mxu0 0
    %1486 = vmatprep.subr.bf16.mxu0 0
    %1487 = vmatpush1.bf16.msra.mxu0 0
    %1488 = vmatprep.subr.bf16.mxu0 0
    %1489 = vmatpush1.bf16.msra.mxu0 0
    %1490 = vmatprep.subr.bf16.mxu0 0
    %1491 = vmatpush1.bf16.msra.mxu0 0
    %1492 = vmatprep.mubr.bf16.mxu0 0
    %1493 = vmatmul.mubr.bf16.gmra.mrb[0].mxu0 %v1411
    %v1494 = vpop.f32.mrb[0].mxu0
    %v1495 = vadd.f32 0.0, %v1494
    %v1496 = vpop.f32.mrb[0].mxu0
    %v1497 = vpop.f32.mrb[0].mxu0
    %v1498 = vpop.f32.mrb[0].mxu0
    %1499 = vdwg.mxu0
    %v1500 = vadd.f32 %v1390, %v1495
    %vm1501 = vcmask 1047559
    %v1502 = vsel %vm1501, %v1104, -inf
    %v1503 = vsel %vm1029, %v1105, -inf
    %v1504 = vmax.f32 %v1502, %v1503
    %v1505 = vrot.slane %v1504, 4
    %v1506 = vmax.f32 %v1504, %v1505
    %v1507 = vrot.slane %v1506, 2
    %v1508 = vmax.f32 %v1506, %v1507
    %v1509 = vrot.slane %v1508, 1
    %v1510 = vmax.f32 %v1508, %v1509
    %v1511 = vsel %vm1501, %v1113, -inf
    %v1512 = vsel %vm1029, %v1114, -inf
    %v1513 = vmax.f32 %v1511, %v1512
    %v1514 = vrot.slane %v1513, 4
    %v1515 = vmax.f32 %v1513, %v1514
    %v1516 = vrot.slane %v1515, 2
    %v1517 = vmax.f32 %v1515, %v1516
    %v1518 = vrot.slane %v1517, 1
    %v1519 = vmax.f32 %v1517, %v1518
    %v1520 = vsel %vm1194, %v1510, %v1519
    %v1521 = vpack.c.bf16 %v1520, %v1520
    %v1538 = vunpack.c.l.b16 %v1163
    %v1539 = vunpack.c.l.b16 %v1164
    %v1540 = vunpack.c.l.b16 %v1165
    %v1541 = vunpack.c.l.b16 %v1166
    %v1542 = vunpack.c.l.b16 %v1167
    %v1543 = vunpack.c.l.b16 %v1168
    %v1544 = vunpack.c.l.b16 %v1169
    %v1545 = vunpack.c.l.b16 %v1170
    %v1546 = vunpack.c.l.b16 %v1171
    %v1547 = vunpack.c.l.b16 %v1172
    %v1548 = vunpack.c.l.b16 %v1173
    %v1549 = vunpack.c.l.b16 %v1174
    %v1550 = vunpack.c.l.b16 %v1175
    %v1551 = vunpack.c.l.b16 %v1176
    %v1552 = vunpack.c.l.b16 %v1177
    %v1553 = vunpack.c.l.b16 %v1178
    %v1554 = vpack.c.b16 %v1539, %v1538
    %v1555 = vpack.c.b16 %v1541, %v1540
    %v1556 = vpack.c.b16 %v1543, %v1542
    %v1557 = vpack.c.b16 %v1545, %v1544
    %v1558 = vpack.c.b16 %v1547, %v1546
    %v1559 = vpack.c.b16 %v1549, %v1548
    %v1560 = vpack.c.b16 %v1551, %v1550
    %v1561 = vpack.c.b16 %v1553, %v1552
    %1570 = vmatprep.subr.bf16.mxu0 0
    %1571 = vmatpush1.bf16.msra.mxu0 %v1554
    %1572 = vmatprep.subr.bf16.mxu0 0
    %1573 = vmatpush1.bf16.msra.mxu0 %v1555
    %1574 = vmatprep.subr.bf16.mxu0 0
    %1575 = vmatpush1.bf16.msra.mxu0 %v1556
    %1576 = vmatprep.subr.bf16.mxu0 0
    %1577 = vmatpush1.bf16.msra.mxu0 %v1557
    %1578 = vmatprep.subr.bf16.mxu0 0
    %1579 = vmatpush1.bf16.msra.mxu0 %v1558
    %1580 = vmatprep.subr.bf16.mxu0 0
    %1581 = vmatpush1.bf16.msra.mxu0 %v1559
    %1582 = vmatprep.subr.bf16.mxu0 0
    %1583 = vmatpush1.bf16.msra.mxu0 %v1560
    %1584 = vmatprep.subr.bf16.mxu0 0
    %1585 = vmatpush1.bf16.msra.mxu0 %v1561
    %1586 = vmatprep.subr.bf16.mxu0 0
    %1587 = vmatpush1.bf16.msra.mxu0 0
    %1588 = vmatprep.subr.bf16.mxu0 0
    %1589 = vmatpush1.bf16.msra.mxu0 0
    %1590 = vmatprep.subr.bf16.mxu0 0
    %1591 = vmatpush1.bf16.msra.mxu0 0
    %1592 = vmatprep.subr.bf16.mxu0 0
    %1593 = vmatpush1.bf16.msra.mxu0 0
    %1594 = vmatprep.subr.bf16.mxu0 0
    %1595 = vmatpush1.bf16.msra.mxu0 0
    %1596 = vmatprep.subr.bf16.mxu0 0
    %1597 = vmatpush1.bf16.msra.mxu0 0
    %1598 = vmatprep.subr.bf16.mxu0 0
    %1599 = vmatpush1.bf16.msra.mxu0 0
    %1600 = vmatprep.subr.bf16.mxu0 0
    %1601 = vmatpush1.bf16.msra.mxu0 0
    %1602 = vmatprep.mubr.bf16.mxu0 0
    %1603 = vmatmul.mubr.bf16.gmra.mrb[0].mxu0 %v1521
    %v1604 = vpop.f32.mrb[0].mxu0
    %v1605 = vadd.f32 0.0, %v1604
    %v1606 = vpop.f32.mrb[0].mxu0
    %v1607 = vpop.f32.mrb[0].mxu0
    %v1608 = vpop.f32.mrb[0].mxu0
    %1609 = vdwg.mxu0
    %v1610 = vadd.f32 %v1500, %v1605
    %v1611 = vld [vmem:[%s8] sm:$0x1]
    %v1613 = vlaneseq
    %v1614 = vshrl.u32 %v1613, 7
    %v1615 = vsub.s32 0, %v1614
    %v1616 = vrot.slane %v1611, %v1615
    %v1618 = vadd.f32 %v1610, %v1616
    %v1619 = vmax.f32 %v1618, 0.0
    %1620 = vst [vmem:[#allocation2] sm:$0x3] %v1619
    // Predicated region
    $region38: #{cnn_forward.3} parent=1 // pred_check
      _
    $region39: #{cnn_forward.3} parent=1 // pred_check_branch
      %1622 = sbr.rel (0) target = $region41
    $region40: #{cnn_forward.3} parent=1 // pred_region
      %s1624 = ssub.s32 32, 32
      %1625 = vsyncadd [#allocation3], %s1624
      %s1627 = sshll.u32 [#allocation2], 4
      %s1628 = int_to_ptr.vmem [resolvable:$true] %s1627
      %1630 = dma.vmem_to_hbm [thread:$0]  %s1628, 32, %s9, [#allocation3]
    $region41: #{cnn_forward.3} parent=1 // pred_fallthru
      _
    // Predicated region
    $region42: #{cnn_forward.3} parent=1 // pred_check
      _
    $region43: #{cnn_forward.3} parent=1 // pred_check_branch
      %1632 = sbr.rel (0) target = $region45
    $region44: #{cnn_forward.3} parent=1 // pred_region
      %1633 = dma.done [#allocation3], 32
    $region45: #{cnn_forward.3} parent=1 // pred_fallthru
      _
    %1634 = vsyncpa [#allocation3], 1

</llo_original>
